<compile_context>
chip_gen: v5e
topology: v5e:2x2
jax: 0.10.0
libtpu: 0.0.40
codegen_flags: <defaults>
</compile_context>

<pallas_src>
import functools
import math

import jax
import jax.numpy as jnp
from jax import lax
from jax.experimental import pallas as pl
from jax.experimental.pallas import tpu as pltpu


def _pam_kernel(x_q_ref, x_kv_ref, ksum_ref, wqk_ref, bqk_ref, wqm_ref,
                wv_ref, bv_ref, scal_ref, o_ref,
                qw_scr, mq_scr, m_s, l_s, m_e, l_e, acc_s, acc_e,
                *, sigma_scale, compute_dtype):
    ki = pl.program_id(2)

    # ---- init: once per (batch, q-tile); kv is the innermost ("arbitrary") axis.
    @pl.when(ki == 0)
    def _init():
        # One transpose per q-tile, OUTSIDE the kv hot loop: (C, tq) -> (tq, C).
        xq_t = x_q_ref[0].T
        # qW = x_q^T (Wq Wk^T) + bq Wk^T   (Wk folded into the q side).
        qw = jnp.dot(xq_t.astype(compute_dtype), wqk_ref[...],
                     preferred_element_type=jnp.float32) + bqk_ref[...]
        qw_scr[...] = qw.astype(compute_dtype)
        # mean over query channels of q:  mq = x_q^T wq_mean + bq_mean  (f32).
        mq = jnp.sum(xq_t.astype(jnp.float32) * wqm_ref[...],
                     axis=1, keepdims=True)
        mq_scr[...] = mq + scal_ref[2]
        neg_inf = jnp.full(m_s.shape, -jnp.inf, jnp.float32)
        m_s[...] = neg_inf
        m_e[...] = neg_inf
        l_s[...] = jnp.zeros(l_s.shape, jnp.float32)
        l_e[...] = jnp.zeros(l_e.shape, jnp.float32)
        acc_s[...] = jnp.zeros(acc_s.shape, jnp.float32)
        acc_e[...] = jnp.zeros(acc_e.shape, jnp.float32)

    # ---- kv hot loop: ONE QK-style dot; sigma derived from energy (VPU fma).
    x_kv = x_kv_ref[0]                                      # (C, tkv), compute_dtype
    energy = jnp.dot(qw_scr[...], x_kv,
                     preferred_element_type=jnp.float32)    # (tq, tkv)
    # sigma = scale * (q - mean_q) k^T  ==  scale * (energy - mq (x) ksum)
    # (per-row constants from bq/bk dropped: softmax over kv is shift-invariant)
    sigma = sigma_scale * (energy - mq_scr[...] * ksum_ref[0])

    def _online(scores, m_ref, l_ref, acc_ref):
        m_prev = m_ref[...]
        m_new = jnp.maximum(m_prev, jnp.max(scores, axis=-1, keepdims=True))
        alpha = jnp.exp(m_prev - m_new)
        p = jnp.exp(scores - m_new)                         # f32 exp (EUP)
        l_ref[...] = alpha * l_ref[...] + jnp.sum(p, axis=-1, keepdims=True)
        # accumulate p @ x_kv^T (Wv folded into finalize); transpose_b
        # contraction, no materialized x_kv^T in the hot loop.
        acc_ref[...] = alpha * acc_ref[...] + lax.dot_general(
            p.astype(compute_dtype), x_kv, (((1,), (1,)), ((), ())),
            preferred_element_type=jnp.float32)
        m_ref[...] = m_new

    _online(sigma, m_s, l_s, acc_s)       # independent running stats per score type
    _online(energy, m_e, l_e, acc_e)

    # ---- finalize: exact normalization, Wv/bv applied once, residual, store.
    @pl.when(ki == pl.num_programs(2) - 1)
    def _finalize():
        gamma = scal_ref[0]
        beta = scal_ref[1]
        inv_ls = 1.0 / l_s[...]           # exact divide (once per q-tile)
        inv_le = 1.0 / l_e[...]
        blended = beta * (acc_s[...] * inv_ls) + (1.0 - beta) * (acc_e[...] * inv_le)
        attn = jnp.dot(blended, wv_ref[...],
                       preferred_element_type=jnp.float32) + bv_ref[...]   # (tq, C)
        out = gamma * attn.T + x_q_ref[0].astype(jnp.float32)              # (C, tq)
        o_ref[0] = out.astype(o_ref.dtype)


def multi_order_pam(x_nchw, params, *, tile_q=128, tile_kv=256,
                    compute_dtype=jnp.bfloat16, kv_buffering=2):
    """Multi-order position attention.  x_nchw: (B, C, H, W) -> (B, C, H, W)."""
    B, C, H, W = x_nchw.shape
    HW = H * W
    tile_q = min(tile_q, HW)
    tile_kv = min(tile_kv, HW)
    assert HW % tile_q == 0 and HW % tile_kv == 0
    assert (tile_q % 128 == 0 or tile_q == HW) and (tile_kv % 128 == 0 or tile_kv == HW)

    f32 = jnp.float32
    wq = params["wq"].astype(f32)
    bq = params["bq"].astype(f32)
    wk = params["wk"].astype(f32)
    wv = params["wv"].astype(f32)
    bv = params["bv"].astype(f32)
    Cq = wq.shape[1]
    # NOTE: bk only shifts every row of both score matrices by a per-row
    # constant, which the softmax over kv cancels exactly -> dropped.

    # Channel-major (B, C, HW): a free reshape of contiguous NCHW.
    x_flat = x_nchw.reshape(B, C, HW)
    # kv stream pre-cast once (no per-step cast, half HBM traffic when bf16).
    x_kv_stream = x_flat.astype(compute_dtype)

    # ---- one-time algebraic folds (tiny matrices, plain XLA) ---------------
    w_qk = jnp.dot(wq, wk.T).astype(compute_dtype)      # (C, C)  Wq Wk^T
    b_qk = jnp.dot(bq, wk.T)                            # (1, C)  bq Wk^T (f32)
    wq_mean = (jnp.sum(wq, axis=1) / Cq).reshape(1, C)  # (1, C)  f32
    bq_mean = jnp.sum(bq) / Cq                          # scalar  f32
    wk_sum = jnp.sum(wk, axis=1)                        # (C,)    f32
    # Per-key channel-sum of K (q-tile independent) precomputed once per batch.
    ksum = jnp.einsum('c,bcn->bn', wk_sum, x_flat.astype(f32))[:, None, :]  # (B,1,HW)
    scalars = jnp.stack([params["gamma"].reshape(()).astype(f32),
                         params["beta"].reshape(()).astype(f32),
                         bq_mean])                      # SMEM: [gamma, beta, bq_mean]
    sigma_scale = 1.0 / (Cq * math.sqrt(Cq))

    kv_idx = lambda b, qi, ki: (b, 0, ki)
    if kv_buffering > 2:   # v5e: deepen kv buffering if the kv DMA is exposed
        kv_spec = pl.BlockSpec((1, C, tile_kv), kv_idx,
                               pipeline_mode=pl.Buffered(kv_buffering))
    else:
        kv_spec = pl.BlockSpec((1, C, tile_kv), kv_idx)

    grid = (B, HW // tile_q, HW // tile_kv)
    kernel = functools.partial(_pam_kernel, sigma_scale=sigma_scale,
                               compute_dtype=compute_dtype)

    out_flat = pl.pallas_call(
        kernel,
        out_shape=jax.ShapeDtypeStruct((B, C, HW), x_nchw.dtype),
        grid_spec=pltpu.PrefetchScalarGridSpec(
            num_scalar_prefetch=0,
            grid=grid,
            in_specs=[
                pl.BlockSpec((1, C, tile_q), lambda b, qi, ki: (b, 0, qi)),   # x (q tile)
                kv_spec,                                                      # x (kv tile)
                pl.BlockSpec((1, 1, tile_kv), kv_idx),                        # ksum
                pl.BlockSpec((C, C), lambda b, qi, ki: (0, 0)),               # Wq Wk^T
                pl.BlockSpec((1, C), lambda b, qi, ki: (0, 0)),               # bq Wk^T
                pl.BlockSpec((1, C), lambda b, qi, ki: (0, 0)),               # wq_mean
                pl.BlockSpec((C, C), lambda b, qi, ki: (0, 0)),               # Wv
                pl.BlockSpec((1, C), lambda b, qi, ki: (0, 0)),               # bv
                pl.BlockSpec(memory_space=pltpu.MemorySpace.SMEM),            # scalars
            ],
            out_specs=pl.BlockSpec((1, C, tile_q), lambda b, qi, ki: (b, 0, qi)),
            scratch_shapes=[
                pltpu.VMEM((tile_q, C), compute_dtype),   # qW (resident per q-tile)
                pltpu.VMEM((tile_q, 1), jnp.float32),     # mean_q
                pltpu.VMEM((tile_q, 1), jnp.float32),     # m (sigma)
                pltpu.VMEM((tile_q, 1), jnp.float32),     # l (sigma)
                pltpu.VMEM((tile_q, 1), jnp.float32),     # m (energy)
                pltpu.VMEM((tile_q, 1), jnp.float32),     # l (energy)
                pltpu.VMEM((tile_q, C), jnp.float32),     # acc (sigma)
                pltpu.VMEM((tile_q, C), jnp.float32),     # acc (energy)
            ],
        ),
        compiler_params=pltpu.CompilerParams(
            dimension_semantics=("parallel", "parallel", "arbitrary"),
            vmem_limit_bytes=32 * 1024 * 1024,
        ),
    )(x_flat, x_kv_stream, ksum, w_qk, b_qk, wq_mean, wv, bv, scalars)

    return out_flat.reshape(B, C, H, W)


def reference(x, p):
    """Pure-JAX mirror of the PyTorch attention forward (for sanity check)."""
    B, C, H, W = x.shape
    HW = H * W
    xf = x.reshape(B, C, HW).astype(jnp.float32)
    q = jnp.einsum('co,bcn->bno', p["wq"], xf) + p["bq"][0]            # (B,HW,Cq)
    k = jnp.einsum('co,bcn->bon', p["wk"], xf) + p["bk"][0][:, None]   # (B,Cq,HW)
    v = jnp.einsum('co,bcn->bon', p["wv"], xf) + p["bv"][0][:, None]   # (B,C,HW)
    Cq = q.shape[-1]
    ave_I = (1.0 / Cq) * (jnp.eye(Cq, dtype=jnp.float32)
                          - (1.0 / Cq) * jnp.ones((Cq, Cq), jnp.float32))
    sigma = jnp.einsum('bnc,cd,bdm->bnm', q, ave_I, k) / math.sqrt(Cq)
    energy = jnp.einsum('bnc,bcm->bnm', q, k)
    beta = p["beta"][0, 0]
    gamma = p["gamma"][0, 0]
    attn = beta * jax.nn.softmax(sigma, -1) + (1.0 - beta) * jax.nn.softmax(energy, -1)
    out = jnp.einsum('bcn,bmn->bcm', v, attn)
    return gamma * out.reshape(B, C, H, W) + x


# ---------------------------------------------------------------------------
# DANetHead forward (conv5c -> attention_module -> conv52 -> conv7); the conv
# / norm / ReLU stages are standard ops and run as plain XLA around the Pallas
# attention kernel.
# ---------------------------------------------------------------------------
def _conv2d(x, w):
    return lax.conv_general_dilated(
        x, w, window_strides=(1, 1), padding="SAME",
        dimension_numbers=("NCHW", "OIHW", "NCHW"))


def _bn_relu(x, scale, bias):
    # norm_layer at inference time folded into a per-channel affine.
    return jnp.maximum(x * scale[None, :, None, None] + bias[None, :, None, None], 0.0)


def danet_head(x, head_p, attn_p, *, attention_fn=multi_order_pam, **pam_kw):
    """DANetHead.forward: conv5c -> attention -> conv52 -> conv7."""
    feat2 = _bn_relu(_conv2d(x, head_p["w5c"]), head_p["s5c"], head_p["b5c"])
    sc_feat = attention_fn(feat2, attn_p, **pam_kw)
    sc_conv = _bn_relu(_conv2d(sc_feat, head_p["w52"]), head_p["s52"], head_p["b52"])
    # TODO(synk): Dropout2d(0.1) is identity at inference; training-mode channel
    # dropout (and batch-statistics norm) are not implemented here.
    return _conv2d(sc_conv, head_p["w7"]) + head_p["b7"][None, :, None, None]


if __name__ == "__main__":
    key = jax.random.PRNGKey(0)

    # ------------- attention-module checks (Multi_Order_PAM) ----------------
    B, C, H, W = 2, 16, 16, 16          # channels 16 -> query/key channels = 2
    Cq = C // 8
    ks = jax.random.split(key, 7)
    x = jax.random.normal(ks[0], (B, C, H, W), jnp.float32)

    params = {
        "wq": 0.1 * jax.random.normal(ks[1], (C, Cq), jnp.float32),
        "bq": 0.1 * jax.random.normal(ks[2], (1, Cq), jnp.float32),
        "wk": 0.1 * jax.random.normal(ks[3], (C, Cq), jnp.float32),
        "bk": 0.1 * jax.random.normal(ks[4], (1, Cq), jnp.float32),
        "wv": 0.1 * jax.random.normal(ks[5], (C, C), jnp.float32),
        "bv": 0.1 * jax.random.normal(ks[6], (1, C), jnp.float32),
        "gamma": jnp.zeros((1, 1), jnp.float32),        # module __init__: zeros
        "beta": 0.5 * jnp.ones((1, 1), jnp.float32),    # module __init__: 0.5
    }

    # gamma == 0 (module init): output must equal the residual path exactly.
    out0 = jax.block_until_ready(multi_order_pam(x, params))
    assert out0.shape == (B, C, H, W)
    assert float(jnp.max(jnp.abs(out0 - x))) < 1e-6

    params_chk = dict(params, gamma=0.3 * jnp.ones((1, 1), jnp.float32))
    ref = reference(x, params_chk)

    # f32 MXU operands, multi-step kv loop (tile_kv=128 -> 2 kv steps): tight.
    out_f32 = jax.block_until_ready(
        multi_order_pam(x, params_chk, tile_kv=128, compute_dtype=jnp.float32))
    err_f32 = float(jnp.max(jnp.abs(out_f32 - ref)))
    assert err_f32 < 5e-3, err_f32

    # bf16 MXU operands (v6e/v7x fast path), default tile_kv=256: looser.
    out_bf16 = jax.block_until_ready(
        multi_order_pam(x, params_chk, compute_dtype=jnp.bfloat16))
    err_bf16 = float(jnp.max(jnp.abs(out_bf16 - ref)))
    assert err_bf16 < 3e-2, err_bf16

    # ------------- full DANetHead forward (convs in plain XLA) --------------
    in_ch, out_ch = 32, 8
    inter = in_ch // 2                  # dim_collapsion = 2
    Cq_h = inter // 8
    kh = jax.random.split(jax.random.PRNGKey(1), 15)
    xh = jax.random.normal(kh[0], (B, in_ch, H, W), jnp.float32)
    head_p = {
        "w5c": 0.1 * jax.random.normal(kh[1], (inter, in_ch, 3, 3), jnp.float32),
        "s5c": 1.0 + 0.1 * jax.random.normal(kh[2], (inter,), jnp.float32),
        "b5c": 0.1 * jax.random.normal(kh[3], (inter,), jnp.float32),
        "w52": 0.1 * jax.random.normal(kh[4], (inter, inter, 3, 3), jnp.float32),
        "s52": 1.0 + 0.1 * jax.random.normal(kh[5], (inter,), jnp.float32),
        "b52": 0.1 * jax.random.normal(kh[6], (inter,), jnp.float32),
        "w7": 0.1 * jax.random.normal(kh[7], (out_ch, inter, 1, 1), jnp.float32),
        "b7": 0.1 * jax.random.normal(kh[8], (out_ch,), jnp.float32),
    }
    attn_ph = {
        "wq": 0.1 * jax.random.normal(kh[9], (inter, Cq_h), jnp.float32),
        "bq": 0.1 * jax.random.normal(kh[10], (1, Cq_h), jnp.float32),
        "wk": 0.1 * jax.random.normal(kh[11], (inter, Cq_h), jnp.float32),
        "bk": 0.1 * jax.random.normal(kh[12], (1, Cq_h), jnp.float32),
        "wv": 0.1 * jax.random.normal(kh[13], (inter, inter), jnp.float32),
        "bv": 0.1 * jax.random.normal(kh[14], (1, inter), jnp.float32),
        "gamma": 0.3 * jnp.ones((1, 1), jnp.float32),
        "beta": 0.5 * jnp.ones((1, 1), jnp.float32),
    }
    head_out = jax.block_until_ready(
        danet_head(xh, head_p, attn_ph, compute_dtype=jnp.float32))
    head_ref = danet_head(xh, head_p, attn_ph, attention_fn=reference)
    assert head_out.shape == (B, out_ch, H, W)
    err_head = float(jnp.max(jnp.abs(head_out - head_ref)))
    assert err_head < 2e-2, err_head

    print("KERNEL_OK")
</pallas_src>

<mosaic_0001>
module attributes {stable_mosaic.version = 11 : i64} {
  func.func @_pam_kernel(%arg0: i32, %arg1: i32, %arg2: i32, %arg3: memref<1x16x128xf32, #tpu.memory_space<vmem>>, %arg4: memref<1x16x256xbf16, #tpu.memory_space<vmem>>, %arg5: memref<1x1x256xf32, #tpu.memory_space<vmem>>, %arg6: memref<16x16xbf16, #tpu.memory_space<vmem>>, %arg7: memref<1x16xf32, #tpu.memory_space<vmem>>, %arg8: memref<1x16xf32, #tpu.memory_space<vmem>>, %arg9: memref<16x16xf32, #tpu.memory_space<vmem>>, %arg10: memref<1x16xf32, #tpu.memory_space<vmem>>, %arg11: memref<3xf32, #tpu.memory_space<smem>>, %arg12: memref<1x16x128xf32, #tpu.memory_space<vmem>>, %arg13: memref<128x16xbf16, #tpu.memory_space<vmem>>, %arg14: memref<128x1xf32, #tpu.memory_space<vmem>>, %arg15: memref<128x1xf32, #tpu.memory_space<vmem>>, %arg16: memref<128x1xf32, #tpu.memory_space<vmem>>, %arg17: memref<128x1xf32, #tpu.memory_space<vmem>>, %arg18: memref<128x1xf32, #tpu.memory_space<vmem>>, %arg19: memref<128x16xf32, #tpu.memory_space<vmem>>, %arg20: memref<128x16xf32, #tpu.memory_space<vmem>>) attributes {dimension_semantics = [#tpu.dimension_semantics<parallel>, #tpu.dimension_semantics<parallel>, #tpu.dimension_semantics<arbitrary>], iteration_bounds = array<i64: 2, 2, 1>, scalar_prefetch = 0 : i64, scratch_operands = 8 : i64, tpu.core_type = #tpu.core_type<tc>, window_params = [{transform_indices = @transform_0, window_bounds = array<i64: 1, 16, 128>}, {transform_indices = @transform_1, window_bounds = array<i64: 1, 16, 256>}, {transform_indices = @transform_2, window_bounds = array<i64: 1, 1, 256>}, {pipeline_mode = #tpu.pipeline_mode<synchronous>, transform_indices = @transform_3, window_bounds = array<i64: 16, 16>}, {pipeline_mode = #tpu.pipeline_mode<synchronous>, transform_indices = @transform_4, window_bounds = array<i64: 1, 16>}, {pipeline_mode = #tpu.pipeline_mode<synchronous>, transform_indices = @transform_5, window_bounds = array<i64: 1, 16>}, {pipeline_mode = #tpu.pipeline_mode<synchronous>, transform_indices = @transform_6, window_bounds = array<i64: 16, 16>}, {pipeline_mode = #tpu.pipeline_mode<synchronous>, transform_indices = @transform_7, window_bounds = array<i64: 1, 16>}, {transform_indices = @transform_8, window_bounds = array<i64: 3>}, {transform_indices = @transform_9, window_bounds = array<i64: 1, 16, 128>}]} {
    %c0_i32 = arith.constant 0 : i32
    %0 = arith.cmpi eq, %arg2, %c0_i32 : i32
    %1 = arith.extui %0 : i1 to i32
    %c0_i32_0 = arith.constant 0 : i32
    %2 = arith.cmpi ne, %1, %c0_i32_0 : i32
    scf.if %2 {
      %c0_43 = arith.constant 0 : index
      %c0_44 = arith.constant 0 : index
      %c0_45 = arith.constant 0 : index
      %65 = vector.load %arg3[%c0_43, %c0_44, %c0_45] : memref<1x16x128xf32, #tpu.memory_space<vmem>>, vector<1x16x128xf32>
      %66 = vector.shape_cast %65 : vector<1x16x128xf32> to vector<16x128xf32>
      %67 = tpu.transpose %66, [1, 0] : vector<16x128xf32> -> vector<128x16xf32>
      %68 = arith.truncf %67 : vector<128x16xf32> to vector<128x16xbf16>
      %c0_46 = arith.constant 0 : index
      %c0_47 = arith.constant 0 : index
      %69 = vector.load %arg6[%c0_46, %c0_47] : memref<16x16xbf16, #tpu.memory_space<vmem>>, vector<16x16xbf16>
      %cst_48 = arith.constant dense<0.000000e+00> : vector<128x16xf32>
      %70 = tpu.matmul %68, %69, %cst_48 {dimension_numbers = #tpu.dot_dimension_numbers<[1], [0], [0], [1], [0, 0, 1, 1], [], []>} : vector<128x16xbf16>, vector<16x16xbf16>, vector<128x16xf32> -> vector<128x16xf32>
      %c0_49 = arith.constant 0 : index
      %c0_50 = arith.constant 0 : index
      %71 = vector.load %arg7[%c0_49, %c0_50] : memref<1x16xf32, #tpu.memory_space<vmem>>, vector<1x16xf32>
      %72 = vector.broadcast %71 : vector<1x16xf32> to vector<128x16xf32>
      %73 = arith.addf %70, %72 : vector<128x16xf32>
      %74 = arith.truncf %73 : vector<128x16xf32> to vector<128x16xbf16>
      %c0_51 = arith.constant 0 : index
      %c0_52 = arith.constant 0 : index
      %75 = vector.load %arg13[%c0_51, %c0_52] : memref<128x16xbf16, #tpu.memory_space<vmem>>, vector<128x16xbf16>
      tpu.vector_store %arg13[%c0_51, %c0_52], %74 {strides = array<i32>} : memref<128x16xbf16, #tpu.memory_space<vmem>>, vector<128x16xbf16>,
      %c0_53 = arith.constant 0 : index
      %c0_54 = arith.constant 0 : index
      %76 = vector.load %arg8[%c0_53, %c0_54] : memref<1x16xf32, #tpu.memory_space<vmem>>, vector<1x16xf32>
      %77 = vector.broadcast %76 : vector<1x16xf32> to vector<128x16xf32>
      %78 = arith.mulf %67, %77 : vector<128x16xf32>
      %cst_55 = arith.constant dense<0.000000e+00> : vector<128xf32>
      %79 = vector.multi_reduction <add>, %78, %cst_55 [1] : vector<128x16xf32> to vector<128xf32>
      %80 = vector.shape_cast %79 : vector<128xf32> to vector<128x1xf32>
      %c2 = arith.constant 2 : index
      %81 = memref.load %arg11[%c2] : memref<3xf32, #tpu.memory_space<smem>>
      %82 = vector.broadcast %81 : f32 to vector<128x1xf32>
      %83 = arith.addf %80, %82 : vector<128x1xf32>
      %c0_56 = arith.constant 0 : index
      %c0_57 = arith.constant 0 : index
      %84 = vector.load %arg14[%c0_56, %c0_57] : memref<128x1xf32, #tpu.memory_space<vmem>>, vector<128x1xf32>
      tpu.vector_store %arg14[%c0_56, %c0_57], %83 {strides = array<i32>} : memref<128x1xf32, #tpu.memory_space<vmem>>, vector<128x1xf32>,
      %cst_58 = arith.constant 0xFF800000 : f32
      %85 = vector.broadcast %cst_58 : f32 to vector<128x1xf32>
      %c0_59 = arith.constant 0 : index
      %c0_60 = arith.constant 0 : index
      %86 = vector.load %arg15[%c0_59, %c0_60] : memref<128x1xf32, #tpu.memory_space<vmem>>, vector<128x1xf32>
      tpu.vector_store %arg15[%c0_59, %c0_60], %85 {strides = array<i32>} : memref<128x1xf32, #tpu.memory_space<vmem>>, vector<128x1xf32>,
      %c0_61 = arith.constant 0 : index
      %c0_62 = arith.constant 0 : index
      %87 = vector.load %arg17[%c0_61, %c0_62] : memref<128x1xf32, #tpu.memory_space<vmem>>, vector<128x1xf32>
      tpu.vector_store %arg17[%c0_61, %c0_62], %85 {strides = array<i32>} : memref<128x1xf32, #tpu.memory_space<vmem>>, vector<128x1xf32>,
      %cst_63 = arith.constant 0.000000e+00 : f32
      %88 = vector.broadcast %cst_63 : f32 to vector<128x1xf32>
      %c0_64 = arith.constant 0 : index
      %c0_65 = arith.constant 0 : index
      %89 = vector.load %arg16[%c0_64, %c0_65] : memref<128x1xf32, #tpu.memory_space<vmem>>, vector<128x1xf32>
      tpu.vector_store %arg16[%c0_64, %c0_65], %88 {strides = array<i32>} : memref<128x1xf32, #tpu.memory_space<vmem>>, vector<128x1xf32>,
      %cst_66 = arith.constant 0.000000e+00 : f32
      %90 = vector.broadcast %cst_66 : f32 to vector<128x1xf32>
      %c0_67 = arith.constant 0 : index
      %c0_68 = arith.constant 0 : index
      %91 = vector.load %arg18[%c0_67, %c0_68] : memref<128x1xf32, #tpu.memory_space<vmem>>, vector<128x1xf32>
      tpu.vector_store %arg18[%c0_67, %c0_68], %90 {strides = array<i32>} : memref<128x1xf32, #tpu.memory_space<vmem>>, vector<128x1xf32>,
      %cst_69 = arith.constant 0.000000e+00 : f32
      %92 = vector.broadcast %cst_69 : f32 to vector<128x16xf32>
      %c0_70 = arith.constant 0 : index
      %c0_71 = arith.constant 0 : index
      %93 = vector.load %arg19[%c0_70, %c0_71] : memref<128x16xf32, #tpu.memory_space<vmem>>, vector<128x16xf32>
      tpu.vector_store %arg19[%c0_70, %c0_71], %92 {strides = array<i32>} : memref<128x16xf32, #tpu.memory_space<vmem>>, vector<128x16xf32>,
      %cst_72 = arith.constant 0.000000e+00 : f32
      %94 = vector.broadcast %cst_72 : f32 to vector<128x16xf32>
      %c0_73 = arith.constant 0 : index
      %c0_74 = arith.constant 0 : index
      %95 = vector.load %arg20[%c0_73, %c0_74] : memref<128x16xf32, #tpu.memory_space<vmem>>, vector<128x16xf32>
      tpu.vector_store %arg20[%c0_73, %c0_74], %94 {strides = array<i32>} : memref<128x16xf32, #tpu.memory_space<vmem>>, vector<128x16xf32>,
    } else {
    }
    %c0 = arith.constant 0 : index
    %c0_1 = arith.constant 0 : index
    %c0_2 = arith.constant 0 : index
    %3 = vector.load %arg4[%c0, %c0_1, %c0_2] : memref<1x16x256xbf16, #tpu.memory_space<vmem>>, vector<1x16x256xbf16>
    %4 = vector.shape_cast %3 : vector<1x16x256xbf16> to vector<16x256xbf16>
    %c0_3 = arith.constant 0 : index
    %c0_4 = arith.constant 0 : index
    %5 = vector.load %arg13[%c0_3, %c0_4] : memref<128x16xbf16, #tpu.memory_space<vmem>>, vector<128x16xbf16>
    %cst = arith.constant dense<0.000000e+00> : vector<128x256xf32>
    %6 = tpu.matmul %5, %4, %cst {dimension_numbers = #tpu.dot_dimension_numbers<[1], [0], [0], [1], [0, 0, 1, 1], [], []>} : vector<128x16xbf16>, vector<16x256xbf16>, vector<128x256xf32> -> vector<128x256xf32>
    %c0_5 = arith.constant 0 : index
    %c0_6 = arith.constant 0 : index
    %7 = vector.load %arg14[%c0_5, %c0_6] : memref<128x1xf32, #tpu.memory_space<vmem>>, vector<128x1xf32>
    %c0_7 = arith.constant 0 : index
    %c0_8 = arith.constant 0 : index
    %c0_9 = arith.constant 0 : index
    %8 = vector.load %arg5[%c0_7, %c0_8, %c0_9] : memref<1x1x256xf32, #tpu.memory_space<vmem>>, vector<1x1x256xf32>
    %9 = vector.shape_cast %8 : vector<1x1x256xf32> to vector<1x256xf32>
    %10 = vector.broadcast %7 : vector<128x1xf32> to vector<128x256xf32>
    %11 = vector.broadcast %9 : vector<1x256xf32> to vector<128x256xf32>
    %12 = arith.mulf %10, %11 : vector<128x256xf32>
    %13 = arith.subf %6, %12 : vector<128x256xf32>
    %cst_10 = arith.constant 0.353553385 : f32
    %14 = vector.broadcast %cst_10 : f32 to vector<128x256xf32>
    %15 = arith.mulf %14, %13 : vector<128x256xf32>
    %c0_11 = arith.constant 0 : index
    %c0_12 = arith.constant 0 : index
    %16 = vector.load %arg15[%c0_11, %c0_12] : memref<128x1xf32, #tpu.memory_space<vmem>>, vector<128x1xf32>
    %cst_13 = arith.constant dense<0xFF800000> : vector<128xf32>
    %17 = vector.multi_reduction <maximumf>, %15, %cst_13 [1] : vector<128x256xf32> to vector<128xf32>
    %18 = vector.shape_cast %17 : vector<128xf32> to vector<128x1xf32>
    %19 = arith.maximumf %16, %18 : vector<128x1xf32>
    %20 = arith.subf %16, %19 : vector<128x1xf32>
    %21 = math.exp %20 : vector<128x1xf32>
    %22 = vector.broadcast %19 : vector<128x1xf32> to vector<128x256xf32>
    %23 = arith.subf %15, %22 : vector<128x256xf32>
    %24 = math.exp %23 : vector<128x256xf32>
    %c0_14 = arith.constant 0 : index
    %c0_15 = arith.constant 0 : index
    %25 = vector.load %arg16[%c0_14, %c0_15] : memref<128x1xf32, #tpu.memory_space<vmem>>, vector<128x1xf32>
    %26 = arith.mulf %21, %25 : vector<128x1xf32>
    %cst_16 = arith.constant dense<0.000000e+00> : vector<128xf32>
    %27 = vector.multi_reduction <add>, %24, %cst_16 [1] : vector<128x256xf32> to vector<128xf32>
    %28 = vector.shape_cast %27 : vector<128xf32> to vector<128x1xf32>
    %29 = arith.addf %26, %28 : vector<128x1xf32>
    %c0_17 = arith.constant 0 : index
    %c0_18 = arith.constant 0 : index
    %30 = vector.load %arg16[%c0_17, %c0_18] : memref<128x1xf32, #tpu.memory_space<vmem>>, vector<128x1xf32>
    tpu.vector_store %arg16[%c0_17, %c0_18], %29 {strides = array<i32>} : memref<128x1xf32, #tpu.memory_space<vmem>>, vector<128x1xf32>,
    %c0_19 = arith.constant 0 : index
    %c0_20 = arith.constant 0 : index
    %31 = vector.load %arg19[%c0_19, %c0_20] : memref<128x16xf32, #tpu.memory_space<vmem>>, vector<128x16xf32>
    %32 = vector.broadcast %21 : vector<128x1xf32> to vector<128x16xf32>
    %33 = arith.mulf %32, %31 : vector<128x16xf32>
    %34 = arith.truncf %24 : vector<128x256xf32> to vector<128x256xbf16>
    %cst_21 = arith.constant dense<0.000000e+00> : vector<128x16xf32>
    %35 = tpu.matmul %34, %4, %cst_21 {dimension_numbers = #tpu.dot_dimension_numbers<[1], [1], [0], [0], [0, 0, 1, 0], [], []>} : vector<128x256xbf16>, vector<16x256xbf16>, vector<128x16xf32> -> vector<128x16xf32>
    %36 = arith.addf %33, %35 : vector<128x16xf32>
    %c0_22 = arith.constant 0 : index
    %c0_23 = arith.constant 0 : index
    %37 = vector.load %arg19[%c0_22, %c0_23] : memref<128x16xf32, #tpu.memory_space<vmem>>, vector<128x16xf32>
    tpu.vector_store %arg19[%c0_22, %c0_23], %36 {strides = array<i32>} : memref<128x16xf32, #tpu.memory_space<vmem>>, vector<128x16xf32>,
    %c0_24 = arith.constant 0 : index
    %c0_25 = arith.constant 0 : index
    %38 = vector.load %arg15[%c0_24, %c0_25] : memref<128x1xf32, #tpu.memory_space<vmem>>, vector<128x1xf32>
    tpu.vector_store %arg15[%c0_24, %c0_25], %19 {strides = array<i32>} : memref<128x1xf32, #tpu.memory_space<vmem>>, vector<128x1xf32>,
    %c0_26 = arith.constant 0 : index
    %c0_27 = arith.constant 0 : index
    %39 = vector.load %arg17[%c0_26, %c0_27] : memref<128x1xf32, #tpu.memory_space<vmem>>, vector<128x1xf32>
    %cst_28 = arith.constant dense<0xFF800000> : vector<128xf32>
    %40 = vector.multi_reduction <maximumf>, %6, %cst_28 [1] : vector<128x256xf32> to vector<128xf32>
    %41 = vector.shape_cast %40 : vector<128xf32> to vector<128x1xf32>
    %42 = arith.maximumf %39, %41 : vector<128x1xf32>
    %43 = arith.subf %39, %42 : vector<128x1xf32>
    %44 = math.exp %43 : vector<128x1xf32>
    %45 = vector.broadcast %42 : vector<128x1xf32> to vector<128x256xf32>
    %46 = arith.subf %6, %45 : vector<128x256xf32>
    %47 = math.exp %46 : vector<128x256xf32>
    %c0_29 = arith.constant 0 : index
    %c0_30 = arith.constant 0 : index
    %48 = vector.load %arg18[%c0_29, %c0_30] : memref<128x1xf32, #tpu.memory_space<vmem>>, vector<128x1xf32>
    %49 = arith.mulf %44, %48 : vector<128x1xf32>
    %cst_31 = arith.constant dense<0.000000e+00> : vector<128xf32>
    %50 = vector.multi_reduction <add>, %47, %cst_31 [1] : vector<128x256xf32> to vector<128xf32>
    %51 = vector.shape_cast %50 : vector<128xf32> to vector<128x1xf32>
    %52 = arith.addf %49, %51 : vector<128x1xf32>
    %c0_32 = arith.constant 0 : index
    %c0_33 = arith.constant 0 : index
    %53 = vector.load %arg18[%c0_32, %c0_33] : memref<128x1xf32, #tpu.memory_space<vmem>>, vector<128x1xf32>
    tpu.vector_store %arg18[%c0_32, %c0_33], %52 {strides = array<i32>} : memref<128x1xf32, #tpu.memory_space<vmem>>, vector<128x1xf32>,
    %c0_34 = arith.constant 0 : index
    %c0_35 = arith.constant 0 : index
    %54 = vector.load %arg20[%c0_34, %c0_35] : memref<128x16xf32, #tpu.memory_space<vmem>>, vector<128x16xf32>
    %55 = vector.broadcast %44 : vector<128x1xf32> to vector<128x16xf32>
    %56 = arith.mulf %55, %54 : vector<128x16xf32>
    %57 = arith.truncf %47 : vector<128x256xf32> to vector<128x256xbf16>
    %cst_36 = arith.constant dense<0.000000e+00> : vector<128x16xf32>
    %58 = tpu.matmul %57, %4, %cst_36 {dimension_numbers = #tpu.dot_dimension_numbers<[1], [1], [0], [0], [0, 0, 1, 0], [], []>} : vector<128x256xbf16>, vector<16x256xbf16>, vector<128x16xf32> -> vector<128x16xf32>
    %59 = arith.addf %56, %58 : vector<128x16xf32>
    %c0_37 = arith.constant 0 : index
    %c0_38 = arith.constant 0 : index
    %60 = vector.load %arg20[%c0_37, %c0_38] : memref<128x16xf32, #tpu.memory_space<vmem>>, vector<128x16xf32>
    tpu.vector_store %arg20[%c0_37, %c0_38], %59 {strides = array<i32>} : memref<128x16xf32, #tpu.memory_space<vmem>>, vector<128x16xf32>,
    %c0_39 = arith.constant 0 : index
    %c0_40 = arith.constant 0 : index
    %61 = vector.load %arg17[%c0_39, %c0_40] : memref<128x1xf32, #tpu.memory_space<vmem>>, vector<128x1xf32>
    tpu.vector_store %arg17[%c0_39, %c0_40], %42 {strides = array<i32>} : memref<128x1xf32, #tpu.memory_space<vmem>>, vector<128x1xf32>,
    %c0_i32_41 = arith.constant 0 : i32
    %62 = arith.cmpi eq, %arg2, %c0_i32_41 : i32
    %63 = arith.extui %62 : i1 to i32
    %c0_i32_42 = arith.constant 0 : i32
    %64 = arith.cmpi ne, %63, %c0_i32_42 : i32
    scf.if %64 {
      %c0_43 = arith.constant 0 : index
      %65 = memref.load %arg11[%c0_43] : memref<3xf32, #tpu.memory_space<smem>>
      %c1 = arith.constant 1 : index
      %66 = memref.load %arg11[%c1] : memref<3xf32, #tpu.memory_space<smem>>
      %c0_44 = arith.constant 0 : index
      %c0_45 = arith.constant 0 : index
      %67 = vector.load %arg16[%c0_44, %c0_45] : memref<128x1xf32, #tpu.memory_space<vmem>>, vector<128x1xf32>
      %cst_46 = arith.constant 1.000000e+00 : f32
      %68 = vector.broadcast %cst_46 : f32 to vector<128x1xf32>
      %69 = arith.divf %68, %67 : vector<128x1xf32>
      %c0_47 = arith.constant 0 : index
      %c0_48 = arith.constant 0 : index
      %70 = vector.load %arg18[%c0_47, %c0_48] : memref<128x1xf32, #tpu.memory_space<vmem>>, vector<128x1xf32>
      %cst_49 = arith.constant 1.000000e+00 : f32
      %71 = vector.broadcast %cst_49 : f32 to vector<128x1xf32>
      %72 = arith.divf %71, %70 : vector<128x1xf32>
      %c0_50 = arith.constant 0 : index
      %c0_51 = arith.constant 0 : index
      %73 = vector.load %arg19[%c0_50, %c0_51] : memref<128x16xf32, #tpu.memory_space<vmem>>, vector<128x16xf32>
      %74 = vector.broadcast %69 : vector<128x1xf32> to vector<128x16xf32>
      %75 = arith.mulf %73, %74 : vector<128x16xf32>
      %76 = vector.broadcast %66 : f32 to vector<128x16xf32>
      %77 = arith.mulf %76, %75 : vector<128x16xf32>
      %cst_52 = arith.constant 1.000000e+00 : f32
      %78 = arith.subf %cst_52, %66 : f32
      %c0_53 = arith.constant 0 : index
      %c0_54 = arith.constant 0 : index
      %79 = vector.load %arg20[%c0_53, %c0_54] : memref<128x16xf32, #tpu.memory_space<vmem>>, vector<128x16xf32>
      %80 = vector.broadcast %72 : vector<128x1xf32> to vector<128x16xf32>
      %81 = arith.mulf %79, %80 : vector<128x16xf32>
      %82 = vector.broadcast %78 : f32 to vector<128x16xf32>
      %83 = arith.mulf %82, %81 : vector<128x16xf32>
      %84 = arith.addf %77, %83 : vector<128x16xf32>
      %c0_55 = arith.constant 0 : index
      %c0_56 = arith.constant 0 : index
      %85 = vector.load %arg9[%c0_55, %c0_56] : memref<16x16xf32, #tpu.memory_space<vmem>>, vector<16x16xf32>
      %cst_57 = arith.constant dense<0.000000e+00> : vector<128x16xf32>
      %86 = tpu.matmul %84, %85, %cst_57 {dimension_numbers = #tpu.dot_dimension_numbers<[1], [0], [0], [1], [0, 0, 1, 1], [], []>} : vector<128x16xf32>, vector<16x16xf32>, vector<128x16xf32> -> vector<128x16xf32>
      %c0_58 = arith.constant 0 : index
      %c0_59 = arith.constant 0 : index
      %87 = vector.load %arg10[%c0_58, %c0_59] : memref<1x16xf32, #tpu.memory_space<vmem>>, vector<1x16xf32>
      %88 = vector.broadcast %87 : vector<1x16xf32> to vector<128x16xf32>
      %89 = arith.addf %86, %88 : vector<128x16xf32>
      %90 = tpu.transpose %89, [1, 0] : vector<128x16xf32> -> vector<16x128xf32>
      %91 = vector.broadcast %65 : f32 to vector<16x128xf32>
      %92 = arith.mulf %91, %90 : vector<16x128xf32>
      %c0_60 = arith.constant 0 : index
      %c0_61 = arith.constant 0 : index
      %c0_62 = arith.constant 0 : index
      %93 = vector.load %arg3[%c0_60, %c0_61, %c0_62] : memref<1x16x128xf32, #tpu.memory_space<vmem>>, vector<1x16x128xf32>
      %94 = vector.shape_cast %93 : vector<1x16x128xf32> to vector<16x128xf32>
      %95 = arith.addf %92, %94 : vector<16x128xf32>
      %c0_63 = arith.constant 0 : index
      %c0_64 = arith.constant 0 : index
      %c0_65 = arith.constant 0 : index
      %96 = vector.load %arg12[%c0_63, %c0_64, %c0_65] : memref<1x16x128xf32, #tpu.memory_space<vmem>>, vector<1x16x128xf32>
      %97 = vector.shape_cast %96 : vector<1x16x128xf32> to vector<16x128xf32>
      %98 = vector.shape_cast %95 : vector<16x128xf32> to vector<1x16x128xf32>
      tpu.vector_store %arg12[%c0_63, %c0_64, %c0_65], %98 {strides = array<i32>} : memref<1x16x128xf32, #tpu.memory_space<vmem>>, vector<1x16x128xf32>,
    } else {
    }
    return
  }
  func.func @transform_0(%arg0: i32, %arg1: i32, %arg2: i32) -> (i32, i32, i32) {
    %c0_i32 = arith.constant 0 : i32
    %c0_i32_0 = arith.constant 0 : i32
    return %arg0, %c0_i32, %arg1 : i32, i32, i32
  }
  func.func @transform_1(%arg0: i32, %arg1: i32, %arg2: i32) -> (i32, i32, i32) {
    %c0_i32 = arith.constant 0 : i32
    %c0_i32_0 = arith.constant 0 : i32
    return %arg0, %c0_i32, %arg2 : i32, i32, i32
  }
  func.func @transform_2(%arg0: i32, %arg1: i32, %arg2: i32) -> (i32, i32, i32) {
    %c0_i32 = arith.constant 0 : i32
    %c0_i32_0 = arith.constant 0 : i32
    return %arg0, %c0_i32, %arg2 : i32, i32, i32
  }
  func.func @transform_3(%arg0: i32, %arg1: i32, %arg2: i32) -> (i32, i32) {
    %c0_i32 = arith.constant 0 : i32
    %c0_i32_0 = arith.constant 0 : i32
    %c0_i32_1 = arith.constant 0 : i32
    return %c0_i32, %c0_i32_0 : i32, i32
  }
  func.func @transform_4(%arg0: i32, %arg1: i32, %arg2: i32) -> (i32, i32) {
    %c0_i32 = arith.constant 0 : i32
    %c0_i32_0 = arith.constant 0 : i32
    %c0_i32_1 = arith.constant 0 : i32
    return %c0_i32, %c0_i32_0 : i32, i32
  }
  func.func @transform_5(%arg0: i32, %arg1: i32, %arg2: i32) -> (i32, i32) {
    %c0_i32 = arith.constant 0 : i32
    %c0_i32_0 = arith.constant 0 : i32
    %c0_i32_1 = arith.constant 0 : i32
    return %c0_i32, %c0_i32_0 : i32, i32
  }
  func.func @transform_6(%arg0: i32, %arg1: i32, %arg2: i32) -> (i32, i32) {
    %c0_i32 = arith.constant 0 : i32
    %c0_i32_0 = arith.constant 0 : i32
    %c0_i32_1 = arith.constant 0 : i32
    return %c0_i32, %c0_i32_0 : i32, i32
  }
  func.func @transform_7(%arg0: i32, %arg1: i32, %arg2: i32) -> (i32, i32) {
    %c0_i32 = arith.constant 0 : i32
    %c0_i32_0 = arith.constant 0 : i32
    %c0_i32_1 = arith.constant 0 : i32
    return %c0_i32, %c0_i32_0 : i32, i32
  }
  func.func @transform_8(%arg0: i32, %arg1: i32, %arg2: i32) -> i32 {
    %c0_i32 = arith.constant 0 : i32
    %c0_i32_0 = arith.constant 0 : i32
    return %c0_i32 : i32
  }
  func.func @transform_9(%arg0: i32, %arg1: i32, %arg2: i32) -> (i32, i32, i32) {
    %c0_i32 = arith.constant 0 : i32
    %c0_i32_0 = arith.constant 0 : i32
    return %arg0, %c0_i32, %arg1 : i32, i32, i32
  }
}

</mosaic_0001>

<llo_original>
// kernel: tpu_custom_call.1
$region0: #{tpu_custom_call.1}
  #allocation0 [shape = 'u32[]', space=smem, size = 0x4, offset = 0x4, fixed_abs, tag = 'smem constant byte address 0x4 - core index']
  #allocation1 [shape = 'u32[72,128]{1,0:T(1,128)}', space=vmem, size = 0x9000, scoped, tag = 'internal scratch']
  #allocation2 [shape = 'bf16[128,16]{1,0:T(8,128)(2,1)}', space=vmem, size = 0x8000, scoped, tag = 'scratch operand']
  #allocation3 [shape = 'f32[128,1]{1,0:T(8,128)}', space=vmem, size = 0x10000, scoped, tag = 'scratch operand']
  #allocation4 [shape = 'f32[128,1]{1,0:T(8,128)}', space=vmem, size = 0x10000, scoped, tag = 'scratch operand']
  #allocation5 [shape = 'f32[128,1]{1,0:T(8,128)}', space=vmem, size = 0x10000, scoped, tag = 'scratch operand']
  #allocation6 [shape = 'f32[128,1]{1,0:T(8,128)}', space=vmem, size = 0x10000, scoped, tag = 'scratch operand']
  #allocation7 [shape = 'f32[128,1]{1,0:T(8,128)}', space=vmem, size = 0x10000, scoped, tag = 'scratch operand']
  #allocation8 [shape = 'f32[128,16]{1,0:T(8,128)}', space=vmem, size = 0x10000, scoped, tag = 'scratch operand']
  #allocation9 [shape = 'f32[128,16]{1,0:T(8,128)}', space=vmem, size = 0x10000, scoped, tag = 'scratch operand']
  %s0 = inlined_call_operand.hbm [shape: f32[2,16,256], index: 0, kind: input, shape index: {}]
  %s1 = inlined_call_operand.hbm [shape: bf16[2,16,256], index: 1, kind: input, shape index: {}]
  %s2 = inlined_call_operand.hbm [shape: f32[2,1,256], index: 2, kind: input, shape index: {}]
  %s3 = inlined_call_operand.hbm [shape: bf16[16,16], index: 3, kind: input, shape index: {}]
  %s4 = inlined_call_operand.vmem [shape: f32[1,16], index: 4, kind: input, shape index: {}]
  %s5 = inlined_call_operand.vmem [shape: f32[1,16], index: 5, kind: input, shape index: {}]
  %s6 = inlined_call_operand.hbm [shape: f32[16,16], index: 6, kind: input, shape index: {}]
  %s7 = inlined_call_operand.vmem [shape: f32[1,16], index: 7, kind: input, shape index: {}]
  %s8 = inlined_call_operand.vmem [shape: f32[3], index: 8, kind: input, shape index: {}]
  %s9 = inlined_call_operand.hbm [shape: f32[2,16,256], index: 9, kind: output, shape index: {}]
  %s10 = sld [smem:[#allocation0]]
  $region101: #{tpu_custom_call.1} parent=0
    _
  %s12 = ssub.s32 1, %s10
  %s13 = scalar_select 0, %s12, %s10
  $region1: #{tpu_custom_call.1} parent=0
    #allocation10 [shape = 'u8[16384]{0}', space=vmem, size = 0x4000, scoped, tag = 'input window, operand 0']
    #allocation11 [shape = 's32[2]{0}', space=sflag, size = 0x8, scoped, tag = 'scoped memory for tpu_custom_call.1']
    #allocation12 [shape = 's32[2]{0}', space=sflag, size = 0x8, scoped, tag = 'scoped memory for tpu_custom_call.1']
    #allocation13 [shape = 's32[2]{0}', space=sflag, size = 0x8, scoped, tag = 'scoped memory for tpu_custom_call.1']
    #allocation14 [shape = 'u8[16384]{0}', space=vmem, size = 0x4000, scoped, tag = 'input window, operand 1']
    #allocation15 [shape = 's32[2]{0}', space=sflag, size = 0x8, scoped, tag = 'scoped memory for tpu_custom_call.1']
    #allocation16 [shape = 'u8[2048]{0}', space=vmem, size = 0x800, scoped, tag = 'input window, operand 2']
    #allocation17 [shape = 'u8[4096]{0}', space=vmem, size = 0x1000, scoped, tag = 'input window, operand 3, single buffered']
    #allocation18 [shape = 's32[1]{0}', space=sflag, size = 0x4, scoped, tag = 'scoped memory for tpu_custom_call.1']
    #allocation19 [shape = 'u8[8192]{0}', space=vmem, size = 0x2000, scoped, tag = 'input window, operand 6, single buffered']
    #allocation20 [shape = 'u8[512]{0}', space=smem, size = 0x200, scoped, tag = 'input window, operand 8, single buffered']
    #allocation21 [shape = 'u8[16384]{0}', space=vmem, size = 0x4000, scoped, tag = 'output window, operand 0']
    %14 = vsyncpa [#allocation11], 0
    %s15 = scalar_lea.sflag [#allocation11], 1
    %16 = vsyncpa %s15, 0
    %17 = vsyncpa [#allocation15], 0
    %s18 = scalar_lea.sflag [#allocation15], 1
    %19 = vsyncpa %s18, 0
    %20 = vsyncpa [#allocation18], 0
    %21 = vsyncpa [#allocation13], 0
    %22 = vsyncpa [#allocation12], 0
    %s23 = scalar_lea.sflag [#allocation12], 1
    %24 = vsyncpa %s23, 0
    loop: start=0, step=1, limit=6
    $region2: #{tpu_custom_call.1} parent=1 // loop_pre_header
      _
    $region3: #{tpu_custom_call.1} parent=1 // loop_header
      %s26 = sphi 0, %s30
      %p27 = scmp.ge.s32.totalorder %s26, 6
      %s33 = sphi 0, %s52
      %s34 = sphi 0, %s48
      %s35 = sphi 0, %s44
      %s36 = sphi 0, %s33
      %s37 = sphi 0, %s34
      %s38 = sphi 0, %s35
      %s39 = sphi 0, %s36
      %s40 = sphi 0, %s37
      %s41 = sphi 0, %s38
      %s57 = sphi 0, %s59
      %s60 = sphi 0, %s57
      %s61 = sphi 0, %s60
      %s77 = sphi 0, %s61
      %s85 = sphi 0, %s87
      %s88 = sphi 0, %s85
      %s89 = sphi 0, %s88
      %s105 = sphi 0, %s89
      %s113 = sphi 0, %s115
      %s116 = sphi 0, %s113
      %s117 = sphi 0, %s116
      %s133 = sphi 0, %s117
      %s137 = sphi 0, %s137
      %s139 = sphi 0, %s137
      %s140 = sphi 0, %s139
      %s154 = sphi 0, %s140
      %s158 = sphi 0, %s158
      %s160 = sphi 0, %s158
      %s161 = sphi 0, %s160
      %s175 = sphi 0, %s161
      %s179 = sphi 0, %s179
      %s181 = sphi 0, %s179
      %s182 = sphi 0, %s181
      %s196 = sphi 0, %s182
      %s200 = sphi 0, %s200
      %s202 = sphi 0, %s200
      %s203 = sphi 0, %s202
      %s217 = sphi 0, %s203
      %s221 = sphi 0, %s221
      %s223 = sphi 0, %s221
      %s224 = sphi 0, %s223
      %s238 = sphi 0, %s224
      %s242 = sphi 0, %s242
      %s244 = sphi 0, %s242
      %s245 = sphi 0, %s244
      %s259 = sphi 0, %s245
      %s267 = sphi 0, %s269
      %s270 = sphi 0, %s267
      %s271 = sphi 0, %s270
      %s287 = sphi 0, %s271
    $region4: #{tpu_custom_call.1} parent=1 // loop_header_branch
      %29 = sbr.rel (%p27) target = $region8
    $region5: #{tpu_custom_call.1} parent=1 // loop_body
      %s31 = ssub.s32 %s26, 1
      %s32 = ssub.s32 %s26, 2
      %s42 = sadd.s32 1, %s35
      %p43 = scmp.ge.s32.totalorder %s42, 1
      %s44 = scalar_select %p43, 0, %s42
      %s45 = sadd.s32 1, %s34
      %s46 = scalar_select %p43, %s45, %s34
      %p47 = scmp.ge.s32.totalorder %s46, 2
      %s48 = scalar_select %p47, 0, %s46
      %s49 = sadd.s32 1, %s33
      %s50 = scalar_select %p47, %s49, %s33
      %p51 = scmp.ge.s32.totalorder %s50, 2
      %s52 = scalar_select %p51, 0, %s50
      %s53 = ssub.s32 %s33, %s52
      %s54 = ssub.s32 %s34, %s48
      %s55 = sor.u32 %s53, %s54
      %p56 = scmp.eq.s32.totalorder %s55, 0
      %s58 = sadd.s32 %s57, 1
      %s59 = scalar_select %p56, %s57, %s58
      %p62 = pneg %p56
      %p63 = scmp.eq.s32.totalorder %s26, 3
      %p64 = por %p62, %p63
      %p65 = scmp.ne.s32.totalorder %s57, %s60
      %p66 = scmp.eq.s32.totalorder %s26, 0
      %p67 = por %p65, %p66
      %p68 = scmp.ne.s32.totalorder %s57, %s60
      %p69 = scmp.eq.s32.totalorder %s31, 3
      %p70 = por %p68, %p69
      %p71 = scmp.ne.s32.totalorder %s60, %s61
      %p72 = scmp.eq.s32.totalorder %s31, 0
      %p73 = por %p71, %p72
      %p74 = scmp.ne.s32.totalorder %s60, %s61
      %p75 = scmp.eq.s32.totalorder %s32, 3
      %p76 = por %p74, %p75
      %p78 = scmp.ne.s32.totalorder %s61, %s77
      %p79 = scmp.eq.s32.totalorder %s32, 0
      %p80 = por %p78, %p79
      %s81 = ssub.s32 %s33, %s52
      %s82 = ssub.s32 %s35, %s44
      %s83 = sor.u32 %s81, %s82
      %p84 = scmp.eq.s32.totalorder %s83, 0
      %s86 = sadd.s32 %s85, 1
      %s87 = scalar_select %p84, %s85, %s86
      %p90 = pneg %p84
      %p91 = scmp.eq.s32.totalorder %s26, 3
      %p92 = por %p90, %p91
      %p93 = scmp.ne.s32.totalorder %s85, %s88
      %p94 = scmp.eq.s32.totalorder %s26, 0
      %p95 = por %p93, %p94
      %p96 = scmp.ne.s32.totalorder %s85, %s88
      %p97 = scmp.eq.s32.totalorder %s31, 3
      %p98 = por %p96, %p97
      %p99 = scmp.ne.s32.totalorder %s88, %s89
      %p100 = scmp.eq.s32.totalorder %s31, 0
      %p101 = por %p99, %p100
      %p102 = scmp.ne.s32.totalorder %s88, %s89
      %p103 = scmp.eq.s32.totalorder %s32, 3
      %p104 = por %p102, %p103
      %p106 = scmp.ne.s32.totalorder %s89, %s105
      %p107 = scmp.eq.s32.totalorder %s32, 0
      %p108 = por %p106, %p107
      %s109 = ssub.s32 %s33, %s52
      %s110 = ssub.s32 %s35, %s44
      %s111 = sor.u32 %s109, %s110
      %p112 = scmp.eq.s32.totalorder %s111, 0
      %s114 = sadd.s32 %s113, 1
      %s115 = scalar_select %p112, %s113, %s114
      %p118 = pneg %p112
      %p119 = scmp.eq.s32.totalorder %s26, 3
      %p120 = por %p118, %p119
      %p121 = scmp.ne.s32.totalorder %s113, %s116
      %p122 = scmp.eq.s32.totalorder %s26, 0
      %p123 = por %p121, %p122
      %p124 = scmp.ne.s32.totalorder %s113, %s116
      %p125 = scmp.eq.s32.totalorder %s31, 3
      %p126 = por %p124, %p125
      %p127 = scmp.ne.s32.totalorder %s116, %s117
      %p128 = scmp.eq.s32.totalorder %s31, 0
      %p129 = por %p127, %p128
      %p130 = scmp.ne.s32.totalorder %s116, %s117
      %p131 = scmp.eq.s32.totalorder %s32, 3
      %p132 = por %p130, %p131
      %p134 = scmp.ne.s32.totalorder %s117, %s133
      %p135 = scmp.eq.s32.totalorder %s32, 0
      %p136 = por %p134, %p135
      %s138 = sadd.s32 %s137, 1
      %p141 = scmp.eq.s32.totalorder %s26, 3
      %p142 = scmp.ne.s32.totalorder %s137, %s139
      %p143 = scmp.eq.s32.totalorder %s26, 0
      %p144 = por %p142, %p143
      %p145 = scmp.ne.s32.totalorder %s137, %s139
      %p146 = scmp.eq.s32.totalorder %s31, 3
      %p147 = por %p145, %p146
      %p148 = scmp.ne.s32.totalorder %s139, %s140
      %p149 = scmp.eq.s32.totalorder %s31, 0
      %p150 = por %p148, %p149
      %p151 = scmp.ne.s32.totalorder %s139, %s140
      %p152 = scmp.eq.s32.totalorder %s32, 3
      %p153 = por %p151, %p152
      %p155 = scmp.ne.s32.totalorder %s140, %s154
      %p156 = scmp.eq.s32.totalorder %s32, 0
      %p157 = por %p155, %p156
      %s159 = sadd.s32 %s158, 1
      %p162 = scmp.eq.s32.totalorder %s26, 3
      %p163 = scmp.ne.s32.totalorder %s158, %s160
      %p164 = scmp.eq.s32.totalorder %s26, 0
      %p165 = por %p163, %p164
      %p166 = scmp.ne.s32.totalorder %s158, %s160
      %p167 = scmp.eq.s32.totalorder %s31, 3
      %p168 = por %p166, %p167
      %p169 = scmp.ne.s32.totalorder %s160, %s161
      %p170 = scmp.eq.s32.totalorder %s31, 0
      %p171 = por %p169, %p170
      %p172 = scmp.ne.s32.totalorder %s160, %s161
      %p173 = scmp.eq.s32.totalorder %s32, 3
      %p174 = por %p172, %p173
      %p176 = scmp.ne.s32.totalorder %s161, %s175
      %p177 = scmp.eq.s32.totalorder %s32, 0
      %p178 = por %p176, %p177
      %s180 = sadd.s32 %s179, 1
      %p183 = scmp.eq.s32.totalorder %s26, 3
      %p184 = scmp.ne.s32.totalorder %s179, %s181
      %p185 = scmp.eq.s32.totalorder %s26, 0
      %p186 = por %p184, %p185
      %p187 = scmp.ne.s32.totalorder %s179, %s181
      %p188 = scmp.eq.s32.totalorder %s31, 3
      %p189 = por %p187, %p188
      %p190 = scmp.ne.s32.totalorder %s181, %s182
      %p191 = scmp.eq.s32.totalorder %s31, 0
      %p192 = por %p190, %p191
      %p193 = scmp.ne.s32.totalorder %s181, %s182
      %p194 = scmp.eq.s32.totalorder %s32, 3
      %p195 = por %p193, %p194
      %p197 = scmp.ne.s32.totalorder %s182, %s196
      %p198 = scmp.eq.s32.totalorder %s32, 0
      %p199 = por %p197, %p198
      %s201 = sadd.s32 %s200, 1
      %p204 = scmp.eq.s32.totalorder %s26, 3
      %p205 = scmp.ne.s32.totalorder %s200, %s202
      %p206 = scmp.eq.s32.totalorder %s26, 0
      %p207 = por %p205, %p206
      %p208 = scmp.ne.s32.totalorder %s200, %s202
      %p209 = scmp.eq.s32.totalorder %s31, 3
      %p210 = por %p208, %p209
      %p211 = scmp.ne.s32.totalorder %s202, %s203
      %p212 = scmp.eq.s32.totalorder %s31, 0
      %p213 = por %p211, %p212
      %p214 = scmp.ne.s32.totalorder %s202, %s203
      %p215 = scmp.eq.s32.totalorder %s32, 3
      %p216 = por %p214, %p215
      %p218 = scmp.ne.s32.totalorder %s203, %s217
      %p219 = scmp.eq.s32.totalorder %s32, 0
      %p220 = por %p218, %p219
      %s222 = sadd.s32 %s221, 1
      %p225 = scmp.eq.s32.totalorder %s26, 3
      %p226 = scmp.ne.s32.totalorder %s221, %s223
      %p227 = scmp.eq.s32.totalorder %s26, 0
      %p228 = por %p226, %p227
      %p229 = scmp.ne.s32.totalorder %s221, %s223
      %p230 = scmp.eq.s32.totalorder %s31, 3
      %p231 = por %p229, %p230
      %p232 = scmp.ne.s32.totalorder %s223, %s224
      %p233 = scmp.eq.s32.totalorder %s31, 0
      %p234 = por %p232, %p233
      %p235 = scmp.ne.s32.totalorder %s223, %s224
      %p236 = scmp.eq.s32.totalorder %s32, 3
      %p237 = por %p235, %p236
      %p239 = scmp.ne.s32.totalorder %s224, %s238
      %p240 = scmp.eq.s32.totalorder %s32, 0
      %p241 = por %p239, %p240
      %s243 = sadd.s32 %s242, 1
      %p246 = scmp.eq.s32.totalorder %s26, 3
      %p247 = scmp.ne.s32.totalorder %s242, %s244
      %p248 = scmp.eq.s32.totalorder %s26, 0
      %p249 = por %p247, %p248
      %p250 = scmp.ne.s32.totalorder %s242, %s244
      %p251 = scmp.eq.s32.totalorder %s31, 3
      %p252 = por %p250, %p251
      %p253 = scmp.ne.s32.totalorder %s244, %s245
      %p254 = scmp.eq.s32.totalorder %s31, 0
      %p255 = por %p253, %p254
      %p256 = scmp.ne.s32.totalorder %s244, %s245
      %p257 = scmp.eq.s32.totalorder %s32, 3
      %p258 = por %p256, %p257
      %p260 = scmp.ne.s32.totalorder %s245, %s259
      %p261 = scmp.eq.s32.totalorder %s32, 0
      %p262 = por %p260, %p261
      %s263 = ssub.s32 %s33, %s52
      %s264 = ssub.s32 %s34, %s48
      %s265 = sor.u32 %s263, %s264
      %p266 = scmp.eq.s32.totalorder %s265, 0
      %s268 = sadd.s32 %s267, 1
      %s269 = scalar_select %p266, %s267, %s268
      %p272 = pneg %p266
      %p273 = scmp.eq.s32.totalorder %s26, 3
      %p274 = por %p272, %p273
      %p275 = scmp.ne.s32.totalorder %s267, %s270
      %p276 = scmp.eq.s32.totalorder %s26, 0
      %p277 = por %p275, %p276
      %p278 = scmp.ne.s32.totalorder %s267, %s270
      %p279 = scmp.eq.s32.totalorder %s31, 3
      %p280 = por %p278, %p279
      %p281 = scmp.ne.s32.totalorder %s270, %s271
      %p282 = scmp.eq.s32.totalorder %s31, 0
      %p283 = por %p281, %p282
      %p284 = scmp.ne.s32.totalorder %s270, %s271
      %p285 = scmp.eq.s32.totalorder %s32, 3
      %p286 = por %p284, %p285
      %p288 = scmp.ne.s32.totalorder %s271, %s287
      %p289 = scmp.eq.s32.totalorder %s32, 0
      %p290 = por %p288, %p289
      %p291 = scmp.le.s32.totalorder 1, %s26
      %p292 = scmp.lt.s32.totalorder %s26, 5
      %p293 = pnand %p291, %p292
      %p294 = pneg %p293
      // Predicated region
      $region9: #{tpu_custom_call.1} parent=5 // pred_check
        _
      $region10: #{tpu_custom_call.1} parent=5 // pred_check_branch
        %296 = sbr.rel (%p293) target = $region12
      $region11: #{tpu_custom_call.1} parent=5 // pred_region
        %s297 = ssub.s32 %s26, 1
        // Predicated region
        $region13: #{tpu_custom_call.1} parent=11 // pred_check
          %p298 = pneg %p150
        $region14: #{tpu_custom_call.1} parent=11 // pred_check_branch
          %300 = sbr.rel (%p298) target = $region16
        $region15: #{tpu_custom_call.1} parent=11 // pred_region
          %302 = vsyncadd [#allocation18], 0
          %s303 = sshll.u32 %s3, 4
          %s304 = int_to_ptr.hbm [resolvable:$true] %s303
          %s305 = sshll.u32 [#allocation17], 4
          %s306 = int_to_ptr.vmem [resolvable:$true] %s305
          %311 = dma.hbm_to_vmem [thread:$0]  %s304, 128, %s306, [#allocation18], 64, 64, 4
        $region16: #{tpu_custom_call.1} parent=11 // pred_fallthru
          _
        // Predicated region
        $region17: #{tpu_custom_call.1} parent=11 // pred_check
          %p312 = pneg %p171
        $region18: #{tpu_custom_call.1} parent=11 // pred_check_branch
          %314 = sbr.rel (%p312) target = $region20
        $region19: #{tpu_custom_call.1} parent=11 // pred_region
          _
        $region20: #{tpu_custom_call.1} parent=11 // pred_fallthru
          _
        // Predicated region
        $region21: #{tpu_custom_call.1} parent=11 // pred_check
          %p315 = pneg %p192
        $region22: #{tpu_custom_call.1} parent=11 // pred_check_branch
          %317 = sbr.rel (%p315) target = $region24
        $region23: #{tpu_custom_call.1} parent=11 // pred_region
          _
        $region24: #{tpu_custom_call.1} parent=11 // pred_fallthru
          _
        // Predicated region
        $region25: #{tpu_custom_call.1} parent=11 // pred_check
          %p318 = pneg %p213
        $region26: #{tpu_custom_call.1} parent=11 // pred_check_branch
          %320 = sbr.rel (%p318) target = $region28
        $region27: #{tpu_custom_call.1} parent=11 // pred_region
          %322 = vsyncadd [#allocation18], 0
          %s323 = sshll.u32 %s6, 4
          %s324 = int_to_ptr.hbm [resolvable:$true] %s323
          %s325 = sshll.u32 [#allocation19], 4
          %s326 = int_to_ptr.vmem [resolvable:$true] %s325
          %331 = dma.hbm_to_vmem [thread:$0]  %s324, 256, %s326, [#allocation18], 128, 128, 8
        $region28: #{tpu_custom_call.1} parent=11 // pred_fallthru
          _
        // Predicated region
        $region29: #{tpu_custom_call.1} parent=11 // pred_check
          %p332 = pneg %p234
        $region30: #{tpu_custom_call.1} parent=11 // pred_check_branch
          %334 = sbr.rel (%p332) target = $region32
        $region31: #{tpu_custom_call.1} parent=11 // pred_region
          _
        $region32: #{tpu_custom_call.1} parent=11 // pred_fallthru
          _
        // Predicated region
        $region33: #{tpu_custom_call.1} parent=11 // pred_check
          %p335 = pneg %p255
        $region34: #{tpu_custom_call.1} parent=11 // pred_check_branch
          %337 = sbr.rel (%p335) target = $region36
        $region35: #{tpu_custom_call.1} parent=11 // pred_region
          %339 = vsyncadd [#allocation13], 0
          %s341 = sshll.u32 %s8, 4
          %s342 = int_to_ptr.vmem [resolvable:$true] %s341
          %344 = dma.vmem_to_smem %s342, 16, [#allocation20], [#allocation13]
        $region36: #{tpu_custom_call.1} parent=11 // pred_fallthru
          _
      $region12: #{tpu_custom_call.1} parent=5 // pred_fallthru
        _
      %p345 = scmp.lt.s32.totalorder %s26, 4
      // Predicated region
      $region37: #{tpu_custom_call.1} parent=5 // pred_check
        %p346 = pneg %p345
      $region38: #{tpu_custom_call.1} parent=5 // pred_check_branch
        %348 = sbr.rel (%p346) target = $region40
      $region39: #{tpu_custom_call.1} parent=5 // pred_region
        // Predicated region
        $region41: #{tpu_custom_call.1} parent=39 // pred_check
          %p349 = pneg %p67
        $region42: #{tpu_custom_call.1} parent=39 // pred_check_branch
          %351 = sbr.rel (%p349) target = $region44
        $region43: #{tpu_custom_call.1} parent=39 // pred_region
          %s352 = sand.u32 %s57, 1
          %s353 = scalar_lea.sflag [#allocation11], %s352
          %s354 = sand.u32 %s57, 1
          %s355 = smul.addr %s354, 16
          %s356 = scalar_lea.vmem [#allocation10], %s355
          %358 = vsyncadd %s353, 0
          %s359 = smul.addr %s33, 4
          %s360 = sadd.s32 %s34, %s359
          %s361 = smul.addr %s360, 8
          %s362 = scalar_lea.hbm %s0, %s361
          %s363 = sshll.u32 %s362, 4
          %s364 = int_to_ptr.hbm [resolvable:$true] %s363
          %s365 = sshll.u32 %s356, 4
          %s366 = int_to_ptr.vmem [resolvable:$true] %s365
          %371 = dma.hbm_to_vmem [thread:$0]  %s364, 256, %s366, %s353, 256, 128, 8
        $region44: #{tpu_custom_call.1} parent=39 // pred_fallthru
          _
        // Predicated region
        $region45: #{tpu_custom_call.1} parent=39 // pred_check
          %p372 = pneg %p95
        $region46: #{tpu_custom_call.1} parent=39 // pred_check_branch
          %374 = sbr.rel (%p372) target = $region48
        $region47: #{tpu_custom_call.1} parent=39 // pred_region
          %s375 = sand.u32 %s26, 1
          %s376 = scalar_lea.sflag [#allocation15], %s375
          %s377 = sand.u32 %s85, 1
          %s378 = smul.addr %s377, 16
          %s379 = scalar_lea.vmem [#allocation14], %s378
          %s380 = smul.u32 2, %s35
          %382 = vsyncadd %s376, 0
          %s383 = smul.addr %s33, 4
          %s384 = sadd.s32 %s380, %s383
          %s385 = smul.addr %s384, 4
          %s386 = scalar_lea.hbm %s1, %s385
          %s387 = sshll.u32 %s386, 4
          %s388 = int_to_ptr.hbm [resolvable:$true] %s387
          %s389 = sshll.u32 %s379, 4
          %s390 = int_to_ptr.vmem [resolvable:$true] %s389
          %395 = dma.hbm_to_vmem [thread:$0]  %s388, 256, %s390, %s376, 128, 128, 8
        $region48: #{tpu_custom_call.1} parent=39 // pred_fallthru
          _
        // Predicated region
        $region49: #{tpu_custom_call.1} parent=39 // pred_check
          %p396 = pneg %p123
        $region50: #{tpu_custom_call.1} parent=39 // pred_check_branch
          %398 = sbr.rel (%p396) target = $region52
        $region51: #{tpu_custom_call.1} parent=39 // pred_region
          %s399 = sand.u32 %s26, 1
          %s400 = scalar_lea.sflag [#allocation15], %s399
          %s401 = sand.u32 %s113, 1
          %s402 = smul.addr %s401, 2
          %s403 = scalar_lea.vmem [#allocation16], %s402
          %s404 = smul.u32 2, %s35
          %406 = vsyncadd %s400, 0
          %s407 = smul.addr %s33, 2
          %s408 = sadd.s32 %s404, %s407
          %s409 = scalar_lea.hbm %s2, %s408
          %s411 = sshll.u32 %s409, 4
          %s412 = int_to_ptr.hbm [resolvable:$true] %s411
          %s413 = sshll.u32 %s403, 4
          %s414 = int_to_ptr.vmem [resolvable:$true] %s413
          %416 = dma.hbm_to_vmem [thread:$0]  %s412, 32, %s414, %s400
        $region52: #{tpu_custom_call.1} parent=39 // pred_fallthru
          _
      $region40: #{tpu_custom_call.1} parent=5 // pred_fallthru
        _
      %p417 = scmp.le.s32.totalorder 1, %s26
      %p418 = scmp.lt.s32.totalorder %s26, 5
      %p419 = pnand %p417, %p418
      %p420 = pneg %p419
      // Predicated region
      $region53: #{tpu_custom_call.1} parent=5 // pred_check
        _
      $region54: #{tpu_custom_call.1} parent=5 // pred_check_branch
        %422 = sbr.rel (%p419) target = $region56
      $region55: #{tpu_custom_call.1} parent=5 // pred_region
        %s423 = ssub.s32 %s26, 1
        %s424 = sand.u32 %s60, 1
        %s425 = scalar_lea.sflag [#allocation11], %s424
        %s426 = sand.u32 %s60, 1
        %s427 = smul.addr %s426, 16
        %s428 = scalar_lea.vmem [#allocation10], %s427
        // Predicated region
        $region57: #{tpu_custom_call.1} parent=55 // pred_check
          %p429 = pneg %p73
        $region58: #{tpu_custom_call.1} parent=55 // pred_check_branch
          %431 = sbr.rel (%p429) target = $region60
        $region59: #{tpu_custom_call.1} parent=55 // pred_region
          %433 = dma.done %s425, 256
        $region60: #{tpu_custom_call.1} parent=55 // pred_fallthru
          _
        %s434 = sand.u32 %s31, 1
        %s435 = scalar_lea.sflag [#allocation15], %s434
        %s436 = sand.u32 %s88, 1
        %s437 = smul.addr %s436, 16
        %s438 = scalar_lea.vmem [#allocation14], %s437
        // Predicated region
        $region61: #{tpu_custom_call.1} parent=55 // pred_check
          %p439 = pneg %p101
        $region62: #{tpu_custom_call.1} parent=55 // pred_check_branch
          %441 = sbr.rel (%p439) target = $region64
        $region63: #{tpu_custom_call.1} parent=55 // pred_region
          %443 = dma.done %s435, 256
        $region64: #{tpu_custom_call.1} parent=55 // pred_fallthru
          _
        %s444 = sand.u32 %s31, 1
        %s445 = scalar_lea.sflag [#allocation15], %s444
        %s446 = sand.u32 %s116, 1
        %s447 = smul.addr %s446, 2
        %s448 = scalar_lea.vmem [#allocation16], %s447
        // Predicated region
        $region65: #{tpu_custom_call.1} parent=55 // pred_check
          %p449 = pneg %p129
        $region66: #{tpu_custom_call.1} parent=55 // pred_check_branch
          %451 = sbr.rel (%p449) target = $region68
        $region67: #{tpu_custom_call.1} parent=55 // pred_region
          %453 = dma.done %s445, 32
        $region68: #{tpu_custom_call.1} parent=55 // pred_fallthru
          _
        // Predicated region
        $region69: #{tpu_custom_call.1} parent=55 // pred_check
          %p454 = pneg %p150
        $region70: #{tpu_custom_call.1} parent=55 // pred_check_branch
          %456 = sbr.rel (%p454) target = $region72
        $region71: #{tpu_custom_call.1} parent=55 // pred_region
          %458 = dma.done [#allocation18], 128
        $region72: #{tpu_custom_call.1} parent=55 // pred_fallthru
          _
        // Predicated region
        $region73: #{tpu_custom_call.1} parent=55 // pred_check
          %p459 = pneg %p213
        $region74: #{tpu_custom_call.1} parent=55 // pred_check_branch
          %461 = sbr.rel (%p459) target = $region76
        $region75: #{tpu_custom_call.1} parent=55 // pred_region
          %463 = dma.done [#allocation18], 256
        $region76: #{tpu_custom_call.1} parent=55 // pred_fallthru
          _
        // Predicated region
        $region77: #{tpu_custom_call.1} parent=55 // pred_check
          %p464 = pneg %p255
        $region78: #{tpu_custom_call.1} parent=55 // pred_check_branch
          %466 = sbr.rel (%p464) target = $region80
        $region79: #{tpu_custom_call.1} parent=55 // pred_region
          %468 = dma.done [#allocation13], 16
        $region80: #{tpu_custom_call.1} parent=55 // pred_fallthru
          _
        %469 = sfence
        %s470 = sand.u32 %s60, 1
        %s471 = scalar_lea.sflag [#allocation11], %s470
        %s472 = sand.u32 %s60, 1
        %s473 = smul.addr %s472, 16
        %s474 = scalar_lea.vmem [#allocation10], %s473
        %p475 = pneg %p73
        %p476 = pneg %p70
        %s477 = sand.u32 %s31, 1
        %s478 = scalar_lea.sflag [#allocation15], %s477
        %s479 = sand.u32 %s88, 1
        %s480 = smul.addr %s479, 16
        %s481 = scalar_lea.vmem [#allocation14], %s480
        %p482 = pneg %p101
        %p483 = pneg %p98
        %s484 = sand.u32 %s31, 1
        %s485 = scalar_lea.sflag [#allocation15], %s484
        %s486 = sand.u32 %s116, 1
        %s487 = smul.addr %s486, 2
        %s488 = scalar_lea.vmem [#allocation16], %s487
        %p489 = pneg %p129
        %p490 = pneg %p126
        %p491 = pneg %p150
        %p492 = pneg %p147
        %p493 = pneg %p171
        %p494 = pneg %p168
        %p495 = pneg %p192
        %p496 = pneg %p189
        %p497 = pneg %p213
        %p498 = pneg %p210
        %p499 = pneg %p234
        %p500 = pneg %p231
        %p501 = pneg %p255
        %p502 = pneg %p252
        %p503 = pneg %p283
        %p504 = pneg %p280
        %s505 = sand.u32 %s270, 1
        %s506 = scalar_lea.sflag [#allocation12], %s505
        %s507 = sand.u32 %s270, 1
        %s508 = smul.addr %s507, 16
        %s509 = scalar_lea.vmem [#allocation21], %s508
        %s510 = smul.u32 2, %s38
        %s511 = smul.u32 2, %s38
        %p513 = scmp.eq.s32.totalorder %s38, 0
        // Predicated region
        $region81: #{tpu_custom_call.1} parent=55 // pred_check
          %p514 = pneg %p513
        $region82: #{tpu_custom_call.1} parent=55 // pred_check_branch
          %516 = sbr.rel (%p514) target = $region84
        $region83: #{tpu_custom_call.1} parent=55 // pred_region
          %v517 = vld [vmem:[%s428] sm:$0xff]
          %v518 = vld [vmem:[%s428 + $0x8] sm:$0xff]
          %519 = vxpose.xlu0.b32.start [1/16] %v517, 128
          %520 = vxpose.xlu0.b32.cont [2/16] %v518, 128
          %521 = vxpose.xlu0.b32.cont [3/16] 0.0, 128
          %522 = vxpose.xlu0.b32.cont [4/16] 0.0, 128
          %523 = vxpose.xlu0.b32.cont [5/16] 0.0, 128
          %524 = vxpose.xlu0.b32.cont [6/16] 0.0, 128
          %525 = vxpose.xlu0.b32.cont [7/16] 0.0, 128
          %526 = vxpose.xlu0.b32.cont [8/16] 0.0, 128
          %527 = vxpose.xlu0.b32.cont [9/16] 0.0, 128
          %528 = vxpose.xlu0.b32.cont [10/16] 0.0, 128
          %529 = vxpose.xlu0.b32.cont [11/16] 0.0, 128
          %530 = vxpose.xlu0.b32.cont [12/16] 0.0, 128
          %531 = vxpose.xlu0.b32.cont [13/16] 0.0, 128
          %532 = vxpose.xlu0.b32.cont [14/16] 0.0, 128
          %533 = vxpose.xlu0.b32.cont [15/16] 0.0, 128
          %534 = vxpose.xlu0.b32.end [16/16] 0.0, 128
          %v535 = vpop.trf.xlu0
          %v536 = vpop.trf.xlu0
          %v537 = vpop.trf.xlu0
          %v538 = vpop.trf.xlu0
          %v539 = vpop.trf.xlu0
          %v540 = vpop.trf.xlu0
          %v541 = vpop.trf.xlu0
          %v542 = vpop.trf.xlu0
          %v543 = vpop.trf.xlu0
          %v544 = vpop.trf.xlu0
          %v545 = vpop.trf.xlu0
          %v546 = vpop.trf.xlu0
          %v547 = vpop.trf.xlu0
          %v548 = vpop.trf.xlu0
          %v549 = vpop.trf.xlu0
          %v550 = vpop.trf.xlu0
          %v551 = vpack.c.bf16 %v536, %v535
          %v552 = vpack.c.bf16 %v538, %v537
          %v553 = vpack.c.bf16 %v540, %v539
          %v554 = vpack.c.bf16 %v542, %v541
          %v555 = vpack.c.bf16 %v544, %v543
          %v556 = vpack.c.bf16 %v546, %v545
          %v557 = vpack.c.bf16 %v548, %v547
          %v558 = vpack.c.bf16 %v550, %v549
          %v559 = vld [vmem:[#allocation17] sm:$0xf]
          %v560 = vld [vmem:[#allocation17 + $0x4] sm:$0xf]
          %v561 = vld [vmem:[%s4] sm:$0x1]
          %v563 = vperm.slane %v561, 0
          %v567 = vunpack.c.l.b16 %v559
          %v568 = vunpack.c.l.b16 %v560
          %v569 = vpack.c.b16 %v568, %v567
          %vm571 = vcmask 130048
          %v573 = vsel %vm571, %v551, 0
          %v576 = vsel %vm571, %v552, 0
          %v579 = vsel %vm571, %v553, 0
          %v582 = vsel %vm571, %v554, 0
          %v585 = vsel %vm571, %v555, 0
          %v588 = vsel %vm571, %v556, 0
          %v591 = vsel %vm571, %v557, 0
          %v594 = vsel %vm571, %v558, 0
          %596 = vmatpush.bf16.msra.mxu0 0
          %597 = vmatpush.bf16.msra.mxu0 0
          %598 = vmatpush.bf16.msra.mxu0 0
          %599 = vmatpush.bf16.msra.mxu0 0
          %600 = vmatpush.bf16.msra.mxu0 0
          %601 = vmatpush.bf16.msra.mxu0 0
          %602 = vmatpush.bf16.msra.mxu0 0
          %603 = vmatpush.bf16.msra.mxu0 %v569
          %604 = vmatmul.bf16.gmra.mxu0 %v573
          %v605 = vpop.f32.mrf.mxu0
          %v606 = vadd.f32 %v563, %v605
          %v607 = vpop.f32.mrf.mxu0
          %v608 = vadd.f32 %v563, %v607
          %609 = vmatmul.bf16.gmra.mxu0 %v576
          %v610 = vpop.f32.mrf.mxu0
          %v611 = vadd.f32 %v563, %v610
          %v612 = vpop.f32.mrf.mxu0
          %v613 = vadd.f32 %v563, %v612
          %614 = vmatmul.bf16.gmra.mxu0 %v579
          %v615 = vpop.f32.mrf.mxu0
          %v616 = vadd.f32 %v563, %v615
          %v617 = vpop.f32.mrf.mxu0
          %v618 = vadd.f32 %v563, %v617
          %619 = vmatmul.bf16.gmra.mxu0 %v582
          %v620 = vpop.f32.mrf.mxu0
          %v621 = vadd.f32 %v563, %v620
          %v622 = vpop.f32.mrf.mxu0
          %v623 = vadd.f32 %v563, %v622
          %624 = vmatmul.bf16.gmra.mxu0 %v585
          %v625 = vpop.f32.mrf.mxu0
          %v626 = vadd.f32 %v563, %v625
          %v627 = vpop.f32.mrf.mxu0
          %v628 = vadd.f32 %v563, %v627
          %629 = vmatmul.bf16.gmra.mxu0 %v588
          %v630 = vpop.f32.mrf.mxu0
          %v631 = vadd.f32 %v563, %v630
          %v632 = vpop.f32.mrf.mxu0
          %v633 = vadd.f32 %v563, %v632
          %634 = vmatmul.bf16.gmra.mxu0 %v591
          %v635 = vpop.f32.mrf.mxu0
          %v636 = vadd.f32 %v563, %v635
          %v637 = vpop.f32.mrf.mxu0
          %v638 = vadd.f32 %v563, %v637
          %639 = vmatmul.bf16.gmra.mxu0 %v594
          %v640 = vpop.f32.mrf.mxu0
          %v641 = vadd.f32 %v563, %v640
          %v642 = vpop.f32.mrf.mxu0
          %v643 = vadd.f32 %v563, %v642
          %644 = vdwg.mxu0
          %v645 = vpack.c.bf16 %v606, %v606
          %v646 = vpack.c.bf16 %v608, %v608
          %v647 = vpack.c.bf16 %v611, %v611
          %v648 = vpack.c.bf16 %v613, %v613
          %v649 = vpack.c.bf16 %v616, %v616
          %v650 = vpack.c.bf16 %v618, %v618
          %v651 = vpack.c.bf16 %v621, %v621
          %v652 = vpack.c.bf16 %v623, %v623
          %v653 = vpack.c.bf16 %v626, %v626
          %v654 = vpack.c.bf16 %v628, %v628
          %v655 = vpack.c.bf16 %v631, %v631
          %v656 = vpack.c.bf16 %v633, %v633
          %v657 = vpack.c.bf16 %v636, %v636
          %v658 = vpack.c.bf16 %v638, %v638
          %v659 = vpack.c.bf16 %v641, %v641
          %v660 = vpack.c.bf16 %v643, %v643
          %vm661 = vcmask 125952
          %662 = vst.msk [vmem:[#allocation2] sm:$0xf] %vm661, %v645
          %663 = vst.msk [vmem:[#allocation2 + $0x4] sm:$0xf] %vm661, %v646
          %664 = vst.msk [vmem:[#allocation2 + $0x8] sm:$0xf] %vm661, %v647
          %665 = vst.msk [vmem:[#allocation2 + $0xc] sm:$0xf] %vm661, %v648
          %666 = vst.msk [vmem:[#allocation2 + $0x10] sm:$0xf] %vm661, %v649
          %667 = vst.msk [vmem:[#allocation2 + $0x14] sm:$0xf] %vm661, %v650
          %668 = vst.msk [vmem:[#allocation2 + $0x18] sm:$0xf] %vm661, %v651
          %669 = vst.msk [vmem:[#allocation2 + $0x1c] sm:$0xf] %vm661, %v652
          %670 = vst.msk [vmem:[#allocation2 + $0x20] sm:$0xf] %vm661, %v653
          %671 = vst.msk [vmem:[#allocation2 + $0x24] sm:$0xf] %vm661, %v654
          %672 = vst.msk [vmem:[#allocation2 + $0x28] sm:$0xf] %vm661, %v655
          %673 = vst.msk [vmem:[#allocation2 + $0x2c] sm:$0xf] %vm661, %v656
          %674 = vst.msk [vmem:[#allocation2 + $0x30] sm:$0xf] %vm661, %v657
          %675 = vst.msk [vmem:[#allocation2 + $0x34] sm:$0xf] %vm661, %v658
          %676 = vst.msk [vmem:[#allocation2 + $0x38] sm:$0xf] %vm661, %v659
          %677 = vst.msk [vmem:[#allocation2 + $0x3c] sm:$0xf] %vm661, %v660
          %v678 = vld [vmem:[%s5] sm:$0x1]
          %v680 = vperm.slane %v678, 0
          %v682 = vmul.f32 %v535, %v680
          %v683 = vmul.f32 %v536, %v680
          %v684 = vmul.f32 %v537, %v680
          %v685 = vmul.f32 %v538, %v680
          %v686 = vmul.f32 %v539, %v680
          %v687 = vmul.f32 %v540, %v680
          %v688 = vmul.f32 %v541, %v680
          %v689 = vmul.f32 %v542, %v680
          %v690 = vmul.f32 %v543, %v680
          %v691 = vmul.f32 %v544, %v680
          %v692 = vmul.f32 %v545, %v680
          %v693 = vmul.f32 %v546, %v680
          %v694 = vmul.f32 %v547, %v680
          %v695 = vmul.f32 %v548, %v680
          %v696 = vmul.f32 %v549, %v680
          %v697 = vmul.f32 %v550, %v680
          %v698 = vsel %vm571, %v682, 0.0
          %699 = vadd.xlane.f32.xlu0 %v698
          %v700 = vpop.xlane.xlu0 %699
          %v701 = vsel %vm571, %v683, 0.0
          %702 = vadd.xlane.f32.xlu0 %v701
          %v703 = vpop.xlane.xlu0 %702
          %v704 = vsel %vm571, %v684, 0.0
          %705 = vadd.xlane.f32.xlu0 %v704
          %v706 = vpop.xlane.xlu0 %705
          %v707 = vsel %vm571, %v685, 0.0
          %708 = vadd.xlane.f32.xlu0 %v707
          %v709 = vpop.xlane.xlu0 %708
          %v710 = vsel %vm571, %v686, 0.0
          %711 = vadd.xlane.f32.xlu0 %v710
          %v712 = vpop.xlane.xlu0 %711
          %v713 = vsel %vm571, %v687, 0.0
          %714 = vadd.xlane.f32.xlu0 %v713
          %v715 = vpop.xlane.xlu0 %714
          %v716 = vsel %vm571, %v688, 0.0
          %717 = vadd.xlane.f32.xlu0 %v716
          %v718 = vpop.xlane.xlu0 %717
          %v719 = vsel %vm571, %v689, 0.0
          %720 = vadd.xlane.f32.xlu0 %v719
          %v721 = vpop.xlane.xlu0 %720
          %v722 = vsel %vm571, %v690, 0.0
          %723 = vadd.xlane.f32.xlu0 %v722
          %v724 = vpop.xlane.xlu0 %723
          %v725 = vsel %vm571, %v691, 0.0
          %726 = vadd.xlane.f32.xlu0 %v725
          %v727 = vpop.xlane.xlu0 %726
          %v728 = vsel %vm571, %v692, 0.0
          %729 = vadd.xlane.f32.xlu0 %v728
          %v730 = vpop.xlane.xlu0 %729
          %v731 = vsel %vm571, %v693, 0.0
          %732 = vadd.xlane.f32.xlu0 %v731
          %v733 = vpop.xlane.xlu0 %732
          %v734 = vsel %vm571, %v694, 0.0
          %735 = vadd.xlane.f32.xlu0 %v734
          %v736 = vpop.xlane.xlu0 %735
          %v737 = vsel %vm571, %v695, 0.0
          %738 = vadd.xlane.f32.xlu0 %v737
          %v739 = vpop.xlane.xlu0 %738
          %v740 = vsel %vm571, %v696, 0.0
          %741 = vadd.xlane.f32.xlu0 %v740
          %v742 = vpop.xlane.xlu0 %741
          %v743 = vsel %vm571, %v697, 0.0
          %744 = vadd.xlane.f32.xlu0 %v743
          %v745 = vpop.xlane.xlu0 %744
          %s746 = sld [smem:[#allocation20 + $0x2]]
          %v747 = vstv %s746
          %v748 = vadd.f32 %v700, %v747
          %v749 = vadd.f32 %v703, %v747
          %v750 = vadd.f32 %v706, %v747
          %v751 = vadd.f32 %v709, %v747
          %v752 = vadd.f32 %v712, %v747
          %v753 = vadd.f32 %v715, %v747
          %v754 = vadd.f32 %v718, %v747
          %v755 = vadd.f32 %v721, %v747
          %v756 = vadd.f32 %v724, %v747
          %v757 = vadd.f32 %v727, %v747
          %v758 = vadd.f32 %v730, %v747
          %v759 = vadd.f32 %v733, %v747
          %v760 = vadd.f32 %v736, %v747
          %v761 = vadd.f32 %v739, %v747
          %v762 = vadd.f32 %v742, %v747
          %v763 = vadd.f32 %v745, %v747
          %vm764 = vcmask 7168
          %765 = vst.msk [vmem:[#allocation3] sm:$0xff] %vm764, %v748
          %766 = vst.msk [vmem:[#allocation3 + $0x8] sm:$0xff] %vm764, %v749
          %767 = vst.msk [vmem:[#allocation3 + $0x10] sm:$0xff] %vm764, %v750
          %768 = vst.msk [vmem:[#allocation3 + $0x18] sm:$0xff] %vm764, %v751
          %769 = vst.msk [vmem:[#allocation3 + $0x20] sm:$0xff] %vm764, %v752
          %770 = vst.msk [vmem:[#allocation3 + $0x28] sm:$0xff] %vm764, %v753
          %771 = vst.msk [vmem:[#allocation3 + $0x30] sm:$0xff] %vm764, %v754
          %772 = vst.msk [vmem:[#allocation3 + $0x38] sm:$0xff] %vm764, %v755
          %773 = vst.msk [vmem:[#allocation3 + $0x40] sm:$0xff] %vm764, %v756
          %774 = vst.msk [vmem:[#allocation3 + $0x48] sm:$0xff] %vm764, %v757
          %775 = vst.msk [vmem:[#allocation3 + $0x50] sm:$0xff] %vm764, %v758
          %776 = vst.msk [vmem:[#allocation3 + $0x58] sm:$0xff] %vm764, %v759
          %777 = vst.msk [vmem:[#allocation3 + $0x60] sm:$0xff] %vm764, %v760
          %778 = vst.msk [vmem:[#allocation3 + $0x68] sm:$0xff] %vm764, %v761
          %779 = vst.msk [vmem:[#allocation3 + $0x70] sm:$0xff] %vm764, %v762
          %780 = vst.msk [vmem:[#allocation3 + $0x78] sm:$0xff] %vm764, %v763
          %781 = vst.msk [vmem:[#allocation4] sm:$0xff] %vm764, -inf
          %782 = vst.msk [vmem:[#allocation4 + $0x8] sm:$0xff] %vm764, -inf
          %783 = vst.msk [vmem:[#allocation4 + $0x10] sm:$0xff] %vm764, -inf
          %784 = vst.msk [vmem:[#allocation4 + $0x18] sm:$0xff] %vm764, -inf
          %785 = vst.msk [vmem:[#allocation4 + $0x20] sm:$0xff] %vm764, -inf
          %786 = vst.msk [vmem:[#allocation4 + $0x28] sm:$0xff] %vm764, -inf
          %787 = vst.msk [vmem:[#allocation4 + $0x30] sm:$0xff] %vm764, -inf
          %788 = vst.msk [vmem:[#allocation4 + $0x38] sm:$0xff] %vm764, -inf
          %789 = vst.msk [vmem:[#allocation4 + $0x40] sm:$0xff] %vm764, -inf
          %790 = vst.msk [vmem:[#allocation4 + $0x48] sm:$0xff] %vm764, -inf
          %791 = vst.msk [vmem:[#allocation4 + $0x50] sm:$0xff] %vm764, -inf
          %792 = vst.msk [vmem:[#allocation4 + $0x58] sm:$0xff] %vm764, -inf
          %793 = vst.msk [vmem:[#allocation4 + $0x60] sm:$0xff] %vm764, -inf
          %794 = vst.msk [vmem:[#allocation4 + $0x68] sm:$0xff] %vm764, -inf
          %795 = vst.msk [vmem:[#allocation4 + $0x70] sm:$0xff] %vm764, -inf
          %796 = vst.msk [vmem:[#allocation4 + $0x78] sm:$0xff] %vm764, -inf
          %797 = vst.msk [vmem:[#allocation6] sm:$0xff] %vm764, -inf
          %798 = vst.msk [vmem:[#allocation6 + $0x8] sm:$0xff] %vm764, -inf
          %799 = vst.msk [vmem:[#allocation6 + $0x10] sm:$0xff] %vm764, -inf
          %800 = vst.msk [vmem:[#allocation6 + $0x18] sm:$0xff] %vm764, -inf
          %801 = vst.msk [vmem:[#allocation6 + $0x20] sm:$0xff] %vm764, -inf
          %802 = vst.msk [vmem:[#allocation6 + $0x28] sm:$0xff] %vm764, -inf
          %803 = vst.msk [vmem:[#allocation6 + $0x30] sm:$0xff] %vm764, -inf
          %804 = vst.msk [vmem:[#allocation6 + $0x38] sm:$0xff] %vm764, -inf
          %805 = vst.msk [vmem:[#allocation6 + $0x40] sm:$0xff] %vm764, -inf
          %806 = vst.msk [vmem:[#allocation6 + $0x48] sm:$0xff] %vm764, -inf
          %807 = vst.msk [vmem:[#allocation6 + $0x50] sm:$0xff] %vm764, -inf
          %808 = vst.msk [vmem:[#allocation6 + $0x58] sm:$0xff] %vm764, -inf
          %809 = vst.msk [vmem:[#allocation6 + $0x60] sm:$0xff] %vm764, -inf
          %810 = vst.msk [vmem:[#allocation6 + $0x68] sm:$0xff] %vm764, -inf
          %811 = vst.msk [vmem:[#allocation6 + $0x70] sm:$0xff] %vm764, -inf
          %812 = vst.msk [vmem:[#allocation6 + $0x78] sm:$0xff] %vm764, -inf
          %813 = vst.msk [vmem:[#allocation5] sm:$0xff] %vm764, 0.0
          %814 = vst.msk [vmem:[#allocation5 + $0x8] sm:$0xff] %vm764, 0.0
          %815 = vst.msk [vmem:[#allocation5 + $0x10] sm:$0xff] %vm764, 0.0
          %816 = vst.msk [vmem:[#allocation5 + $0x18] sm:$0xff] %vm764, 0.0
          %817 = vst.msk [vmem:[#allocation5 + $0x20] sm:$0xff] %vm764, 0.0
          %818 = vst.msk [vmem:[#allocation5 + $0x28] sm:$0xff] %vm764, 0.0
          %819 = vst.msk [vmem:[#allocation5 + $0x30] sm:$0xff] %vm764, 0.0
          %820 = vst.msk [vmem:[#allocation5 + $0x38] sm:$0xff] %vm764, 0.0
          %821 = vst.msk [vmem:[#allocation5 + $0x40] sm:$0xff] %vm764, 0.0
          %822 = vst.msk [vmem:[#allocation5 + $0x48] sm:$0xff] %vm764, 0.0
          %823 = vst.msk [vmem:[#allocation5 + $0x50] sm:$0xff] %vm764, 0.0
          %824 = vst.msk [vmem:[#allocation5 + $0x58] sm:$0xff] %vm764, 0.0
          %825 = vst.msk [vmem:[#allocation5 + $0x60] sm:$0xff] %vm764, 0.0
          %826 = vst.msk [vmem:[#allocation5 + $0x68] sm:$0xff] %vm764, 0.0
          %827 = vst.msk [vmem:[#allocation5 + $0x70] sm:$0xff] %vm764, 0.0
          %828 = vst.msk [vmem:[#allocation5 + $0x78] sm:$0xff] %vm764, 0.0
          %829 = vst.msk [vmem:[#allocation7] sm:$0xff] %vm764, 0.0
          %830 = vst.msk [vmem:[#allocation7 + $0x8] sm:$0xff] %vm764, 0.0
          %831 = vst.msk [vmem:[#allocation7 + $0x10] sm:$0xff] %vm764, 0.0
          %832 = vst.msk [vmem:[#allocation7 + $0x18] sm:$0xff] %vm764, 0.0
          %833 = vst.msk [vmem:[#allocation7 + $0x20] sm:$0xff] %vm764, 0.0
          %834 = vst.msk [vmem:[#allocation7 + $0x28] sm:$0xff] %vm764, 0.0
          %835 = vst.msk [vmem:[#allocation7 + $0x30] sm:$0xff] %vm764, 0.0
          %836 = vst.msk [vmem:[#allocation7 + $0x38] sm:$0xff] %vm764, 0.0
          %837 = vst.msk [vmem:[#allocation7 + $0x40] sm:$0xff] %vm764, 0.0
          %838 = vst.msk [vmem:[#allocation7 + $0x48] sm:$0xff] %vm764, 0.0
          %839 = vst.msk [vmem:[#allocation7 + $0x50] sm:$0xff] %vm764, 0.0
          %840 = vst.msk [vmem:[#allocation7 + $0x58] sm:$0xff] %vm764, 0.0
          %841 = vst.msk [vmem:[#allocation7 + $0x60] sm:$0xff] %vm764, 0.0
          %842 = vst.msk [vmem:[#allocation7 + $0x68] sm:$0xff] %vm764, 0.0
          %843 = vst.msk [vmem:[#allocation7 + $0x70] sm:$0xff] %vm764, 0.0
          %844 = vst.msk [vmem:[#allocation7 + $0x78] sm:$0xff] %vm764, 0.0
          %845 = vst.msk [vmem:[#allocation8] sm:$0xff] %vm571, 0.0
          %846 = vst.msk [vmem:[#allocation8 + $0x8] sm:$0xff] %vm571, 0.0
          %847 = vst.msk [vmem:[#allocation8 + $0x10] sm:$0xff] %vm571, 0.0
          %848 = vst.msk [vmem:[#allocation8 + $0x18] sm:$0xff] %vm571, 0.0
          %849 = vst.msk [vmem:[#allocation8 + $0x20] sm:$0xff] %vm571, 0.0
          %850 = vst.msk [vmem:[#allocation8 + $0x28] sm:$0xff] %vm571, 0.0
          %851 = vst.msk [vmem:[#allocation8 + $0x30] sm:$0xff] %vm571, 0.0
          %852 = vst.msk [vmem:[#allocation8 + $0x38] sm:$0xff] %vm571, 0.0
          %853 = vst.msk [vmem:[#allocation8 + $0x40] sm:$0xff] %vm571, 0.0
          %854 = vst.msk [vmem:[#allocation8 + $0x48] sm:$0xff] %vm571, 0.0
          %855 = vst.msk [vmem:[#allocation8 + $0x50] sm:$0xff] %vm571, 0.0
          %856 = vst.msk [vmem:[#allocation8 + $0x58] sm:$0xff] %vm571, 0.0
          %857 = vst.msk [vmem:[#allocation8 + $0x60] sm:$0xff] %vm571, 0.0
          %858 = vst.msk [vmem:[#allocation8 + $0x68] sm:$0xff] %vm571, 0.0
          %859 = vst.msk [vmem:[#allocation8 + $0x70] sm:$0xff] %vm571, 0.0
          %860 = vst.msk [vmem:[#allocation8 + $0x78] sm:$0xff] %vm571, 0.0
          %861 = vst.msk [vmem:[#allocation9] sm:$0xff] %vm571, 0.0
          %862 = vst.msk [vmem:[#allocation9 + $0x8] sm:$0xff] %vm571, 0.0
          %863 = vst.msk [vmem:[#allocation9 + $0x10] sm:$0xff] %vm571, 0.0
          %864 = vst.msk [vmem:[#allocation9 + $0x18] sm:$0xff] %vm571, 0.0
          %865 = vst.msk [vmem:[#allocation9 + $0x20] sm:$0xff] %vm571, 0.0
          %866 = vst.msk [vmem:[#allocation9 + $0x28] sm:$0xff] %vm571, 0.0
          %867 = vst.msk [vmem:[#allocation9 + $0x30] sm:$0xff] %vm571, 0.0
          %868 = vst.msk [vmem:[#allocation9 + $0x38] sm:$0xff] %vm571, 0.0
          %869 = vst.msk [vmem:[#allocation9 + $0x40] sm:$0xff] %vm571, 0.0
          %870 = vst.msk [vmem:[#allocation9 + $0x48] sm:$0xff] %vm571, 0.0
          %871 = vst.msk [vmem:[#allocation9 + $0x50] sm:$0xff] %vm571, 0.0
          %872 = vst.msk [vmem:[#allocation9 + $0x58] sm:$0xff] %vm571, 0.0
          %873 = vst.msk [vmem:[#allocation9 + $0x60] sm:$0xff] %vm571, 0.0
          %874 = vst.msk [vmem:[#allocation9 + $0x68] sm:$0xff] %vm571, 0.0
          %875 = vst.msk [vmem:[#allocation9 + $0x70] sm:$0xff] %vm571, 0.0
          %876 = vst.msk [vmem:[#allocation9 + $0x78] sm:$0xff] %vm571, 0.0
        $region84: #{tpu_custom_call.1} parent=55 // pred_fallthru
          _
        %v877 = vld [vmem:[%s438] sm:$0xff]
        %v878 = vld [vmem:[%s438 + $0x8] sm:$0xff]
        %v879 = vld [vmem:[#allocation2] sm:$0xf]
        %v880 = vld [vmem:[#allocation2 + $0x4] sm:$0xf]
        %v881 = vld [vmem:[#allocation2 + $0x8] sm:$0xf]
        %v882 = vld [vmem:[#allocation2 + $0xc] sm:$0xf]
        %v883 = vld [vmem:[#allocation2 + $0x10] sm:$0xf]
        %v884 = vld [vmem:[#allocation2 + $0x14] sm:$0xf]
        %v885 = vld [vmem:[#allocation2 + $0x18] sm:$0xf]
        %v886 = vld [vmem:[#allocation2 + $0x1c] sm:$0xf]
        %v887 = vld [vmem:[#allocation2 + $0x20] sm:$0xf]
        %v888 = vld [vmem:[#allocation2 + $0x24] sm:$0xf]
        %v889 = vld [vmem:[#allocation2 + $0x28] sm:$0xf]
        %v890 = vld [vmem:[#allocation2 + $0x2c] sm:$0xf]
        %v891 = vld [vmem:[#allocation2 + $0x30] sm:$0xf]
        %v892 = vld [vmem:[#allocation2 + $0x34] sm:$0xf]
        %v893 = vld [vmem:[#allocation2 + $0x38] sm:$0xf]
        %v894 = vld [vmem:[#allocation2 + $0x3c] sm:$0xf]
        %v911 = vunpack.c.l.b16 %v879
        %v912 = vunpack.c.l.b16 %v880
        %v913 = vunpack.c.l.b16 %v881
        %v914 = vunpack.c.l.b16 %v882
        %v915 = vunpack.c.l.b16 %v883
        %v916 = vunpack.c.l.b16 %v884
        %v917 = vunpack.c.l.b16 %v885
        %v918 = vunpack.c.l.b16 %v886
        %v919 = vunpack.c.l.b16 %v887
        %v920 = vunpack.c.l.b16 %v888
        %v921 = vunpack.c.l.b16 %v889
        %v922 = vunpack.c.l.b16 %v890
        %v923 = vunpack.c.l.b16 %v891
        %v924 = vunpack.c.l.b16 %v892
        %v925 = vunpack.c.l.b16 %v893
        %v926 = vunpack.c.l.b16 %v894
        %v927 = vpack.c.b16 %v912, %v911
        %v928 = vpack.c.b16 %v914, %v913
        %v929 = vpack.c.b16 %v916, %v915
        %v930 = vpack.c.b16 %v918, %v917
        %v931 = vpack.c.b16 %v920, %v919
        %v932 = vpack.c.b16 %v922, %v921
        %v933 = vpack.c.b16 %v924, %v923
        %v934 = vpack.c.b16 %v926, %v925
        %v937 = vunpack.c.l.b16 %v877
        %v938 = vunpack.c.h.b16 %v877
        %v939 = vunpack.c.l.b16 %v878
        %v940 = vunpack.c.h.b16 %v878
        %v941 = vpack.c.b16 %v939, %v937
        %v942 = vpack.c.b16 %v940, %v938
        %vm945 = vcmask 130048
        %v947 = vsel %vm945, %v927, 0
        %v950 = vsel %vm945, %v928, 0
        %v953 = vsel %vm945, %v929, 0
        %v956 = vsel %vm945, %v930, 0
        %v959 = vsel %vm945, %v931, 0
        %v962 = vsel %vm945, %v932, 0
        %v965 = vsel %vm945, %v933, 0
        %v968 = vsel %vm945, %v934, 0
        %970 = vmatpush.bf16.msra.mxu0 0
        %971 = vmatpush.bf16.msra.mxu0 0
        %972 = vmatpush.bf16.msra.mxu0 0
        %973 = vmatpush.bf16.msra.mxu0 0
        %974 = vmatpush.bf16.msra.mxu0 0
        %975 = vmatpush.bf16.msra.mxu0 0
        %976 = vmatpush.bf16.msra.mxu0 0
        %977 = vmatpush.bf16.msra.mxu0 %v941
        %978 = vmatmul.bf16.gmra.mxu0 %v947
        %v979 = vpop.f32.mrf.mxu0
        %v980 = vadd.f32 0.0, %v979
        %v981 = vpop.f32.mrf.mxu0
        %v982 = vadd.f32 0.0, %v981
        %983 = vmatmul.bf16.gmra.mxu0 %v950
        %v984 = vpop.f32.mrf.mxu0
        %v985 = vadd.f32 0.0, %v984
        %v986 = vpop.f32.mrf.mxu0
        %v987 = vadd.f32 0.0, %v986
        %988 = vmatmul.bf16.gmra.mxu0 %v953
        %v989 = vpop.f32.mrf.mxu0
        %v990 = vadd.f32 0.0, %v989
        %v991 = vpop.f32.mrf.mxu0
        %v992 = vadd.f32 0.0, %v991
        %993 = vmatmul.bf16.gmra.mxu0 %v956
        %v994 = vpop.f32.mrf.mxu0
        %v995 = vadd.f32 0.0, %v994
        %v996 = vpop.f32.mrf.mxu0
        %v997 = vadd.f32 0.0, %v996
        %998 = vmatmul.bf16.gmra.mxu0 %v959
        %v999 = vpop.f32.mrf.mxu0
        %v1000 = vadd.f32 0.0, %v999
        %v1001 = vpop.f32.mrf.mxu0
        %v1002 = vadd.f32 0.0, %v1001
        %1003 = vmatmul.bf16.gmra.mxu0 %v962
        %v1004 = vpop.f32.mrf.mxu0
        %v1005 = vadd.f32 0.0, %v1004
        %v1006 = vpop.f32.mrf.mxu0
        %v1007 = vadd.f32 0.0, %v1006
        %1008 = vmatmul.bf16.gmra.mxu0 %v965
        %v1009 = vpop.f32.mrf.mxu0
        %v1010 = vadd.f32 0.0, %v1009
        %v1011 = vpop.f32.mrf.mxu0
        %v1012 = vadd.f32 0.0, %v1011
        %1013 = vmatmul.bf16.gmra.mxu0 %v968
        %v1014 = vpop.f32.mrf.mxu0
        %v1015 = vadd.f32 0.0, %v1014
        %v1016 = vpop.f32.mrf.mxu0
        %v1017 = vadd.f32 0.0, %v1016
        %1018 = vdwg.mxu0
        %1019 = vmatpush.bf16.msra.mxu0 0
        %1020 = vmatpush.bf16.msra.mxu0 0
        %1021 = vmatpush.bf16.msra.mxu0 0
        %1022 = vmatpush.bf16.msra.mxu0 0
        %1023 = vmatpush.bf16.msra.mxu0 0
        %1024 = vmatpush.bf16.msra.mxu0 0
        %1025 = vmatpush.bf16.msra.mxu0 0
        %1026 = vmatpush.bf16.msra.mxu0 %v942
        %1027 = vmatmul.bf16.gmra.mxu0 %v947
        %v1028 = vpop.f32.mrf.mxu0
        %v1029 = vadd.f32 0.0, %v1028
        %v1030 = vpop.f32.mrf.mxu0
        %v1031 = vadd.f32 0.0, %v1030
        %1032 = vmatmul.bf16.gmra.mxu0 %v950
        %v1033 = vpop.f32.mrf.mxu0
        %v1034 = vadd.f32 0.0, %v1033
        %v1035 = vpop.f32.mrf.mxu0
        %v1036 = vadd.f32 0.0, %v1035
        %1037 = vmatmul.bf16.gmra.mxu0 %v953
        %v1038 = vpop.f32.mrf.mxu0
        %v1039 = vadd.f32 0.0, %v1038
        %v1040 = vpop.f32.mrf.mxu0
        %v1041 = vadd.f32 0.0, %v1040
        %1042 = vmatmul.bf16.gmra.mxu0 %v956
        %v1043 = vpop.f32.mrf.mxu0
        %v1044 = vadd.f32 0.0, %v1043
        %v1045 = vpop.f32.mrf.mxu0
        %v1046 = vadd.f32 0.0, %v1045
        %1047 = vmatmul.bf16.gmra.mxu0 %v959
        %v1048 = vpop.f32.mrf.mxu0
        %v1049 = vadd.f32 0.0, %v1048
        %v1050 = vpop.f32.mrf.mxu0
        %v1051 = vadd.f32 0.0, %v1050
        %1052 = vmatmul.bf16.gmra.mxu0 %v962
        %v1053 = vpop.f32.mrf.mxu0
        %v1054 = vadd.f32 0.0, %v1053
        %v1055 = vpop.f32.mrf.mxu0
        %v1056 = vadd.f32 0.0, %v1055
        %1057 = vmatmul.bf16.gmra.mxu0 %v965
        %v1058 = vpop.f32.mrf.mxu0
        %v1059 = vadd.f32 0.0, %v1058
        %v1060 = vpop.f32.mrf.mxu0
        %v1061 = vadd.f32 0.0, %v1060
        %1062 = vmatmul.bf16.gmra.mxu0 %v968
        %v1063 = vpop.f32.mrf.mxu0
        %v1064 = vadd.f32 0.0, %v1063
        %v1065 = vpop.f32.mrf.mxu0
        %v1066 = vadd.f32 0.0, %v1065
        %1067 = vdwg.mxu0
        %v1068 = vld [vmem:[#allocation3] sm:$0xff]
        %v1069 = vld [vmem:[#allocation3 + $0x8] sm:$0xff]
        %v1070 = vld [vmem:[#allocation3 + $0x10] sm:$0xff]
        %v1071 = vld [vmem:[#allocation3 + $0x18] sm:$0xff]
        %v1072 = vld [vmem:[#allocation3 + $0x20] sm:$0xff]
        %v1073 = vld [vmem:[#allocation3 + $0x28] sm:$0xff]
        %v1074 = vld [vmem:[#allocation3 + $0x30] sm:$0xff]
        %v1075 = vld [vmem:[#allocation3 + $0x38] sm:$0xff]
        %v1076 = vld [vmem:[#allocation3 + $0x40] sm:$0xff]
        %v1077 = vld [vmem:[#allocation3 + $0x48] sm:$0xff]
        %v1078 = vld [vmem:[#allocation3 + $0x50] sm:$0xff]
        %v1079 = vld [vmem:[#allocation3 + $0x58] sm:$0xff]
        %v1080 = vld [vmem:[#allocation3 + $0x60] sm:$0xff]
        %v1081 = vld [vmem:[#allocation3 + $0x68] sm:$0xff]
        %v1082 = vld [vmem:[#allocation3 + $0x70] sm:$0xff]
        %v1083 = vld [vmem:[#allocation3 + $0x78] sm:$0xff]
        %v1084 = vld [vmem:[%s448] sm:$0x3]
        %1086 = vset.pattern.permute.xlu0 0
        %1087 = vperm.xlu0 %1086, %v1068
        %v1088 = vpop.permute.xlu0 %1087
        %1091 = vset.pattern.permute.xlu0 0
        %1092 = vperm.xlu0 %1091, %v1069
        %v1093 = vpop.permute.xlu0 %1092
        %1096 = vset.pattern.permute.xlu0 0
        %1097 = vperm.xlu0 %1096, %v1070
        %v1098 = vpop.permute.xlu0 %1097
        %1101 = vset.pattern.permute.xlu0 0
        %1102 = vperm.xlu0 %1101, %v1071
        %v1103 = vpop.permute.xlu0 %1102
        %1106 = vset.pattern.permute.xlu0 0
        %1107 = vperm.xlu0 %1106, %v1072
        %v1108 = vpop.permute.xlu0 %1107
        %1111 = vset.pattern.permute.xlu0 0
        %1112 = vperm.xlu0 %1111, %v1073
        %v1113 = vpop.permute.xlu0 %1112
        %1116 = vset.pattern.permute.xlu0 0
        %1117 = vperm.xlu0 %1116, %v1074
        %v1118 = vpop.permute.xlu0 %1117
        %1121 = vset.pattern.permute.xlu0 0
        %1122 = vperm.xlu0 %1121, %v1075
        %v1123 = vpop.permute.xlu0 %1122
        %1126 = vset.pattern.permute.xlu0 0
        %1127 = vperm.xlu0 %1126, %v1076
        %v1128 = vpop.permute.xlu0 %1127
        %1131 = vset.pattern.permute.xlu0 0
        %1132 = vperm.xlu0 %1131, %v1077
        %v1133 = vpop.permute.xlu0 %1132
        %1136 = vset.pattern.permute.xlu0 0
        %1137 = vperm.xlu0 %1136, %v1078
        %v1138 = vpop.permute.xlu0 %1137
        %1141 = vset.pattern.permute.xlu0 0
        %1142 = vperm.xlu0 %1141, %v1079
        %v1143 = vpop.permute.xlu0 %1142
        %1146 = vset.pattern.permute.xlu0 0
        %1147 = vperm.xlu0 %1146, %v1080
        %v1148 = vpop.permute.xlu0 %1147
        %1151 = vset.pattern.permute.xlu0 0
        %1152 = vperm.xlu0 %1151, %v1081
        %v1153 = vpop.permute.xlu0 %1152
        %1156 = vset.pattern.permute.xlu0 0
        %1157 = vperm.xlu0 %1156, %v1082
        %v1158 = vpop.permute.xlu0 %1157
        %1161 = vset.pattern.permute.xlu0 0
        %1162 = vperm.xlu0 %1161, %v1083
        %v1163 = vpop.permute.xlu0 %1162
        %v1166 = vperm.slane %v1084, 0
        %v1167 = vperm.slane %v1084, 1
        %v1170 = vmul.f32 %v1088, %v1166
        %v1171 = vmul.f32 %v1088, %v1167
        %v1172 = vmul.f32 %v1093, %v1166
        %v1173 = vmul.f32 %v1093, %v1167
        %v1174 = vmul.f32 %v1098, %v1166
        %v1175 = vmul.f32 %v1098, %v1167
        %v1176 = vmul.f32 %v1103, %v1166
        %v1177 = vmul.f32 %v1103, %v1167
        %v1178 = vmul.f32 %v1108, %v1166
        %v1179 = vmul.f32 %v1108, %v1167
        %v1180 = vmul.f32 %v1113, %v1166
        %v1181 = vmul.f32 %v1113, %v1167
        %v1182 = vmul.f32 %v1118, %v1166
        %v1183 = vmul.f32 %v1118, %v1167
        %v1184 = vmul.f32 %v1123, %v1166
        %v1185 = vmul.f32 %v1123, %v1167
        %v1186 = vmul.f32 %v1128, %v1166
        %v1187 = vmul.f32 %v1128, %v1167
        %v1188 = vmul.f32 %v1133, %v1166
        %v1189 = vmul.f32 %v1133, %v1167
        %v1190 = vmul.f32 %v1138, %v1166
        %v1191 = vmul.f32 %v1138, %v1167
        %v1192 = vmul.f32 %v1143, %v1166
        %v1193 = vmul.f32 %v1143, %v1167
        %v1194 = vmul.f32 %v1148, %v1166
        %v1195 = vmul.f32 %v1148, %v1167
        %v1196 = vmul.f32 %v1153, %v1166
        %v1197 = vmul.f32 %v1153, %v1167
        %v1198 = vmul.f32 %v1158, %v1166
        %v1199 = vmul.f32 %v1158, %v1167
        %v1200 = vmul.f32 %v1163, %v1166
        %v1201 = vmul.f32 %v1163, %v1167
        %v1202 = vsub.f32 %v980, %v1170
        %v1203 = vsub.f32 %v1029, %v1171
        %v1204 = vsub.f32 %v982, %v1172
        %v1205 = vsub.f32 %v1031, %v1173
        %v1206 = vsub.f32 %v985, %v1174
        %v1207 = vsub.f32 %v1034, %v1175
        %v1208 = vsub.f32 %v987, %v1176
        %v1209 = vsub.f32 %v1036, %v1177
        %v1210 = vsub.f32 %v990, %v1178
        %v1211 = vsub.f32 %v1039, %v1179
        %v1212 = vsub.f32 %v992, %v1180
        %v1213 = vsub.f32 %v1041, %v1181
        %v1214 = vsub.f32 %v995, %v1182
        %v1215 = vsub.f32 %v1044, %v1183
        %v1216 = vsub.f32 %v997, %v1184
        %v1217 = vsub.f32 %v1046, %v1185
        %v1218 = vsub.f32 %v1000, %v1186
        %v1219 = vsub.f32 %v1049, %v1187
        %v1220 = vsub.f32 %v1002, %v1188
        %v1221 = vsub.f32 %v1051, %v1189
        %v1222 = vsub.f32 %v1005, %v1190
        %v1223 = vsub.f32 %v1054, %v1191
        %v1224 = vsub.f32 %v1007, %v1192
        %v1225 = vsub.f32 %v1056, %v1193
        %v1226 = vsub.f32 %v1010, %v1194
        %v1227 = vsub.f32 %v1059, %v1195
        %v1228 = vsub.f32 %v1012, %v1196
        %v1229 = vsub.f32 %v1061, %v1197
        %v1230 = vsub.f32 %v1015, %v1198
        %v1231 = vsub.f32 %v1064, %v1199
        %v1232 = vsub.f32 %v1017, %v1200
        %v1233 = vsub.f32 %v1066, %v1201
        %v1234 = vmul.f32 %v1202, 0.35355338
        %v1235 = vmul.f32 %v1203, 0.35355338
        %v1236 = vmul.f32 %v1204, 0.35355338
        %v1237 = vmul.f32 %v1205, 0.35355338
        %v1238 = vmul.f32 %v1206, 0.35355338
        %v1239 = vmul.f32 %v1207, 0.35355338
        %v1240 = vmul.f32 %v1208, 0.35355338
        %v1241 = vmul.f32 %v1209, 0.35355338
        %v1242 = vmul.f32 %v1210, 0.35355338
        %v1243 = vmul.f32 %v1211, 0.35355338
        %v1244 = vmul.f32 %v1212, 0.35355338
        %v1245 = vmul.f32 %v1213, 0.35355338
        %v1246 = vmul.f32 %v1214, 0.35355338
        %v1247 = vmul.f32 %v1215, 0.35355338
        %v1248 = vmul.f32 %v1216, 0.35355338
        %v1249 = vmul.f32 %v1217, 0.35355338
        %v1250 = vmul.f32 %v1218, 0.35355338
        %v1251 = vmul.f32 %v1219, 0.35355338
        %v1252 = vmul.f32 %v1220, 0.35355338
        %v1253 = vmul.f32 %v1221, 0.35355338
        %v1254 = vmul.f32 %v1222, 0.35355338
        %v1255 = vmul.f32 %v1223, 0.35355338
        %v1256 = vmul.f32 %v1224, 0.35355338
        %v1257 = vmul.f32 %v1225, 0.35355338
        %v1258 = vmul.f32 %v1226, 0.35355338
        %v1259 = vmul.f32 %v1227, 0.35355338
        %v1260 = vmul.f32 %v1228, 0.35355338
        %v1261 = vmul.f32 %v1229, 0.35355338
        %v1262 = vmul.f32 %v1230, 0.35355338
        %v1263 = vmul.f32 %v1231, 0.35355338
        %v1264 = vmul.f32 %v1232, 0.35355338
        %v1265 = vmul.f32 %v1233, 0.35355338
        %v1266 = vld [vmem:[#allocation4] sm:$0xff]
        %v1267 = vld [vmem:[#allocation4 + $0x8] sm:$0xff]
        %v1268 = vld [vmem:[#allocation4 + $0x10] sm:$0xff]
        %v1269 = vld [vmem:[#allocation4 + $0x18] sm:$0xff]
        %v1270 = vld [vmem:[#allocation4 + $0x20] sm:$0xff]
        %v1271 = vld [vmem:[#allocation4 + $0x28] sm:$0xff]
        %v1272 = vld [vmem:[#allocation4 + $0x30] sm:$0xff]
        %v1273 = vld [vmem:[#allocation4 + $0x38] sm:$0xff]
        %v1274 = vld [vmem:[#allocation4 + $0x40] sm:$0xff]
        %v1275 = vld [vmem:[#allocation4 + $0x48] sm:$0xff]
        %v1276 = vld [vmem:[#allocation4 + $0x50] sm:$0xff]
        %v1277 = vld [vmem:[#allocation4 + $0x58] sm:$0xff]
        %v1278 = vld [vmem:[#allocation4 + $0x60] sm:$0xff]
        %v1279 = vld [vmem:[#allocation4 + $0x68] sm:$0xff]
        %v1280 = vld [vmem:[#allocation4 + $0x70] sm:$0xff]
        %v1281 = vld [vmem:[#allocation4 + $0x78] sm:$0xff]
        %v1282 = vmax.f32 %v1234, %v1235
        %1283 = vmax.xlane.f32.xlu0 %v1282
        %v1284 = vpop.xlane.xlu0 %1283
        %v1285 = vmax.f32 %v1236, %v1237
        %1286 = vmax.xlane.f32.xlu0 %v1285
        %v1287 = vpop.xlane.xlu0 %1286
        %v1288 = vmax.f32 %v1238, %v1239
        %1289 = vmax.xlane.f32.xlu0 %v1288
        %v1290 = vpop.xlane.xlu0 %1289
        %v1291 = vmax.f32 %v1240, %v1241
        %1292 = vmax.xlane.f32.xlu0 %v1291
        %v1293 = vpop.xlane.xlu0 %1292
        %v1294 = vmax.f32 %v1242, %v1243
        %1295 = vmax.xlane.f32.xlu0 %v1294
        %v1296 = vpop.xlane.xlu0 %1295
        %v1297 = vmax.f32 %v1244, %v1245
        %1298 = vmax.xlane.f32.xlu0 %v1297
        %v1299 = vpop.xlane.xlu0 %1298
        %v1300 = vmax.f32 %v1246, %v1247
        %1301 = vmax.xlane.f32.xlu0 %v1300
        %v1302 = vpop.xlane.xlu0 %1301
        %v1303 = vmax.f32 %v1248, %v1249
        %1304 = vmax.xlane.f32.xlu0 %v1303
        %v1305 = vpop.xlane.xlu0 %1304
        %v1306 = vmax.f32 %v1250, %v1251
        %1307 = vmax.xlane.f32.xlu0 %v1306
        %v1308 = vpop.xlane.xlu0 %1307
        %v1309 = vmax.f32 %v1252, %v1253
        %1310 = vmax.xlane.f32.xlu0 %v1309
        %v1311 = vpop.xlane.xlu0 %1310
        %v1312 = vmax.f32 %v1254, %v1255
        %1313 = vmax.xlane.f32.xlu0 %v1312
        %v1314 = vpop.xlane.xlu0 %1313
        %v1315 = vmax.f32 %v1256, %v1257
        %1316 = vmax.xlane.f32.xlu0 %v1315
        %v1317 = vpop.xlane.xlu0 %1316
        %v1318 = vmax.f32 %v1258, %v1259
        %1319 = vmax.xlane.f32.xlu0 %v1318
        %v1320 = vpop.xlane.xlu0 %1319
        %v1321 = vmax.f32 %v1260, %v1261
        %1322 = vmax.xlane.f32.xlu0 %v1321
        %v1323 = vpop.xlane.xlu0 %1322
        %v1324 = vmax.f32 %v1262, %v1263
        %1325 = vmax.xlane.f32.xlu0 %v1324
        %v1326 = vpop.xlane.xlu0 %1325
        %v1327 = vmax.f32 %v1264, %v1265
        %1328 = vmax.xlane.f32.xlu0 %v1327
        %v1329 = vpop.xlane.xlu0 %1328
        %v1330 = vmax.f32 %v1266, %v1284
        %v1331 = vmax.f32 %v1267, %v1287
        %v1332 = vmax.f32 %v1268, %v1290
        %v1333 = vmax.f32 %v1269, %v1293
        %v1334 = vmax.f32 %v1270, %v1296
        %v1335 = vmax.f32 %v1271, %v1299
        %v1336 = vmax.f32 %v1272, %v1302
        %v1337 = vmax.f32 %v1273, %v1305
        %v1338 = vmax.f32 %v1274, %v1308
        %v1339 = vmax.f32 %v1275, %v1311
        %v1340 = vmax.f32 %v1276, %v1314
        %v1341 = vmax.f32 %v1277, %v1317
        %v1342 = vmax.f32 %v1278, %v1320
        %v1343 = vmax.f32 %v1279, %v1323
        %v1344 = vmax.f32 %v1280, %v1326
        %v1345 = vmax.f32 %v1281, %v1329
        %v1346 = vsub.f32 %v1266, %v1330
        %v1347 = vsub.f32 %v1267, %v1331
        %v1348 = vsub.f32 %v1268, %v1332
        %v1349 = vsub.f32 %v1269, %v1333
        %v1350 = vsub.f32 %v1270, %v1334
        %v1351 = vsub.f32 %v1271, %v1335
        %v1352 = vsub.f32 %v1272, %v1336
        %v1353 = vsub.f32 %v1273, %v1337
        %v1354 = vsub.f32 %v1274, %v1338
        %v1355 = vsub.f32 %v1275, %v1339
        %v1356 = vsub.f32 %v1276, %v1340
        %v1357 = vsub.f32 %v1277, %v1341
        %v1358 = vsub.f32 %v1278, %v1342
        %v1359 = vsub.f32 %v1279, %v1343
        %v1360 = vsub.f32 %v1280, %v1344
        %v1361 = vsub.f32 %v1281, %v1345
        %v1362 = vmul.f32 %v1346, 1.442695
        %v1363 = vpow.pop %v1362
        %v1364 = vmul.f32 %v1347, 1.442695
        %v1365 = vpow.pop %v1364
        %v1366 = vmul.f32 %v1348, 1.442695
        %v1367 = vpow.pop %v1366
        %v1368 = vmul.f32 %v1349, 1.442695
        %v1369 = vpow.pop %v1368
        %v1370 = vmul.f32 %v1350, 1.442695
        %v1371 = vpow.pop %v1370
        %v1372 = vmul.f32 %v1351, 1.442695
        %v1373 = vpow.pop %v1372
        %v1374 = vmul.f32 %v1352, 1.442695
        %v1375 = vpow.pop %v1374
        %v1376 = vmul.f32 %v1353, 1.442695
        %v1377 = vpow.pop %v1376
        %v1378 = vmul.f32 %v1354, 1.442695
        %v1379 = vpow.pop %v1378
        %v1380 = vmul.f32 %v1355, 1.442695
        %v1381 = vpow.pop %v1380
        %v1382 = vmul.f32 %v1356, 1.442695
        %v1383 = vpow.pop %v1382
        %v1384 = vmul.f32 %v1357, 1.442695
        %v1385 = vpow.pop %v1384
        %v1386 = vmul.f32 %v1358, 1.442695
        %v1387 = vpow.pop %v1386
        %v1388 = vmul.f32 %v1359, 1.442695
        %v1389 = vpow.pop %v1388
        %v1390 = vmul.f32 %v1360, 1.442695
        %v1391 = vpow.pop %v1390
        %v1392 = vmul.f32 %v1361, 1.442695
        %v1393 = vpow.pop %v1392
        %1395 = vset.pattern.permute.xlu0 0
        %1396 = vperm.xlu0 %1395, %v1330
        %v1397 = vpop.permute.xlu0 %1396
        %1400 = vset.pattern.permute.xlu0 0
        %1401 = vperm.xlu0 %1400, %v1331
        %v1402 = vpop.permute.xlu0 %1401
        %1405 = vset.pattern.permute.xlu0 0
        %1406 = vperm.xlu0 %1405, %v1332
        %v1407 = vpop.permute.xlu0 %1406
        %1410 = vset.pattern.permute.xlu0 0
        %1411 = vperm.xlu0 %1410, %v1333
        %v1412 = vpop.permute.xlu0 %1411
        %1415 = vset.pattern.permute.xlu0 0
        %1416 = vperm.xlu0 %1415, %v1334
        %v1417 = vpop.permute.xlu0 %1416
        %1420 = vset.pattern.permute.xlu0 0
        %1421 = vperm.xlu0 %1420, %v1335
        %v1422 = vpop.permute.xlu0 %1421
        %1425 = vset.pattern.permute.xlu0 0
        %1426 = vperm.xlu0 %1425, %v1336
        %v1427 = vpop.permute.xlu0 %1426
        %1430 = vset.pattern.permute.xlu0 0
        %1431 = vperm.xlu0 %1430, %v1337
        %v1432 = vpop.permute.xlu0 %1431
        %1435 = vset.pattern.permute.xlu0 0
        %1436 = vperm.xlu0 %1435, %v1338
        %v1437 = vpop.permute.xlu0 %1436
        %1440 = vset.pattern.permute.xlu0 0
        %1441 = vperm.xlu0 %1440, %v1339
        %v1442 = vpop.permute.xlu0 %1441
        %1445 = vset.pattern.permute.xlu0 0
        %1446 = vperm.xlu0 %1445, %v1340
        %v1447 = vpop.permute.xlu0 %1446
        %1450 = vset.pattern.permute.xlu0 0
        %1451 = vperm.xlu0 %1450, %v1341
        %v1452 = vpop.permute.xlu0 %1451
        %1455 = vset.pattern.permute.xlu0 0
        %1456 = vperm.xlu0 %1455, %v1342
        %v1457 = vpop.permute.xlu0 %1456
        %1460 = vset.pattern.permute.xlu0 0
        %1461 = vperm.xlu0 %1460, %v1343
        %v1462 = vpop.permute.xlu0 %1461
        %1465 = vset.pattern.permute.xlu0 0
        %1466 = vperm.xlu0 %1465, %v1344
        %v1467 = vpop.permute.xlu0 %1466
        %1470 = vset.pattern.permute.xlu0 0
        %1471 = vperm.xlu0 %1470, %v1345
        %v1472 = vpop.permute.xlu0 %1471
        %v1474 = vsub.f32 %v1234, %v1397
        %v1475 = vsub.f32 %v1235, %v1397
        %v1476 = vsub.f32 %v1236, %v1402
        %v1477 = vsub.f32 %v1237, %v1402
        %v1478 = vsub.f32 %v1238, %v1407
        %v1479 = vsub.f32 %v1239, %v1407
        %v1480 = vsub.f32 %v1240, %v1412
        %v1481 = vsub.f32 %v1241, %v1412
        %v1482 = vsub.f32 %v1242, %v1417
        %v1483 = vsub.f32 %v1243, %v1417
        %v1484 = vsub.f32 %v1244, %v1422
        %v1485 = vsub.f32 %v1245, %v1422
        %v1486 = vsub.f32 %v1246, %v1427
        %v1487 = vsub.f32 %v1247, %v1427
        %v1488 = vsub.f32 %v1248, %v1432
        %v1489 = vsub.f32 %v1249, %v1432
        %v1490 = vsub.f32 %v1250, %v1437
        %v1491 = vsub.f32 %v1251, %v1437
        %v1492 = vsub.f32 %v1252, %v1442
        %v1493 = vsub.f32 %v1253, %v1442
        %v1494 = vsub.f32 %v1254, %v1447
        %v1495 = vsub.f32 %v1255, %v1447
        %v1496 = vsub.f32 %v1256, %v1452
        %v1497 = vsub.f32 %v1257, %v1452
        %v1498 = vsub.f32 %v1258, %v1457
        %v1499 = vsub.f32 %v1259, %v1457
        %v1500 = vsub.f32 %v1260, %v1462
        %v1501 = vsub.f32 %v1261, %v1462
        %v1502 = vsub.f32 %v1262, %v1467
        %v1503 = vsub.f32 %v1263, %v1467
        %v1504 = vsub.f32 %v1264, %v1472
        %v1505 = vsub.f32 %v1265, %v1472
        %v1506 = vmul.f32 %v1474, 1.442695
        %v1507 = vpow.pop %v1506
        %v1508 = vmul.f32 %v1475, 1.442695
        %v1509 = vpow.pop %v1508
        %v1510 = vmul.f32 %v1476, 1.442695
        %v1511 = vpow.pop %v1510
        %v1512 = vmul.f32 %v1477, 1.442695
        %v1513 = vpow.pop %v1512
        %v1514 = vmul.f32 %v1478, 1.442695
        %v1515 = vpow.pop %v1514
        %v1516 = vmul.f32 %v1479, 1.442695
        %v1517 = vpow.pop %v1516
        %v1518 = vmul.f32 %v1480, 1.442695
        %v1519 = vpow.pop %v1518
        %v1520 = vmul.f32 %v1481, 1.442695
        %v1521 = vpow.pop %v1520
        %v1522 = vmul.f32 %v1482, 1.442695
        %v1523 = vpow.pop %v1522
        %v1524 = vmul.f32 %v1483, 1.442695
        %v1525 = vpow.pop %v1524
        %v1526 = vmul.f32 %v1484, 1.442695
        %v1527 = vpow.pop %v1526
        %v1528 = vmul.f32 %v1485, 1.442695
        %v1529 = vpow.pop %v1528
        %v1530 = vmul.f32 %v1486, 1.442695
        %v1531 = vpow.pop %v1530
        %v1532 = vmul.f32 %v1487, 1.442695
        %v1533 = vpow.pop %v1532
        %v1534 = vmul.f32 %v1488, 1.442695
        %v1535 = vpow.pop %v1534
        %v1536 = vmul.f32 %v1489, 1.442695
        %v1537 = vpow.pop %v1536
        %v1538 = vmul.f32 %v1490, 1.442695
        %v1539 = vpow.pop %v1538
        %v1540 = vmul.f32 %v1491, 1.442695
        %v1541 = vpow.pop %v1540
        %v1542 = vmul.f32 %v1492, 1.442695
        %v1543 = vpow.pop %v1542
        %v1544 = vmul.f32 %v1493, 1.442695
        %v1545 = vpow.pop %v1544
        %v1546 = vmul.f32 %v1494, 1.442695
        %v1547 = vpow.pop %v1546
        %v1548 = vmul.f32 %v1495, 1.442695
        %v1549 = vpow.pop %v1548
        %v1550 = vmul.f32 %v1496, 1.442695
        %v1551 = vpow.pop %v1550
        %v1552 = vmul.f32 %v1497, 1.442695
        %v1553 = vpow.pop %v1552
        %v1554 = vmul.f32 %v1498, 1.442695
        %v1555 = vpow.pop %v1554
        %v1556 = vmul.f32 %v1499, 1.442695
        %v1557 = vpow.pop %v1556
        %v1558 = vmul.f32 %v1500, 1.442695
        %v1559 = vpow.pop %v1558
        %v1560 = vmul.f32 %v1501, 1.442695
        %v1561 = vpow.pop %v1560
        %v1562 = vmul.f32 %v1502, 1.442695
        %v1563 = vpow.pop %v1562
        %v1564 = vmul.f32 %v1503, 1.442695
        %v1565 = vpow.pop %v1564
        %v1566 = vmul.f32 %v1504, 1.442695
        %v1567 = vpow.pop %v1566
        %v1568 = vmul.f32 %v1505, 1.442695
        %v1569 = vpow.pop %v1568
        %v1570 = vld [vmem:[#allocation5] sm:$0xff]
        %v1571 = vld [vmem:[#allocation5 + $0x8] sm:$0xff]
        %v1572 = vld [vmem:[#allocation5 + $0x10] sm:$0xff]
        %v1573 = vld [vmem:[#allocation5 + $0x18] sm:$0xff]
        %v1574 = vld [vmem:[#allocation5 + $0x20] sm:$0xff]
        %v1575 = vld [vmem:[#allocation5 + $0x28] sm:$0xff]
        %v1576 = vld [vmem:[#allocation5 + $0x30] sm:$0xff]
        %v1577 = vld [vmem:[#allocation5 + $0x38] sm:$0xff]
        %v1578 = vld [vmem:[#allocation5 + $0x40] sm:$0xff]
        %v1579 = vld [vmem:[#allocation5 + $0x48] sm:$0xff]
        %v1580 = vld [vmem:[#allocation5 + $0x50] sm:$0xff]
        %v1581 = vld [vmem:[#allocation5 + $0x58] sm:$0xff]
        %v1582 = vld [vmem:[#allocation5 + $0x60] sm:$0xff]
        %v1583 = vld [vmem:[#allocation5 + $0x68] sm:$0xff]
        %v1584 = vld [vmem:[#allocation5 + $0x70] sm:$0xff]
        %v1585 = vld [vmem:[#allocation5 + $0x78] sm:$0xff]
        %v1586 = vmul.f32 %v1363, %v1570
        %v1587 = vmul.f32 %v1365, %v1571
        %v1588 = vmul.f32 %v1367, %v1572
        %v1589 = vmul.f32 %v1369, %v1573
        %v1590 = vmul.f32 %v1371, %v1574
        %v1591 = vmul.f32 %v1373, %v1575
        %v1592 = vmul.f32 %v1375, %v1576
        %v1593 = vmul.f32 %v1377, %v1577
        %v1594 = vmul.f32 %v1379, %v1578
        %v1595 = vmul.f32 %v1381, %v1579
        %v1596 = vmul.f32 %v1383, %v1580
        %v1597 = vmul.f32 %v1385, %v1581
        %v1598 = vmul.f32 %v1387, %v1582
        %v1599 = vmul.f32 %v1389, %v1583
        %v1600 = vmul.f32 %v1391, %v1584
        %v1601 = vmul.f32 %v1393, %v1585
        %v1602 = vadd.f32 %v1507, %v1509
        %1603 = vadd.xlane.f32.xlu0 %v1602
        %v1604 = vpop.xlane.xlu0 %1603
        %v1605 = vadd.f32 %v1511, %v1513
        %1606 = vadd.xlane.f32.xlu0 %v1605
        %v1607 = vpop.xlane.xlu0 %1606
        %v1608 = vadd.f32 %v1515, %v1517
        %1609 = vadd.xlane.f32.xlu0 %v1608
        %v1610 = vpop.xlane.xlu0 %1609
        %v1611 = vadd.f32 %v1519, %v1521
        %1612 = vadd.xlane.f32.xlu0 %v1611
        %v1613 = vpop.xlane.xlu0 %1612
        %v1614 = vadd.f32 %v1523, %v1525
        %1615 = vadd.xlane.f32.xlu0 %v1614
        %v1616 = vpop.xlane.xlu0 %1615
        %v1617 = vadd.f32 %v1527, %v1529
        %1618 = vadd.xlane.f32.xlu0 %v1617
        %v1619 = vpop.xlane.xlu0 %1618
        %v1620 = vadd.f32 %v1531, %v1533
        %1621 = vadd.xlane.f32.xlu0 %v1620
        %v1622 = vpop.xlane.xlu0 %1621
        %v1623 = vadd.f32 %v1535, %v1537
        %1624 = vadd.xlane.f32.xlu0 %v1623
        %v1625 = vpop.xlane.xlu0 %1624
        %v1626 = vadd.f32 %v1539, %v1541
        %1627 = vadd.xlane.f32.xlu0 %v1626
        %v1628 = vpop.xlane.xlu0 %1627
        %v1629 = vadd.f32 %v1543, %v1545
        %1630 = vadd.xlane.f32.xlu0 %v1629
        %v1631 = vpop.xlane.xlu0 %1630
        %v1632 = vadd.f32 %v1547, %v1549
        %1633 = vadd.xlane.f32.xlu0 %v1632
        %v1634 = vpop.xlane.xlu0 %1633
        %v1635 = vadd.f32 %v1551, %v1553
        %1636 = vadd.xlane.f32.xlu0 %v1635
        %v1637 = vpop.xlane.xlu0 %1636
        %v1638 = vadd.f32 %v1555, %v1557
        %1639 = vadd.xlane.f32.xlu0 %v1638
        %v1640 = vpop.xlane.xlu0 %1639
        %v1641 = vadd.f32 %v1559, %v1561
        %1642 = vadd.xlane.f32.xlu0 %v1641
        %v1643 = vpop.xlane.xlu0 %1642
        %v1644 = vadd.f32 %v1563, %v1565
        %1645 = vadd.xlane.f32.xlu0 %v1644
        %v1646 = vpop.xlane.xlu0 %1645
        %v1647 = vadd.f32 %v1567, %v1569
        %1648 = vadd.xlane.f32.xlu0 %v1647
        %v1649 = vpop.xlane.xlu0 %1648
        %v1650 = vadd.f32 %v1586, %v1604
        %v1651 = vadd.f32 %v1587, %v1607
        %v1652 = vadd.f32 %v1588, %v1610
        %v1653 = vadd.f32 %v1589, %v1613
        %v1654 = vadd.f32 %v1590, %v1616
        %v1655 = vadd.f32 %v1591, %v1619
        %v1656 = vadd.f32 %v1592, %v1622
        %v1657 = vadd.f32 %v1593, %v1625
        %v1658 = vadd.f32 %v1594, %v1628
        %v1659 = vadd.f32 %v1595, %v1631
        %v1660 = vadd.f32 %v1596, %v1634
        %v1661 = vadd.f32 %v1597, %v1637
        %v1662 = vadd.f32 %v1598, %v1640
        %v1663 = vadd.f32 %v1599, %v1643
        %v1664 = vadd.f32 %v1600, %v1646
        %v1665 = vadd.f32 %v1601, %v1649
        %vm1666 = vcmask 7168
        %1667 = vst.msk [vmem:[#allocation5] sm:$0xff] %vm1666, %v1650
        %1668 = vst.msk [vmem:[#allocation5 + $0x8] sm:$0xff] %vm1666, %v1651
        %1669 = vst.msk [vmem:[#allocation5 + $0x10] sm:$0xff] %vm1666, %v1652
        %1670 = vst.msk [vmem:[#allocation5 + $0x18] sm:$0xff] %vm1666, %v1653
        %1671 = vst.msk [vmem:[#allocation5 + $0x20] sm:$0xff] %vm1666, %v1654
        %1672 = vst.msk [vmem:[#allocation5 + $0x28] sm:$0xff] %vm1666, %v1655
        %1673 = vst.msk [vmem:[#allocation5 + $0x30] sm:$0xff] %vm1666, %v1656
        %1674 = vst.msk [vmem:[#allocation5 + $0x38] sm:$0xff] %vm1666, %v1657
        %1675 = vst.msk [vmem:[#allocation5 + $0x40] sm:$0xff] %vm1666, %v1658
        %1676 = vst.msk [vmem:[#allocation5 + $0x48] sm:$0xff] %vm1666, %v1659
        %1677 = vst.msk [vmem:[#allocation5 + $0x50] sm:$0xff] %vm1666, %v1660
        %1678 = vst.msk [vmem:[#allocation5 + $0x58] sm:$0xff] %vm1666, %v1661
        %1679 = vst.msk [vmem:[#allocation5 + $0x60] sm:$0xff] %vm1666, %v1662
        %1680 = vst.msk [vmem:[#allocation5 + $0x68] sm:$0xff] %vm1666, %v1663
        %1681 = vst.msk [vmem:[#allocation5 + $0x70] sm:$0xff] %vm1666, %v1664
        %1682 = vst.msk [vmem:[#allocation5 + $0x78] sm:$0xff] %vm1666, %v1665
        %v1683 = vld [vmem:[#allocation8] sm:$0xff]
        %v1684 = vld [vmem:[#allocation8 + $0x8] sm:$0xff]
        %v1685 = vld [vmem:[#allocation8 + $0x10] sm:$0xff]
        %v1686 = vld [vmem:[#allocation8 + $0x18] sm:$0xff]
        %v1687 = vld [vmem:[#allocation8 + $0x20] sm:$0xff]
        %v1688 = vld [vmem:[#allocation8 + $0x28] sm:$0xff]
        %v1689 = vld [vmem:[#allocation8 + $0x30] sm:$0xff]
        %v1690 = vld [vmem:[#allocation8 + $0x38] sm:$0xff]
        %v1691 = vld [vmem:[#allocation8 + $0x40] sm:$0xff]
        %v1692 = vld [vmem:[#allocation8 + $0x48] sm:$0xff]
        %v1693 = vld [vmem:[#allocation8 + $0x50] sm:$0xff]
        %v1694 = vld [vmem:[#allocation8 + $0x58] sm:$0xff]
        %v1695 = vld [vmem:[#allocation8 + $0x60] sm:$0xff]
        %v1696 = vld [vmem:[#allocation8 + $0x68] sm:$0xff]
        %v1697 = vld [vmem:[#allocation8 + $0x70] sm:$0xff]
        %v1698 = vld [vmem:[#allocation8 + $0x78] sm:$0xff]
        %1700 = vset.pattern.permute.xlu0 0
        %1701 = vperm.xlu0 %1700, %v1363
        %v1702 = vpop.permute.xlu0 %1701
        %1705 = vset.pattern.permute.xlu0 0
        %1706 = vperm.xlu0 %1705, %v1365
        %v1707 = vpop.permute.xlu0 %1706
        %1710 = vset.pattern.permute.xlu0 0
        %1711 = vperm.xlu0 %1710, %v1367
        %v1712 = vpop.permute.xlu0 %1711
        %1715 = vset.pattern.permute.xlu0 0
        %1716 = vperm.xlu0 %1715, %v1369
        %v1717 = vpop.permute.xlu0 %1716
        %1720 = vset.pattern.permute.xlu0 0
        %1721 = vperm.xlu0 %1720, %v1371
        %v1722 = vpop.permute.xlu0 %1721
        %1725 = vset.pattern.permute.xlu0 0
        %1726 = vperm.xlu0 %1725, %v1373
        %v1727 = vpop.permute.xlu0 %1726
        %1730 = vset.pattern.permute.xlu0 0
        %1731 = vperm.xlu0 %1730, %v1375
        %v1732 = vpop.permute.xlu0 %1731
        %1735 = vset.pattern.permute.xlu0 0
        %1736 = vperm.xlu0 %1735, %v1377
        %v1737 = vpop.permute.xlu0 %1736
        %1740 = vset.pattern.permute.xlu0 0
        %1741 = vperm.xlu0 %1740, %v1379
        %v1742 = vpop.permute.xlu0 %1741
        %1745 = vset.pattern.permute.xlu0 0
        %1746 = vperm.xlu0 %1745, %v1381
        %v1747 = vpop.permute.xlu0 %1746
        %1750 = vset.pattern.permute.xlu0 0
        %1751 = vperm.xlu0 %1750, %v1383
        %v1752 = vpop.permute.xlu0 %1751
        %1755 = vset.pattern.permute.xlu0 0
        %1756 = vperm.xlu0 %1755, %v1385
        %v1757 = vpop.permute.xlu0 %1756
        %1760 = vset.pattern.permute.xlu0 0
        %1761 = vperm.xlu0 %1760, %v1387
        %v1762 = vpop.permute.xlu0 %1761
        %1765 = vset.pattern.permute.xlu0 0
        %1766 = vperm.xlu0 %1765, %v1389
        %v1767 = vpop.permute.xlu0 %1766
        %1770 = vset.pattern.permute.xlu0 0
        %1771 = vperm.xlu0 %1770, %v1391
        %v1772 = vpop.permute.xlu0 %1771
        %1775 = vset.pattern.permute.xlu0 0
        %1776 = vperm.xlu0 %1775, %v1393
        %v1777 = vpop.permute.xlu0 %1776
        %v1779 = vmul.f32 %v1702, %v1683
        %v1780 = vmul.f32 %v1707, %v1684
        %v1781 = vmul.f32 %v1712, %v1685
        %v1782 = vmul.f32 %v1717, %v1686
        %v1783 = vmul.f32 %v1722, %v1687
        %v1784 = vmul.f32 %v1727, %v1688
        %v1785 = vmul.f32 %v1732, %v1689
        %v1786 = vmul.f32 %v1737, %v1690
        %v1787 = vmul.f32 %v1742, %v1691
        %v1788 = vmul.f32 %v1747, %v1692
        %v1789 = vmul.f32 %v1752, %v1693
        %v1790 = vmul.f32 %v1757, %v1694
        %v1791 = vmul.f32 %v1762, %v1695
        %v1792 = vmul.f32 %v1767, %v1696
        %v1793 = vmul.f32 %v1772, %v1697
        %v1794 = vmul.f32 %v1777, %v1698
        %v1795 = vpack.c.bf16 %v1511, %v1507
        %v1796 = vpack.c.bf16 %v1513, %v1509
        %v1797 = vpack.c.bf16 %v1519, %v1515
        %v1798 = vpack.c.bf16 %v1521, %v1517
        %v1799 = vpack.c.bf16 %v1527, %v1523
        %v1800 = vpack.c.bf16 %v1529, %v1525
        %v1801 = vpack.c.bf16 %v1535, %v1531
        %v1802 = vpack.c.bf16 %v1537, %v1533
        %v1803 = vpack.c.bf16 %v1543, %v1539
        %v1804 = vpack.c.bf16 %v1545, %v1541
        %v1805 = vpack.c.bf16 %v1551, %v1547
        %v1806 = vpack.c.bf16 %v1553, %v1549
        %v1807 = vpack.c.bf16 %v1559, %v1555
        %v1808 = vpack.c.bf16 %v1561, %v1557
        %v1809 = vpack.c.bf16 %v1567, %v1563
        %v1810 = vpack.c.bf16 %v1569, %v1565
        %1811 = vmatpush.bf16.xpose.msra.mxu0 0
        %1812 = vmatpush.bf16.xpose.msra.mxu0 0
        %1813 = vmatpush.bf16.xpose.msra.mxu0 0
        %1814 = vmatpush.bf16.xpose.msra.mxu0 0
        %1815 = vmatpush.bf16.xpose.msra.mxu0 0
        %1816 = vmatpush.bf16.xpose.msra.mxu0 0
        %1817 = vmatpush.bf16.xpose.msra.mxu0 0
        %1818 = vmatpush.bf16.xpose.msra.mxu0 %v941
        %1819 = vmatmul.bf16.gmra.mxu0 %v1795
        %v1820 = vpop.f32.mrf.mxu0
        %v1821 = vadd.f32 0.0, %v1820
        %v1822 = vpop.f32.mrf.mxu0
        %v1823 = vadd.f32 0.0, %v1822
        %1824 = vmatmul.bf16.gmra.mxu0 %v1797
        %v1825 = vpop.f32.mrf.mxu0
        %v1826 = vadd.f32 0.0, %v1825
        %v1827 = vpop.f32.mrf.mxu0
        %v1828 = vadd.f32 0.0, %v1827
        %1829 = vmatmul.bf16.gmra.mxu0 %v1799
        %v1830 = vpop.f32.mrf.mxu0
        %v1831 = vadd.f32 0.0, %v1830
        %v1832 = vpop.f32.mrf.mxu0
        %v1833 = vadd.f32 0.0, %v1832
        %1834 = vmatmul.bf16.gmra.mxu0 %v1801
        %v1835 = vpop.f32.mrf.mxu0
        %v1836 = vadd.f32 0.0, %v1835
        %v1837 = vpop.f32.mrf.mxu0
        %v1838 = vadd.f32 0.0, %v1837
        %1839 = vmatmul.bf16.gmra.mxu0 %v1803
        %v1840 = vpop.f32.mrf.mxu0
        %v1841 = vadd.f32 0.0, %v1840
        %v1842 = vpop.f32.mrf.mxu0
        %v1843 = vadd.f32 0.0, %v1842
        %1844 = vmatmul.bf16.gmra.mxu0 %v1805
        %v1845 = vpop.f32.mrf.mxu0
        %v1846 = vadd.f32 0.0, %v1845
        %v1847 = vpop.f32.mrf.mxu0
        %v1848 = vadd.f32 0.0, %v1847
        %1849 = vmatmul.bf16.gmra.mxu0 %v1807
        %v1850 = vpop.f32.mrf.mxu0
        %v1851 = vadd.f32 0.0, %v1850
        %v1852 = vpop.f32.mrf.mxu0
        %v1853 = vadd.f32 0.0, %v1852
        %1854 = vmatmul.bf16.gmra.mxu0 %v1809
        %v1855 = vpop.f32.mrf.mxu0
        %v1856 = vadd.f32 0.0, %v1855
        %v1857 = vpop.f32.mrf.mxu0
        %v1858 = vadd.f32 0.0, %v1857
        %1859 = vdwg.mxu0
        %1860 = vmatpush.bf16.xpose.msra.mxu0 0
        %1861 = vmatpush.bf16.xpose.msra.mxu0 0
        %1862 = vmatpush.bf16.xpose.msra.mxu0 0
        %1863 = vmatpush.bf16.xpose.msra.mxu0 0
        %1864 = vmatpush.bf16.xpose.msra.mxu0 0
        %1865 = vmatpush.bf16.xpose.msra.mxu0 0
        %1866 = vmatpush.bf16.xpose.msra.mxu0 0
        %1867 = vmatpush.bf16.xpose.msra.mxu0 %v942
        %1868 = vmatmul.bf16.gmra.mxu0 %v1796
        %v1869 = vpop.f32.mrf.mxu0
        %v1870 = vadd.f32 %v1821, %v1869
        %v1871 = vpop.f32.mrf.mxu0
        %v1872 = vadd.f32 %v1823, %v1871
        %1873 = vmatmul.bf16.gmra.mxu0 %v1798
        %v1874 = vpop.f32.mrf.mxu0
        %v1875 = vadd.f32 %v1826, %v1874
        %v1876 = vpop.f32.mrf.mxu0
        %v1877 = vadd.f32 %v1828, %v1876
        %1878 = vmatmul.bf16.gmra.mxu0 %v1800
        %v1879 = vpop.f32.mrf.mxu0
        %v1880 = vadd.f32 %v1831, %v1879
        %v1881 = vpop.f32.mrf.mxu0
        %v1882 = vadd.f32 %v1833, %v1881
        %1883 = vmatmul.bf16.gmra.mxu0 %v1802
        %v1884 = vpop.f32.mrf.mxu0
        %v1885 = vadd.f32 %v1836, %v1884
        %v1886 = vpop.f32.mrf.mxu0
        %v1887 = vadd.f32 %v1838, %v1886
        %1888 = vmatmul.bf16.gmra.mxu0 %v1804
        %v1889 = vpop.f32.mrf.mxu0
        %v1890 = vadd.f32 %v1841, %v1889
        %v1891 = vpop.f32.mrf.mxu0
        %v1892 = vadd.f32 %v1843, %v1891
        %1893 = vmatmul.bf16.gmra.mxu0 %v1806
        %v1894 = vpop.f32.mrf.mxu0
        %v1895 = vadd.f32 %v1846, %v1894
        %v1896 = vpop.f32.mrf.mxu0
        %v1897 = vadd.f32 %v1848, %v1896
        %1898 = vmatmul.bf16.gmra.mxu0 %v1808
        %v1899 = vpop.f32.mrf.mxu0
        %v1900 = vadd.f32 %v1851, %v1899
        %v1901 = vpop.f32.mrf.mxu0
        %v1902 = vadd.f32 %v1853, %v1901
        %1903 = vmatmul.bf16.gmra.mxu0 %v1810
        %v1904 = vpop.f32.mrf.mxu0
        %v1905 = vadd.f32 %v1856, %v1904
        %v1906 = vpop.f32.mrf.mxu0
        %v1907 = vadd.f32 %v1858, %v1906
        %1908 = vdwg.mxu0
        %v1909 = vadd.f32 %v1779, %v1870
        %v1910 = vadd.f32 %v1780, %v1872
        %v1911 = vadd.f32 %v1781, %v1875
        %v1912 = vadd.f32 %v1782, %v1877
        %v1913 = vadd.f32 %v1783, %v1880
        %v1914 = vadd.f32 %v1784, %v1882
        %v1915 = vadd.f32 %v1785, %v1885
        %v1916 = vadd.f32 %v1786, %v1887
        %v1917 = vadd.f32 %v1787, %v1890
        %v1918 = vadd.f32 %v1788, %v1892
        %v1919 = vadd.f32 %v1789, %v1895
        %v1920 = vadd.f32 %v1790, %v1897
        %v1921 = vadd.f32 %v1791, %v1900
        %v1922 = vadd.f32 %v1792, %v1902
        %v1923 = vadd.f32 %v1793, %v1905
        %v1924 = vadd.f32 %v1794, %v1907
        %1925 = vst.msk [vmem:[#allocation8] sm:$0xff] %vm945, %v1909
        %1926 = vst.msk [vmem:[#allocation8 + $0x8] sm:$0xff] %vm945, %v1910
        %1927 = vst.msk [vmem:[#allocation8 + $0x10] sm:$0xff] %vm945, %v1911
        %1928 = vst.msk [vmem:[#allocation8 + $0x18] sm:$0xff] %vm945, %v1912
        %1929 = vst.msk [vmem:[#allocation8 + $0x20] sm:$0xff] %vm945, %v1913
        %1930 = vst.msk [vmem:[#allocation8 + $0x28] sm:$0xff] %vm945, %v1914
        %1931 = vst.msk [vmem:[#allocation8 + $0x30] sm:$0xff] %vm945, %v1915
        %1932 = vst.msk [vmem:[#allocation8 + $0x38] sm:$0xff] %vm945, %v1916
        %1933 = vst.msk [vmem:[#allocation8 + $0x40] sm:$0xff] %vm945, %v1917
        %1934 = vst.msk [vmem:[#allocation8 + $0x48] sm:$0xff] %vm945, %v1918
        %1935 = vst.msk [vmem:[#allocation8 + $0x50] sm:$0xff] %vm945, %v1919
        %1936 = vst.msk [vmem:[#allocation8 + $0x58] sm:$0xff] %vm945, %v1920
        %1937 = vst.msk [vmem:[#allocation8 + $0x60] sm:$0xff] %vm945, %v1921
        %1938 = vst.msk [vmem:[#allocation8 + $0x68] sm:$0xff] %vm945, %v1922
        %1939 = vst.msk [vmem:[#allocation8 + $0x70] sm:$0xff] %vm945, %v1923
        %1940 = vst.msk [vmem:[#allocation8 + $0x78] sm:$0xff] %vm945, %v1924
        %1941 = vst.msk [vmem:[#allocation4] sm:$0xff] %vm1666, %v1330
        %1942 = vst.msk [vmem:[#allocation4 + $0x8] sm:$0xff] %vm1666, %v1331
        %1943 = vst.msk [vmem:[#allocation4 + $0x10] sm:$0xff] %vm1666, %v1332
        %1944 = vst.msk [vmem:[#allocation4 + $0x18] sm:$0xff] %vm1666, %v1333
        %1945 = vst.msk [vmem:[#allocation4 + $0x20] sm:$0xff] %vm1666, %v1334
        %1946 = vst.msk [vmem:[#allocation4 + $0x28] sm:$0xff] %vm1666, %v1335
        %1947 = vst.msk [vmem:[#allocation4 + $0x30] sm:$0xff] %vm1666, %v1336
        %1948 = vst.msk [vmem:[#allocation4 + $0x38] sm:$0xff] %vm1666, %v1337
        %1949 = vst.msk [vmem:[#allocation4 + $0x40] sm:$0xff] %vm1666, %v1338
        %1950 = vst.msk [vmem:[#allocation4 + $0x48] sm:$0xff] %vm1666, %v1339
        %1951 = vst.msk [vmem:[#allocation4 + $0x50] sm:$0xff] %vm1666, %v1340
        %1952 = vst.msk [vmem:[#allocation4 + $0x58] sm:$0xff] %vm1666, %v1341
        %1953 = vst.msk [vmem:[#allocation4 + $0x60] sm:$0xff] %vm1666, %v1342
        %1954 = vst.msk [vmem:[#allocation4 + $0x68] sm:$0xff] %vm1666, %v1343
        %1955 = vst.msk [vmem:[#allocation4 + $0x70] sm:$0xff] %vm1666, %v1344
        %1956 = vst.msk [vmem:[#allocation4 + $0x78] sm:$0xff] %vm1666, %v1345
        %v1957 = vld [vmem:[#allocation6] sm:$0xff]
        %v1958 = vld [vmem:[#allocation6 + $0x8] sm:$0xff]
        %v1959 = vld [vmem:[#allocation6 + $0x10] sm:$0xff]
        %v1960 = vld [vmem:[#allocation6 + $0x18] sm:$0xff]
        %v1961 = vld [vmem:[#allocation6 + $0x20] sm:$0xff]
        %v1962 = vld [vmem:[#allocation6 + $0x28] sm:$0xff]
        %v1963 = vld [vmem:[#allocation6 + $0x30] sm:$0xff]
        %v1964 = vld [vmem:[#allocation6 + $0x38] sm:$0xff]
        %v1965 = vld [vmem:[#allocation6 + $0x40] sm:$0xff]
        %v1966 = vld [vmem:[#allocation6 + $0x48] sm:$0xff]
        %v1967 = vld [vmem:[#allocation6 + $0x50] sm:$0xff]
        %v1968 = vld [vmem:[#allocation6 + $0x58] sm:$0xff]
        %v1969 = vld [vmem:[#allocation6 + $0x60] sm:$0xff]
        %v1970 = vld [vmem:[#allocation6 + $0x68] sm:$0xff]
        %v1971 = vld [vmem:[#allocation6 + $0x70] sm:$0xff]
        %v1972 = vld [vmem:[#allocation6 + $0x78] sm:$0xff]
        %v1973 = vmax.f32 %v980, %v1029
        %1974 = vmax.xlane.f32.xlu0 %v1973
        %v1975 = vpop.xlane.xlu0 %1974
        %v1976 = vmax.f32 %v982, %v1031
        %1977 = vmax.xlane.f32.xlu0 %v1976
        %v1978 = vpop.xlane.xlu0 %1977
        %v1979 = vmax.f32 %v985, %v1034
        %1980 = vmax.xlane.f32.xlu0 %v1979
        %v1981 = vpop.xlane.xlu0 %1980
        %v1982 = vmax.f32 %v987, %v1036
        %1983 = vmax.xlane.f32.xlu0 %v1982
        %v1984 = vpop.xlane.xlu0 %1983
        %v1985 = vmax.f32 %v990, %v1039
        %1986 = vmax.xlane.f32.xlu0 %v1985
        %v1987 = vpop.xlane.xlu0 %1986
        %v1988 = vmax.f32 %v992, %v1041
        %1989 = vmax.xlane.f32.xlu0 %v1988
        %v1990 = vpop.xlane.xlu0 %1989
        %v1991 = vmax.f32 %v995, %v1044
        %1992 = vmax.xlane.f32.xlu0 %v1991
        %v1993 = vpop.xlane.xlu0 %1992
        %v1994 = vmax.f32 %v997, %v1046
        %1995 = vmax.xlane.f32.xlu0 %v1994
        %v1996 = vpop.xlane.xlu0 %1995
        %v1997 = vmax.f32 %v1000, %v1049
        %1998 = vmax.xlane.f32.xlu0 %v1997
        %v1999 = vpop.xlane.xlu0 %1998
        %v2000 = vmax.f32 %v1002, %v1051
        %2001 = vmax.xlane.f32.xlu0 %v2000
        %v2002 = vpop.xlane.xlu0 %2001
        %v2003 = vmax.f32 %v1005, %v1054
        %2004 = vmax.xlane.f32.xlu0 %v2003
        %v2005 = vpop.xlane.xlu0 %2004
        %v2006 = vmax.f32 %v1007, %v1056
        %2007 = vmax.xlane.f32.xlu0 %v2006
        %v2008 = vpop.xlane.xlu0 %2007
        %v2009 = vmax.f32 %v1010, %v1059
        %2010 = vmax.xlane.f32.xlu0 %v2009
        %v2011 = vpop.xlane.xlu0 %2010
        %v2012 = vmax.f32 %v1012, %v1061
        %2013 = vmax.xlane.f32.xlu0 %v2012
        %v2014 = vpop.xlane.xlu0 %2013
        %v2015 = vmax.f32 %v1015, %v1064
        %2016 = vmax.xlane.f32.xlu0 %v2015
        %v2017 = vpop.xlane.xlu0 %2016
        %v2018 = vmax.f32 %v1017, %v1066
        %2019 = vmax.xlane.f32.xlu0 %v2018
        %v2020 = vpop.xlane.xlu0 %2019
        %v2021 = vmax.f32 %v1957, %v1975
        %v2022 = vmax.f32 %v1958, %v1978
        %v2023 = vmax.f32 %v1959, %v1981
        %v2024 = vmax.f32 %v1960, %v1984
        %v2025 = vmax.f32 %v1961, %v1987
        %v2026 = vmax.f32 %v1962, %v1990
        %v2027 = vmax.f32 %v1963, %v1993
        %v2028 = vmax.f32 %v1964, %v1996
        %v2029 = vmax.f32 %v1965, %v1999
        %v2030 = vmax.f32 %v1966, %v2002
        %v2031 = vmax.f32 %v1967, %v2005
        %v2032 = vmax.f32 %v1968, %v2008
        %v2033 = vmax.f32 %v1969, %v2011
        %v2034 = vmax.f32 %v1970, %v2014
        %v2035 = vmax.f32 %v1971, %v2017
        %v2036 = vmax.f32 %v1972, %v2020
        %v2037 = vsub.f32 %v1957, %v2021
        %v2038 = vsub.f32 %v1958, %v2022
        %v2039 = vsub.f32 %v1959, %v2023
        %v2040 = vsub.f32 %v1960, %v2024
        %v2041 = vsub.f32 %v1961, %v2025
        %v2042 = vsub.f32 %v1962, %v2026
        %v2043 = vsub.f32 %v1963, %v2027
        %v2044 = vsub.f32 %v1964, %v2028
        %v2045 = vsub.f32 %v1965, %v2029
        %v2046 = vsub.f32 %v1966, %v2030
        %v2047 = vsub.f32 %v1967, %v2031
        %v2048 = vsub.f32 %v1968, %v2032
        %v2049 = vsub.f32 %v1969, %v2033
        %v2050 = vsub.f32 %v1970, %v2034
        %v2051 = vsub.f32 %v1971, %v2035
        %v2052 = vsub.f32 %v1972, %v2036
        %v2053 = vmul.f32 %v2037, 1.442695
        %v2054 = vpow.pop %v2053
        %v2055 = vmul.f32 %v2038, 1.442695
        %v2056 = vpow.pop %v2055
        %v2057 = vmul.f32 %v2039, 1.442695
        %v2058 = vpow.pop %v2057
        %v2059 = vmul.f32 %v2040, 1.442695
        %v2060 = vpow.pop %v2059
        %v2061 = vmul.f32 %v2041, 1.442695
        %v2062 = vpow.pop %v2061
        %v2063 = vmul.f32 %v2042, 1.442695
        %v2064 = vpow.pop %v2063
        %v2065 = vmul.f32 %v2043, 1.442695
        %v2066 = vpow.pop %v2065
        %v2067 = vmul.f32 %v2044, 1.442695
        %v2068 = vpow.pop %v2067
        %v2069 = vmul.f32 %v2045, 1.442695
        %v2070 = vpow.pop %v2069
        %v2071 = vmul.f32 %v2046, 1.442695
        %v2072 = vpow.pop %v2071
        %v2073 = vmul.f32 %v2047, 1.442695
        %v2074 = vpow.pop %v2073
        %v2075 = vmul.f32 %v2048, 1.442695
        %v2076 = vpow.pop %v2075
        %v2077 = vmul.f32 %v2049, 1.442695
        %v2078 = vpow.pop %v2077
        %v2079 = vmul.f32 %v2050, 1.442695
        %v2080 = vpow.pop %v2079
        %v2081 = vmul.f32 %v2051, 1.442695
        %v2082 = vpow.pop %v2081
        %v2083 = vmul.f32 %v2052, 1.442695
        %v2084 = vpow.pop %v2083
        %2086 = vset.pattern.permute.xlu0 0
        %2087 = vperm.xlu0 %2086, %v2021
        %v2088 = vpop.permute.xlu0 %2087
        %2091 = vset.pattern.permute.xlu0 0
        %2092 = vperm.xlu0 %2091, %v2022
        %v2093 = vpop.permute.xlu0 %2092
        %2096 = vset.pattern.permute.xlu0 0
        %2097 = vperm.xlu0 %2096, %v2023
        %v2098 = vpop.permute.xlu0 %2097
        %2101 = vset.pattern.permute.xlu0 0
        %2102 = vperm.xlu0 %2101, %v2024
        %v2103 = vpop.permute.xlu0 %2102
        %2106 = vset.pattern.permute.xlu0 0
        %2107 = vperm.xlu0 %2106, %v2025
        %v2108 = vpop.permute.xlu0 %2107
        %2111 = vset.pattern.permute.xlu0 0
        %2112 = vperm.xlu0 %2111, %v2026
        %v2113 = vpop.permute.xlu0 %2112
        %2116 = vset.pattern.permute.xlu0 0
        %2117 = vperm.xlu0 %2116, %v2027
        %v2118 = vpop.permute.xlu0 %2117
        %2121 = vset.pattern.permute.xlu0 0
        %2122 = vperm.xlu0 %2121, %v2028
        %v2123 = vpop.permute.xlu0 %2122
        %2126 = vset.pattern.permute.xlu0 0
        %2127 = vperm.xlu0 %2126, %v2029
        %v2128 = vpop.permute.xlu0 %2127
        %2131 = vset.pattern.permute.xlu0 0
        %2132 = vperm.xlu0 %2131, %v2030
        %v2133 = vpop.permute.xlu0 %2132
        %2136 = vset.pattern.permute.xlu0 0
        %2137 = vperm.xlu0 %2136, %v2031
        %v2138 = vpop.permute.xlu0 %2137
        %2141 = vset.pattern.permute.xlu0 0
        %2142 = vperm.xlu0 %2141, %v2032
        %v2143 = vpop.permute.xlu0 %2142
        %2146 = vset.pattern.permute.xlu0 0
        %2147 = vperm.xlu0 %2146, %v2033
        %v2148 = vpop.permute.xlu0 %2147
        %2151 = vset.pattern.permute.xlu0 0
        %2152 = vperm.xlu0 %2151, %v2034
        %v2153 = vpop.permute.xlu0 %2152
        %2156 = vset.pattern.permute.xlu0 0
        %2157 = vperm.xlu0 %2156, %v2035
        %v2158 = vpop.permute.xlu0 %2157
        %2161 = vset.pattern.permute.xlu0 0
        %2162 = vperm.xlu0 %2161, %v2036
        %v2163 = vpop.permute.xlu0 %2162
        %v2165 = vsub.f32 %v980, %v2088
        %v2166 = vsub.f32 %v1029, %v2088
        %v2167 = vsub.f32 %v982, %v2093
        %v2168 = vsub.f32 %v1031, %v2093
        %v2169 = vsub.f32 %v985, %v2098
        %v2170 = vsub.f32 %v1034, %v2098
        %v2171 = vsub.f32 %v987, %v2103
        %v2172 = vsub.f32 %v1036, %v2103
        %v2173 = vsub.f32 %v990, %v2108
        %v2174 = vsub.f32 %v1039, %v2108
        %v2175 = vsub.f32 %v992, %v2113
        %v2176 = vsub.f32 %v1041, %v2113
        %v2177 = vsub.f32 %v995, %v2118
        %v2178 = vsub.f32 %v1044, %v2118
        %v2179 = vsub.f32 %v997, %v2123
        %v2180 = vsub.f32 %v1046, %v2123
        %v2181 = vsub.f32 %v1000, %v2128
        %v2182 = vsub.f32 %v1049, %v2128
        %v2183 = vsub.f32 %v1002, %v2133
        %v2184 = vsub.f32 %v1051, %v2133
        %v2185 = vsub.f32 %v1005, %v2138
        %v2186 = vsub.f32 %v1054, %v2138
        %v2187 = vsub.f32 %v1007, %v2143
        %v2188 = vsub.f32 %v1056, %v2143
        %v2189 = vsub.f32 %v1010, %v2148
        %v2190 = vsub.f32 %v1059, %v2148
        %v2191 = vsub.f32 %v1012, %v2153
        %v2192 = vsub.f32 %v1061, %v2153
        %v2193 = vsub.f32 %v1015, %v2158
        %v2194 = vsub.f32 %v1064, %v2158
        %v2195 = vsub.f32 %v1017, %v2163
        %v2196 = vsub.f32 %v1066, %v2163
        %v2197 = vmul.f32 %v2165, 1.442695
        %v2198 = vpow.pop %v2197
        %v2199 = vmul.f32 %v2166, 1.442695
        %v2200 = vpow.pop %v2199
        %v2201 = vmul.f32 %v2167, 1.442695
        %v2202 = vpow.pop %v2201
        %v2203 = vmul.f32 %v2168, 1.442695
        %v2204 = vpow.pop %v2203
        %v2205 = vmul.f32 %v2169, 1.442695
        %v2206 = vpow.pop %v2205
        %v2207 = vmul.f32 %v2170, 1.442695
        %v2208 = vpow.pop %v2207
        %v2209 = vmul.f32 %v2171, 1.442695
        %v2210 = vpow.pop %v2209
        %v2211 = vmul.f32 %v2172, 1.442695
        %v2212 = vpow.pop %v2211
        %v2213 = vmul.f32 %v2173, 1.442695
        %v2214 = vpow.pop %v2213
        %v2215 = vmul.f32 %v2174, 1.442695
        %v2216 = vpow.pop %v2215
        %v2217 = vmul.f32 %v2175, 1.442695
        %v2218 = vpow.pop %v2217
        %v2219 = vmul.f32 %v2176, 1.442695
        %v2220 = vpow.pop %v2219
        %v2221 = vmul.f32 %v2177, 1.442695
        %v2222 = vpow.pop %v2221
        %v2223 = vmul.f32 %v2178, 1.442695
        %v2224 = vpow.pop %v2223
        %v2225 = vmul.f32 %v2179, 1.442695
        %v2226 = vpow.pop %v2225
        %v2227 = vmul.f32 %v2180, 1.442695
        %v2228 = vpow.pop %v2227
        %v2229 = vmul.f32 %v2181, 1.442695
        %v2230 = vpow.pop %v2229
        %v2231 = vmul.f32 %v2182, 1.442695
        %v2232 = vpow.pop %v2231
        %v2233 = vmul.f32 %v2183, 1.442695
        %v2234 = vpow.pop %v2233
        %v2235 = vmul.f32 %v2184, 1.442695
        %v2236 = vpow.pop %v2235
        %v2237 = vmul.f32 %v2185, 1.442695
        %v2238 = vpow.pop %v2237
        %v2239 = vmul.f32 %v2186, 1.442695
        %v2240 = vpow.pop %v2239
        %v2241 = vmul.f32 %v2187, 1.442695
        %v2242 = vpow.pop %v2241
        %v2243 = vmul.f32 %v2188, 1.442695
        %v2244 = vpow.pop %v2243
        %v2245 = vmul.f32 %v2189, 1.442695
        %v2246 = vpow.pop %v2245
        %v2247 = vmul.f32 %v2190, 1.442695
        %v2248 = vpow.pop %v2247
        %v2249 = vmul.f32 %v2191, 1.442695
        %v2250 = vpow.pop %v2249
        %v2251 = vmul.f32 %v2192, 1.442695
        %v2252 = vpow.pop %v2251
        %v2253 = vmul.f32 %v2193, 1.442695
        %v2254 = vpow.pop %v2253
        %v2255 = vmul.f32 %v2194, 1.442695
        %v2256 = vpow.pop %v2255
        %v2257 = vmul.f32 %v2195, 1.442695
        %v2258 = vpow.pop %v2257
        %v2259 = vmul.f32 %v2196, 1.442695
        %v2260 = vpow.pop %v2259
        %v2261 = vld [vmem:[#allocation7] sm:$0xff]
        %v2262 = vld [vmem:[#allocation7 + $0x8] sm:$0xff]
        %v2263 = vld [vmem:[#allocation7 + $0x10] sm:$0xff]
        %v2264 = vld [vmem:[#allocation7 + $0x18] sm:$0xff]
        %v2265 = vld [vmem:[#allocation7 + $0x20] sm:$0xff]
        %v2266 = vld [vmem:[#allocation7 + $0x28] sm:$0xff]
        %v2267 = vld [vmem:[#allocation7 + $0x30] sm:$0xff]
        %v2268 = vld [vmem:[#allocation7 + $0x38] sm:$0xff]
        %v2269 = vld [vmem:[#allocation7 + $0x40] sm:$0xff]
        %v2270 = vld [vmem:[#allocation7 + $0x48] sm:$0xff]
        %v2271 = vld [vmem:[#allocation7 + $0x50] sm:$0xff]
        %v2272 = vld [vmem:[#allocation7 + $0x58] sm:$0xff]
        %v2273 = vld [vmem:[#allocation7 + $0x60] sm:$0xff]
        %v2274 = vld [vmem:[#allocation7 + $0x68] sm:$0xff]
        %v2275 = vld [vmem:[#allocation7 + $0x70] sm:$0xff]
        %v2276 = vld [vmem:[#allocation7 + $0x78] sm:$0xff]
        %v2277 = vmul.f32 %v2054, %v2261
        %v2278 = vmul.f32 %v2056, %v2262
        %v2279 = vmul.f32 %v2058, %v2263
        %v2280 = vmul.f32 %v2060, %v2264
        %v2281 = vmul.f32 %v2062, %v2265
        %v2282 = vmul.f32 %v2064, %v2266
        %v2283 = vmul.f32 %v2066, %v2267
        %v2284 = vmul.f32 %v2068, %v2268
        %v2285 = vmul.f32 %v2070, %v2269
        %v2286 = vmul.f32 %v2072, %v2270
        %v2287 = vmul.f32 %v2074, %v2271
        %v2288 = vmul.f32 %v2076, %v2272
        %v2289 = vmul.f32 %v2078, %v2273
        %v2290 = vmul.f32 %v2080, %v2274
        %v2291 = vmul.f32 %v2082, %v2275
        %v2292 = vmul.f32 %v2084, %v2276
        %v2293 = vadd.f32 %v2198, %v2200
        %2294 = vadd.xlane.f32.xlu0 %v2293
        %v2295 = vpop.xlane.xlu0 %2294
        %v2296 = vadd.f32 %v2202, %v2204
        %2297 = vadd.xlane.f32.xlu0 %v2296
        %v2298 = vpop.xlane.xlu0 %2297
        %v2299 = vadd.f32 %v2206, %v2208
        %2300 = vadd.xlane.f32.xlu0 %v2299
        %v2301 = vpop.xlane.xlu0 %2300
        %v2302 = vadd.f32 %v2210, %v2212
        %2303 = vadd.xlane.f32.xlu0 %v2302
        %v2304 = vpop.xlane.xlu0 %2303
        %v2305 = vadd.f32 %v2214, %v2216
        %2306 = vadd.xlane.f32.xlu0 %v2305
        %v2307 = vpop.xlane.xlu0 %2306
        %v2308 = vadd.f32 %v2218, %v2220
        %2309 = vadd.xlane.f32.xlu0 %v2308
        %v2310 = vpop.xlane.xlu0 %2309
        %v2311 = vadd.f32 %v2222, %v2224
        %2312 = vadd.xlane.f32.xlu0 %v2311
        %v2313 = vpop.xlane.xlu0 %2312
        %v2314 = vadd.f32 %v2226, %v2228
        %2315 = vadd.xlane.f32.xlu0 %v2314
        %v2316 = vpop.xlane.xlu0 %2315
        %v2317 = vadd.f32 %v2230, %v2232
        %2318 = vadd.xlane.f32.xlu0 %v2317
        %v2319 = vpop.xlane.xlu0 %2318
        %v2320 = vadd.f32 %v2234, %v2236
        %2321 = vadd.xlane.f32.xlu0 %v2320
        %v2322 = vpop.xlane.xlu0 %2321
        %v2323 = vadd.f32 %v2238, %v2240
        %2324 = vadd.xlane.f32.xlu0 %v2323
        %v2325 = vpop.xlane.xlu0 %2324
        %v2326 = vadd.f32 %v2242, %v2244
        %2327 = vadd.xlane.f32.xlu0 %v2326
        %v2328 = vpop.xlane.xlu0 %2327
        %v2329 = vadd.f32 %v2246, %v2248
        %2330 = vadd.xlane.f32.xlu0 %v2329
        %v2331 = vpop.xlane.xlu0 %2330
        %v2332 = vadd.f32 %v2250, %v2252
        %2333 = vadd.xlane.f32.xlu0 %v2332
        %v2334 = vpop.xlane.xlu0 %2333
        %v2335 = vadd.f32 %v2254, %v2256
        %2336 = vadd.xlane.f32.xlu0 %v2335
        %v2337 = vpop.xlane.xlu0 %2336
        %v2338 = vadd.f32 %v2258, %v2260
        %2339 = vadd.xlane.f32.xlu0 %v2338
        %v2340 = vpop.xlane.xlu0 %2339
        %v2341 = vadd.f32 %v2277, %v2295
        %v2342 = vadd.f32 %v2278, %v2298
        %v2343 = vadd.f32 %v2279, %v2301
        %v2344 = vadd.f32 %v2280, %v2304
        %v2345 = vadd.f32 %v2281, %v2307
        %v2346 = vadd.f32 %v2282, %v2310
        %v2347 = vadd.f32 %v2283, %v2313
        %v2348 = vadd.f32 %v2284, %v2316
        %v2349 = vadd.f32 %v2285, %v2319
        %v2350 = vadd.f32 %v2286, %v2322
        %v2351 = vadd.f32 %v2287, %v2325
        %v2352 = vadd.f32 %v2288, %v2328
        %v2353 = vadd.f32 %v2289, %v2331
        %v2354 = vadd.f32 %v2290, %v2334
        %v2355 = vadd.f32 %v2291, %v2337
        %v2356 = vadd.f32 %v2292, %v2340
        %2357 = vst.msk [vmem:[#allocation7] sm:$0xff] %vm1666, %v2341
        %2358 = vst.msk [vmem:[#allocation7 + $0x8] sm:$0xff] %vm1666, %v2342
        %2359 = vst.msk [vmem:[#allocation7 + $0x10] sm:$0xff] %vm1666, %v2343
        %2360 = vst.msk [vmem:[#allocation7 + $0x18] sm:$0xff] %vm1666, %v2344
        %2361 = vst.msk [vmem:[#allocation7 + $0x20] sm:$0xff] %vm1666, %v2345
        %2362 = vst.msk [vmem:[#allocation7 + $0x28] sm:$0xff] %vm1666, %v2346
        %2363 = vst.msk [vmem:[#allocation7 + $0x30] sm:$0xff] %vm1666, %v2347
        %2364 = vst.msk [vmem:[#allocation7 + $0x38] sm:$0xff] %vm1666, %v2348
        %2365 = vst.msk [vmem:[#allocation7 + $0x40] sm:$0xff] %vm1666, %v2349
        %2366 = vst.msk [vmem:[#allocation7 + $0x48] sm:$0xff] %vm1666, %v2350
        %2367 = vst.msk [vmem:[#allocation7 + $0x50] sm:$0xff] %vm1666, %v2351
        %2368 = vst.msk [vmem:[#allocation7 + $0x58] sm:$0xff] %vm1666, %v2352
        %2369 = vst.msk [vmem:[#allocation7 + $0x60] sm:$0xff] %vm1666, %v2353
        %2370 = vst.msk [vmem:[#allocation7 + $0x68] sm:$0xff] %vm1666, %v2354
        %2371 = vst.msk [vmem:[#allocation7 + $0x70] sm:$0xff] %vm1666, %v2355
        %2372 = vst.msk [vmem:[#allocation7 + $0x78] sm:$0xff] %vm1666, %v2356
        %v2373 = vld [vmem:[#allocation9] sm:$0xff]
        %v2374 = vld [vmem:[#allocation9 + $0x8] sm:$0xff]
        %v2375 = vld [vmem:[#allocation9 + $0x10] sm:$0xff]
        %v2376 = vld [vmem:[#allocation9 + $0x18] sm:$0xff]
        %v2377 = vld [vmem:[#allocation9 + $0x20] sm:$0xff]
        %v2378 = vld [vmem:[#allocation9 + $0x28] sm:$0xff]
        %v2379 = vld [vmem:[#allocation9 + $0x30] sm:$0xff]
        %v2380 = vld [vmem:[#allocation9 + $0x38] sm:$0xff]
        %v2381 = vld [vmem:[#allocation9 + $0x40] sm:$0xff]
        %v2382 = vld [vmem:[#allocation9 + $0x48] sm:$0xff]
        %v2383 = vld [vmem:[#allocation9 + $0x50] sm:$0xff]
        %v2384 = vld [vmem:[#allocation9 + $0x58] sm:$0xff]
        %v2385 = vld [vmem:[#allocation9 + $0x60] sm:$0xff]
        %v2386 = vld [vmem:[#allocation9 + $0x68] sm:$0xff]
        %v2387 = vld [vmem:[#allocation9 + $0x70] sm:$0xff]
        %v2388 = vld [vmem:[#allocation9 + $0x78] sm:$0xff]
        %2390 = vset.pattern.permute.xlu0 0
        %2391 = vperm.xlu0 %2390, %v2054
        %v2392 = vpop.permute.xlu0 %2391
        %2395 = vset.pattern.permute.xlu0 0
        %2396 = vperm.xlu0 %2395, %v2056
        %v2397 = vpop.permute.xlu0 %2396
        %2400 = vset.pattern.permute.xlu0 0
        %2401 = vperm.xlu0 %2400, %v2058
        %v2402 = vpop.permute.xlu0 %2401
        %2405 = vset.pattern.permute.xlu0 0
        %2406 = vperm.xlu0 %2405, %v2060
        %v2407 = vpop.permute.xlu0 %2406
        %2410 = vset.pattern.permute.xlu0 0
        %2411 = vperm.xlu0 %2410, %v2062
        %v2412 = vpop.permute.xlu0 %2411
        %2415 = vset.pattern.permute.xlu0 0
        %2416 = vperm.xlu0 %2415, %v2064
        %v2417 = vpop.permute.xlu0 %2416
        %2420 = vset.pattern.permute.xlu0 0
        %2421 = vperm.xlu0 %2420, %v2066
        %v2422 = vpop.permute.xlu0 %2421
        %2425 = vset.pattern.permute.xlu0 0
        %2426 = vperm.xlu0 %2425, %v2068
        %v2427 = vpop.permute.xlu0 %2426
        %2430 = vset.pattern.permute.xlu0 0
        %2431 = vperm.xlu0 %2430, %v2070
        %v2432 = vpop.permute.xlu0 %2431
        %2435 = vset.pattern.permute.xlu0 0
        %2436 = vperm.xlu0 %2435, %v2072
        %v2437 = vpop.permute.xlu0 %2436
        %2440 = vset.pattern.permute.xlu0 0
        %2441 = vperm.xlu0 %2440, %v2074
        %v2442 = vpop.permute.xlu0 %2441
        %2445 = vset.pattern.permute.xlu0 0
        %2446 = vperm.xlu0 %2445, %v2076
        %v2447 = vpop.permute.xlu0 %2446
        %2450 = vset.pattern.permute.xlu0 0
        %2451 = vperm.xlu0 %2450, %v2078
        %v2452 = vpop.permute.xlu0 %2451
        %2455 = vset.pattern.permute.xlu0 0
        %2456 = vperm.xlu0 %2455, %v2080
        %v2457 = vpop.permute.xlu0 %2456
        %2460 = vset.pattern.permute.xlu0 0
        %2461 = vperm.xlu0 %2460, %v2082
        %v2462 = vpop.permute.xlu0 %2461
        %2465 = vset.pattern.permute.xlu0 0
        %2466 = vperm.xlu0 %2465, %v2084
        %v2467 = vpop.permute.xlu0 %2466
        %v2469 = vmul.f32 %v2392, %v2373
        %v2470 = vmul.f32 %v2397, %v2374
        %v2471 = vmul.f32 %v2402, %v2375
        %v2472 = vmul.f32 %v2407, %v2376
        %v2473 = vmul.f32 %v2412, %v2377
        %v2474 = vmul.f32 %v2417, %v2378
        %v2475 = vmul.f32 %v2422, %v2379
        %v2476 = vmul.f32 %v2427, %v2380
        %v2477 = vmul.f32 %v2432, %v2381
        %v2478 = vmul.f32 %v2437, %v2382
        %v2479 = vmul.f32 %v2442, %v2383
        %v2480 = vmul.f32 %v2447, %v2384
        %v2481 = vmul.f32 %v2452, %v2385
        %v2482 = vmul.f32 %v2457, %v2386
        %v2483 = vmul.f32 %v2462, %v2387
        %v2484 = vmul.f32 %v2467, %v2388
        %v2485 = vpack.c.bf16 %v2202, %v2198
        %v2486 = vpack.c.bf16 %v2204, %v2200
        %v2487 = vpack.c.bf16 %v2210, %v2206
        %v2488 = vpack.c.bf16 %v2212, %v2208
        %v2489 = vpack.c.bf16 %v2218, %v2214
        %v2490 = vpack.c.bf16 %v2220, %v2216
        %v2491 = vpack.c.bf16 %v2226, %v2222
        %v2492 = vpack.c.bf16 %v2228, %v2224
        %v2493 = vpack.c.bf16 %v2234, %v2230
        %v2494 = vpack.c.bf16 %v2236, %v2232
        %v2495 = vpack.c.bf16 %v2242, %v2238
        %v2496 = vpack.c.bf16 %v2244, %v2240
        %v2497 = vpack.c.bf16 %v2250, %v2246
        %v2498 = vpack.c.bf16 %v2252, %v2248
        %v2499 = vpack.c.bf16 %v2258, %v2254
        %v2500 = vpack.c.bf16 %v2260, %v2256
        %2501 = vmatpush.bf16.xpose.msra.mxu0 0
        %2502 = vmatpush.bf16.xpose.msra.mxu0 0
        %2503 = vmatpush.bf16.xpose.msra.mxu0 0
        %2504 = vmatpush.bf16.xpose.msra.mxu0 0
        %2505 = vmatpush.bf16.xpose.msra.mxu0 0
        %2506 = vmatpush.bf16.xpose.msra.mxu0 0
        %2507 = vmatpush.bf16.xpose.msra.mxu0 0
        %2508 = vmatpush.bf16.xpose.msra.mxu0 %v941
        %2509 = vmatmul.bf16.gmra.mxu0 %v2485
        %v2510 = vpop.f32.mrf.mxu0
        %v2511 = vadd.f32 0.0, %v2510
        %v2512 = vpop.f32.mrf.mxu0
        %v2513 = vadd.f32 0.0, %v2512
        %2514 = vmatmul.bf16.gmra.mxu0 %v2487
        %v2515 = vpop.f32.mrf.mxu0
        %v2516 = vadd.f32 0.0, %v2515
        %v2517 = vpop.f32.mrf.mxu0
        %v2518 = vadd.f32 0.0, %v2517
        %2519 = vmatmul.bf16.gmra.mxu0 %v2489
        %v2520 = vpop.f32.mrf.mxu0
        %v2521 = vadd.f32 0.0, %v2520
        %v2522 = vpop.f32.mrf.mxu0
        %v2523 = vadd.f32 0.0, %v2522
        %2524 = vmatmul.bf16.gmra.mxu0 %v2491
        %v2525 = vpop.f32.mrf.mxu0
        %v2526 = vadd.f32 0.0, %v2525
        %v2527 = vpop.f32.mrf.mxu0
        %v2528 = vadd.f32 0.0, %v2527
        %2529 = vmatmul.bf16.gmra.mxu0 %v2493
        %v2530 = vpop.f32.mrf.mxu0
        %v2531 = vadd.f32 0.0, %v2530
        %v2532 = vpop.f32.mrf.mxu0
        %v2533 = vadd.f32 0.0, %v2532
        %2534 = vmatmul.bf16.gmra.mxu0 %v2495
        %v2535 = vpop.f32.mrf.mxu0
        %v2536 = vadd.f32 0.0, %v2535
        %v2537 = vpop.f32.mrf.mxu0
        %v2538 = vadd.f32 0.0, %v2537
        %2539 = vmatmul.bf16.gmra.mxu0 %v2497
        %v2540 = vpop.f32.mrf.mxu0
        %v2541 = vadd.f32 0.0, %v2540
        %v2542 = vpop.f32.mrf.mxu0
        %v2543 = vadd.f32 0.0, %v2542
        %2544 = vmatmul.bf16.gmra.mxu0 %v2499
        %v2545 = vpop.f32.mrf.mxu0
        %v2546 = vadd.f32 0.0, %v2545
        %v2547 = vpop.f32.mrf.mxu0
        %v2548 = vadd.f32 0.0, %v2547
        %2549 = vdwg.mxu0
        %2550 = vmatpush.bf16.xpose.msra.mxu0 0
        %2551 = vmatpush.bf16.xpose.msra.mxu0 0
        %2552 = vmatpush.bf16.xpose.msra.mxu0 0
        %2553 = vmatpush.bf16.xpose.msra.mxu0 0
        %2554 = vmatpush.bf16.xpose.msra.mxu0 0
        %2555 = vmatpush.bf16.xpose.msra.mxu0 0
        %2556 = vmatpush.bf16.xpose.msra.mxu0 0
        %2557 = vmatpush.bf16.xpose.msra.mxu0 %v942
        %2558 = vmatmul.bf16.gmra.mxu0 %v2486
        %v2559 = vpop.f32.mrf.mxu0
        %v2560 = vadd.f32 %v2511, %v2559
        %v2561 = vpop.f32.mrf.mxu0
        %v2562 = vadd.f32 %v2513, %v2561
        %2563 = vmatmul.bf16.gmra.mxu0 %v2488
        %v2564 = vpop.f32.mrf.mxu0
        %v2565 = vadd.f32 %v2516, %v2564
        %v2566 = vpop.f32.mrf.mxu0
        %v2567 = vadd.f32 %v2518, %v2566
        %2568 = vmatmul.bf16.gmra.mxu0 %v2490
        %v2569 = vpop.f32.mrf.mxu0
        %v2570 = vadd.f32 %v2521, %v2569
        %v2571 = vpop.f32.mrf.mxu0
        %v2572 = vadd.f32 %v2523, %v2571
        %2573 = vmatmul.bf16.gmra.mxu0 %v2492
        %v2574 = vpop.f32.mrf.mxu0
        %v2575 = vadd.f32 %v2526, %v2574
        %v2576 = vpop.f32.mrf.mxu0
        %v2577 = vadd.f32 %v2528, %v2576
        %2578 = vmatmul.bf16.gmra.mxu0 %v2494
        %v2579 = vpop.f32.mrf.mxu0
        %v2580 = vadd.f32 %v2531, %v2579
        %v2581 = vpop.f32.mrf.mxu0
        %v2582 = vadd.f32 %v2533, %v2581
        %2583 = vmatmul.bf16.gmra.mxu0 %v2496
        %v2584 = vpop.f32.mrf.mxu0
        %v2585 = vadd.f32 %v2536, %v2584
        %v2586 = vpop.f32.mrf.mxu0
        %v2587 = vadd.f32 %v2538, %v2586
        %2588 = vmatmul.bf16.gmra.mxu0 %v2498
        %v2589 = vpop.f32.mrf.mxu0
        %v2590 = vadd.f32 %v2541, %v2589
        %v2591 = vpop.f32.mrf.mxu0
        %v2592 = vadd.f32 %v2543, %v2591
        %2593 = vmatmul.bf16.gmra.mxu0 %v2500
        %v2594 = vpop.f32.mrf.mxu0
        %v2595 = vadd.f32 %v2546, %v2594
        %v2596 = vpop.f32.mrf.mxu0
        %v2597 = vadd.f32 %v2548, %v2596
        %2598 = vdwg.mxu0
        %v2599 = vadd.f32 %v2469, %v2560
        %v2600 = vadd.f32 %v2470, %v2562
        %v2601 = vadd.f32 %v2471, %v2565
        %v2602 = vadd.f32 %v2472, %v2567
        %v2603 = vadd.f32 %v2473, %v2570
        %v2604 = vadd.f32 %v2474, %v2572
        %v2605 = vadd.f32 %v2475, %v2575
        %v2606 = vadd.f32 %v2476, %v2577
        %v2607 = vadd.f32 %v2477, %v2580
        %v2608 = vadd.f32 %v2478, %v2582
        %v2609 = vadd.f32 %v2479, %v2585
        %v2610 = vadd.f32 %v2480, %v2587
        %v2611 = vadd.f32 %v2481, %v2590
        %v2612 = vadd.f32 %v2482, %v2592
        %v2613 = vadd.f32 %v2483, %v2595
        %v2614 = vadd.f32 %v2484, %v2597
        %2615 = vst.msk [vmem:[#allocation9] sm:$0xff] %vm945, %v2599
        %2616 = vst.msk [vmem:[#allocation9 + $0x8] sm:$0xff] %vm945, %v2600
        %2617 = vst.msk [vmem:[#allocation9 + $0x10] sm:$0xff] %vm945, %v2601
        %2618 = vst.msk [vmem:[#allocation9 + $0x18] sm:$0xff] %vm945, %v2602
        %2619 = vst.msk [vmem:[#allocation9 + $0x20] sm:$0xff] %vm945, %v2603
        %2620 = vst.msk [vmem:[#allocation9 + $0x28] sm:$0xff] %vm945, %v2604
        %2621 = vst.msk [vmem:[#allocation9 + $0x30] sm:$0xff] %vm945, %v2605
        %2622 = vst.msk [vmem:[#allocation9 + $0x38] sm:$0xff] %vm945, %v2606
        %2623 = vst.msk [vmem:[#allocation9 + $0x40] sm:$0xff] %vm945, %v2607
        %2624 = vst.msk [vmem:[#allocation9 + $0x48] sm:$0xff] %vm945, %v2608
        %2625 = vst.msk [vmem:[#allocation9 + $0x50] sm:$0xff] %vm945, %v2609
        %2626 = vst.msk [vmem:[#allocation9 + $0x58] sm:$0xff] %vm945, %v2610
        %2627 = vst.msk [vmem:[#allocation9 + $0x60] sm:$0xff] %vm945, %v2611
        %2628 = vst.msk [vmem:[#allocation9 + $0x68] sm:$0xff] %vm945, %v2612
        %2629 = vst.msk [vmem:[#allocation9 + $0x70] sm:$0xff] %vm945, %v2613
        %2630 = vst.msk [vmem:[#allocation9 + $0x78] sm:$0xff] %vm945, %v2614
        %2631 = vst.msk [vmem:[#allocation6] sm:$0xff] %vm1666, %v2021
        %2632 = vst.msk [vmem:[#allocation6 + $0x8] sm:$0xff] %vm1666, %v2022
        %2633 = vst.msk [vmem:[#allocation6 + $0x10] sm:$0xff] %vm1666, %v2023
        %2634 = vst.msk [vmem:[#allocation6 + $0x18] sm:$0xff] %vm1666, %v2024
        %2635 = vst.msk [vmem:[#allocation6 + $0x20] sm:$0xff] %vm1666, %v2025
        %2636 = vst.msk [vmem:[#allocation6 + $0x28] sm:$0xff] %vm1666, %v2026
        %2637 = vst.msk [vmem:[#allocation6 + $0x30] sm:$0xff] %vm1666, %v2027
        %2638 = vst.msk [vmem:[#allocation6 + $0x38] sm:$0xff] %vm1666, %v2028
        %2639 = vst.msk [vmem:[#allocation6 + $0x40] sm:$0xff] %vm1666, %v2029
        %2640 = vst.msk [vmem:[#allocation6 + $0x48] sm:$0xff] %vm1666, %v2030
        %2641 = vst.msk [vmem:[#allocation6 + $0x50] sm:$0xff] %vm1666, %v2031
        %2642 = vst.msk [vmem:[#allocation6 + $0x58] sm:$0xff] %vm1666, %v2032
        %2643 = vst.msk [vmem:[#allocation6 + $0x60] sm:$0xff] %vm1666, %v2033
        %2644 = vst.msk [vmem:[#allocation6 + $0x68] sm:$0xff] %vm1666, %v2034
        %2645 = vst.msk [vmem:[#allocation6 + $0x70] sm:$0xff] %vm1666, %v2035
        %2646 = vst.msk [vmem:[#allocation6 + $0x78] sm:$0xff] %vm1666, %v2036
        // Predicated region
        $region85: #{tpu_custom_call.1} parent=55 // pred_check
          %p2647 = pneg %p513
        $region86: #{tpu_custom_call.1} parent=55 // pred_check_branch
          %2649 = sbr.rel (%p2647) target = $region88
        $region87: #{tpu_custom_call.1} parent=55 // pred_region
          %s2650 = sld [smem:[#allocation20]]
          %s2651 = sld [smem:[#allocation20 + $0x1]]
          %v2652 = vld [vmem:[#allocation5] sm:$0xff]
          %v2653 = vld [vmem:[#allocation5 + $0x8] sm:$0xff]
          %v2654 = vld [vmem:[#allocation5 + $0x10] sm:$0xff]
          %v2655 = vld [vmem:[#allocation5 + $0x18] sm:$0xff]
          %v2656 = vld [vmem:[#allocation5 + $0x20] sm:$0xff]
          %v2657 = vld [vmem:[#allocation5 + $0x28] sm:$0xff]
          %v2658 = vld [vmem:[#allocation5 + $0x30] sm:$0xff]
          %v2659 = vld [vmem:[#allocation5 + $0x38] sm:$0xff]
          %v2660 = vld [vmem:[#allocation5 + $0x40] sm:$0xff]
          %v2661 = vld [vmem:[#allocation5 + $0x48] sm:$0xff]
          %v2662 = vld [vmem:[#allocation5 + $0x50] sm:$0xff]
          %v2663 = vld [vmem:[#allocation5 + $0x58] sm:$0xff]
          %v2664 = vld [vmem:[#allocation5 + $0x60] sm:$0xff]
          %v2665 = vld [vmem:[#allocation5 + $0x68] sm:$0xff]
          %v2666 = vld [vmem:[#allocation5 + $0x70] sm:$0xff]
          %v2667 = vld [vmem:[#allocation5 + $0x78] sm:$0xff]
          %v2668 = vrcp.pop %v2652
          %v2669 = vmul.f32 %v2652, %v2668
          %v2670 = vsub.f32 1.0, %v2669
          %v2671 = vmul.f32 %v2668, %v2670
          %v2672 = vadd.f32 %v2668, %v2671
          %vm2673 = vweird.f32 %v2652
          %vm2674 = vweird.f32 %v2668
          %vm2675 = vmor %vm2673, %vm2674
          %v2676 = vsel %vm2675, %v2668, %v2672
          %v2677 = vand.u32 2147483647, %v2652
          %vm2678 = vcmp.eq.f32.partialorder %v2677, 8.507059e+37
          %v2679 = vand.u32 %v2652, 2147483648
          %v2680 = vor.u32 1.1754944e-38, %v2679
          %v2681 = vsel %vm2678, %v2680, %v2676
          %v2682 = vmul.f32 1.0, %v2681
          %v2683 = vrcp.pop %v2653
          %v2684 = vmul.f32 %v2653, %v2683
          %v2685 = vsub.f32 1.0, %v2684
          %v2686 = vmul.f32 %v2683, %v2685
          %v2687 = vadd.f32 %v2683, %v2686
          %vm2688 = vweird.f32 %v2653
          %vm2689 = vweird.f32 %v2683
          %vm2690 = vmor %vm2688, %vm2689
          %v2691 = vsel %vm2690, %v2683, %v2687
          %v2692 = vand.u32 2147483647, %v2653
          %vm2693 = vcmp.eq.f32.partialorder %v2692, 8.507059e+37
          %v2694 = vand.u32 %v2653, 2147483648
          %v2695 = vor.u32 1.1754944e-38, %v2694
          %v2696 = vsel %vm2693, %v2695, %v2691
          %v2697 = vmul.f32 1.0, %v2696
          %v2698 = vrcp.pop %v2654
          %v2699 = vmul.f32 %v2654, %v2698
          %v2700 = vsub.f32 1.0, %v2699
          %v2701 = vmul.f32 %v2698, %v2700
          %v2702 = vadd.f32 %v2698, %v2701
          %vm2703 = vweird.f32 %v2654
          %vm2704 = vweird.f32 %v2698
          %vm2705 = vmor %vm2703, %vm2704
          %v2706 = vsel %vm2705, %v2698, %v2702
          %v2707 = vand.u32 2147483647, %v2654
          %vm2708 = vcmp.eq.f32.partialorder %v2707, 8.507059e+37
          %v2709 = vand.u32 %v2654, 2147483648
          %v2710 = vor.u32 1.1754944e-38, %v2709
          %v2711 = vsel %vm2708, %v2710, %v2706
          %v2712 = vmul.f32 1.0, %v2711
          %v2713 = vrcp.pop %v2655
          %v2714 = vmul.f32 %v2655, %v2713
          %v2715 = vsub.f32 1.0, %v2714
          %v2716 = vmul.f32 %v2713, %v2715
          %v2717 = vadd.f32 %v2713, %v2716
          %vm2718 = vweird.f32 %v2655
          %vm2719 = vweird.f32 %v2713
          %vm2720 = vmor %vm2718, %vm2719
          %v2721 = vsel %vm2720, %v2713, %v2717
          %v2722 = vand.u32 2147483647, %v2655
          %vm2723 = vcmp.eq.f32.partialorder %v2722, 8.507059e+37
          %v2724 = vand.u32 %v2655, 2147483648
          %v2725 = vor.u32 1.1754944e-38, %v2724
          %v2726 = vsel %vm2723, %v2725, %v2721
          %v2727 = vmul.f32 1.0, %v2726
          %v2728 = vrcp.pop %v2656
          %v2729 = vmul.f32 %v2656, %v2728
          %v2730 = vsub.f32 1.0, %v2729
          %v2731 = vmul.f32 %v2728, %v2730
          %v2732 = vadd.f32 %v2728, %v2731
          %vm2733 = vweird.f32 %v2656
          %vm2734 = vweird.f32 %v2728
          %vm2735 = vmor %vm2733, %vm2734
          %v2736 = vsel %vm2735, %v2728, %v2732
          %v2737 = vand.u32 2147483647, %v2656
          %vm2738 = vcmp.eq.f32.partialorder %v2737, 8.507059e+37
          %v2739 = vand.u32 %v2656, 2147483648
          %v2740 = vor.u32 1.1754944e-38, %v2739
          %v2741 = vsel %vm2738, %v2740, %v2736
          %v2742 = vmul.f32 1.0, %v2741
          %v2743 = vrcp.pop %v2657
          %v2744 = vmul.f32 %v2657, %v2743
          %v2745 = vsub.f32 1.0, %v2744
          %v2746 = vmul.f32 %v2743, %v2745
          %v2747 = vadd.f32 %v2743, %v2746
          %vm2748 = vweird.f32 %v2657
          %vm2749 = vweird.f32 %v2743
          %vm2750 = vmor %vm2748, %vm2749
          %v2751 = vsel %vm2750, %v2743, %v2747
          %v2752 = vand.u32 2147483647, %v2657
          %vm2753 = vcmp.eq.f32.partialorder %v2752, 8.507059e+37
          %v2754 = vand.u32 %v2657, 2147483648
          %v2755 = vor.u32 1.1754944e-38, %v2754
          %v2756 = vsel %vm2753, %v2755, %v2751
          %v2757 = vmul.f32 1.0, %v2756
          %v2758 = vrcp.pop %v2658
          %v2759 = vmul.f32 %v2658, %v2758
          %v2760 = vsub.f32 1.0, %v2759
          %v2761 = vmul.f32 %v2758, %v2760
          %v2762 = vadd.f32 %v2758, %v2761
          %vm2763 = vweird.f32 %v2658
          %vm2764 = vweird.f32 %v2758
          %vm2765 = vmor %vm2763, %vm2764
          %v2766 = vsel %vm2765, %v2758, %v2762
          %v2767 = vand.u32 2147483647, %v2658
          %vm2768 = vcmp.eq.f32.partialorder %v2767, 8.507059e+37
          %v2769 = vand.u32 %v2658, 2147483648
          %v2770 = vor.u32 1.1754944e-38, %v2769
          %v2771 = vsel %vm2768, %v2770, %v2766
          %v2772 = vmul.f32 1.0, %v2771
          %v2773 = vrcp.pop %v2659
          %v2774 = vmul.f32 %v2659, %v2773
          %v2775 = vsub.f32 1.0, %v2774
          %v2776 = vmul.f32 %v2773, %v2775
          %v2777 = vadd.f32 %v2773, %v2776
          %vm2778 = vweird.f32 %v2659
          %vm2779 = vweird.f32 %v2773
          %vm2780 = vmor %vm2778, %vm2779
          %v2781 = vsel %vm2780, %v2773, %v2777
          %v2782 = vand.u32 2147483647, %v2659
          %vm2783 = vcmp.eq.f32.partialorder %v2782, 8.507059e+37
          %v2784 = vand.u32 %v2659, 2147483648
          %v2785 = vor.u32 1.1754944e-38, %v2784
          %v2786 = vsel %vm2783, %v2785, %v2781
          %v2787 = vmul.f32 1.0, %v2786
          %v2788 = vrcp.pop %v2660
          %v2789 = vmul.f32 %v2660, %v2788
          %v2790 = vsub.f32 1.0, %v2789
          %v2791 = vmul.f32 %v2788, %v2790
          %v2792 = vadd.f32 %v2788, %v2791
          %vm2793 = vweird.f32 %v2660
          %vm2794 = vweird.f32 %v2788
          %vm2795 = vmor %vm2793, %vm2794
          %v2796 = vsel %vm2795, %v2788, %v2792
          %v2797 = vand.u32 2147483647, %v2660
          %vm2798 = vcmp.eq.f32.partialorder %v2797, 8.507059e+37
          %v2799 = vand.u32 %v2660, 2147483648
          %v2800 = vor.u32 1.1754944e-38, %v2799
          %v2801 = vsel %vm2798, %v2800, %v2796
          %v2802 = vmul.f32 1.0, %v2801
          %v2803 = vrcp.pop %v2661
          %v2804 = vmul.f32 %v2661, %v2803
          %v2805 = vsub.f32 1.0, %v2804
          %v2806 = vmul.f32 %v2803, %v2805
          %v2807 = vadd.f32 %v2803, %v2806
          %vm2808 = vweird.f32 %v2661
          %vm2809 = vweird.f32 %v2803
          %vm2810 = vmor %vm2808, %vm2809
          %v2811 = vsel %vm2810, %v2803, %v2807
          %v2812 = vand.u32 2147483647, %v2661
          %vm2813 = vcmp.eq.f32.partialorder %v2812, 8.507059e+37
          %v2814 = vand.u32 %v2661, 2147483648
          %v2815 = vor.u32 1.1754944e-38, %v2814
          %v2816 = vsel %vm2813, %v2815, %v2811
          %v2817 = vmul.f32 1.0, %v2816
          %v2818 = vrcp.pop %v2662
          %v2819 = vmul.f32 %v2662, %v2818
          %v2820 = vsub.f32 1.0, %v2819
          %v2821 = vmul.f32 %v2818, %v2820
          %v2822 = vadd.f32 %v2818, %v2821
          %vm2823 = vweird.f32 %v2662
          %vm2824 = vweird.f32 %v2818
          %vm2825 = vmor %vm2823, %vm2824
          %v2826 = vsel %vm2825, %v2818, %v2822
          %v2827 = vand.u32 2147483647, %v2662
          %vm2828 = vcmp.eq.f32.partialorder %v2827, 8.507059e+37
          %v2829 = vand.u32 %v2662, 2147483648
          %v2830 = vor.u32 1.1754944e-38, %v2829
          %v2831 = vsel %vm2828, %v2830, %v2826
          %v2832 = vmul.f32 1.0, %v2831
          %v2833 = vrcp.pop %v2663
          %v2834 = vmul.f32 %v2663, %v2833
          %v2835 = vsub.f32 1.0, %v2834
          %v2836 = vmul.f32 %v2833, %v2835
          %v2837 = vadd.f32 %v2833, %v2836
          %vm2838 = vweird.f32 %v2663
          %vm2839 = vweird.f32 %v2833
          %vm2840 = vmor %vm2838, %vm2839
          %v2841 = vsel %vm2840, %v2833, %v2837
          %v2842 = vand.u32 2147483647, %v2663
          %vm2843 = vcmp.eq.f32.partialorder %v2842, 8.507059e+37
          %v2844 = vand.u32 %v2663, 2147483648
          %v2845 = vor.u32 1.1754944e-38, %v2844
          %v2846 = vsel %vm2843, %v2845, %v2841
          %v2847 = vmul.f32 1.0, %v2846
          %v2848 = vrcp.pop %v2664
          %v2849 = vmul.f32 %v2664, %v2848
          %v2850 = vsub.f32 1.0, %v2849
          %v2851 = vmul.f32 %v2848, %v2850
          %v2852 = vadd.f32 %v2848, %v2851
          %vm2853 = vweird.f32 %v2664
          %vm2854 = vweird.f32 %v2848
          %vm2855 = vmor %vm2853, %vm2854
          %v2856 = vsel %vm2855, %v2848, %v2852
          %v2857 = vand.u32 2147483647, %v2664
          %vm2858 = vcmp.eq.f32.partialorder %v2857, 8.507059e+37
          %v2859 = vand.u32 %v2664, 2147483648
          %v2860 = vor.u32 1.1754944e-38, %v2859
          %v2861 = vsel %vm2858, %v2860, %v2856
          %v2862 = vmul.f32 1.0, %v2861
          %v2863 = vrcp.pop %v2665
          %v2864 = vmul.f32 %v2665, %v2863
          %v2865 = vsub.f32 1.0, %v2864
          %v2866 = vmul.f32 %v2863, %v2865
          %v2867 = vadd.f32 %v2863, %v2866
          %vm2868 = vweird.f32 %v2665
          %vm2869 = vweird.f32 %v2863
          %vm2870 = vmor %vm2868, %vm2869
          %v2871 = vsel %vm2870, %v2863, %v2867
          %v2872 = vand.u32 2147483647, %v2665
          %vm2873 = vcmp.eq.f32.partialorder %v2872, 8.507059e+37
          %v2874 = vand.u32 %v2665, 2147483648
          %v2875 = vor.u32 1.1754944e-38, %v2874
          %v2876 = vsel %vm2873, %v2875, %v2871
          %v2877 = vmul.f32 1.0, %v2876
          %v2878 = vrcp.pop %v2666
          %v2879 = vmul.f32 %v2666, %v2878
          %v2880 = vsub.f32 1.0, %v2879
          %v2881 = vmul.f32 %v2878, %v2880
          %v2882 = vadd.f32 %v2878, %v2881
          %vm2883 = vweird.f32 %v2666
          %vm2884 = vweird.f32 %v2878
          %vm2885 = vmor %vm2883, %vm2884
          %v2886 = vsel %vm2885, %v2878, %v2882
          %v2887 = vand.u32 2147483647, %v2666
          %vm2888 = vcmp.eq.f32.partialorder %v2887, 8.507059e+37
          %v2889 = vand.u32 %v2666, 2147483648
          %v2890 = vor.u32 1.1754944e-38, %v2889
          %v2891 = vsel %vm2888, %v2890, %v2886
          %v2892 = vmul.f32 1.0, %v2891
          %v2893 = vrcp.pop %v2667
          %v2894 = vmul.f32 %v2667, %v2893
          %v2895 = vsub.f32 1.0, %v2894
          %v2896 = vmul.f32 %v2893, %v2895
          %v2897 = vadd.f32 %v2893, %v2896
          %vm2898 = vweird.f32 %v2667
          %vm2899 = vweird.f32 %v2893
          %vm2900 = vmor %vm2898, %vm2899
          %v2901 = vsel %vm2900, %v2893, %v2897
          %v2902 = vand.u32 2147483647, %v2667
          %vm2903 = vcmp.eq.f32.partialorder %v2902, 8.507059e+37
          %v2904 = vand.u32 %v2667, 2147483648
          %v2905 = vor.u32 1.1754944e-38, %v2904
          %v2906 = vsel %vm2903, %v2905, %v2901
          %v2907 = vmul.f32 1.0, %v2906
          %v2908 = vld [vmem:[#allocation7] sm:$0xff]
          %v2909 = vld [vmem:[#allocation7 + $0x8] sm:$0xff]
          %v2910 = vld [vmem:[#allocation7 + $0x10] sm:$0xff]
          %v2911 = vld [vmem:[#allocation7 + $0x18] sm:$0xff]
          %v2912 = vld [vmem:[#allocation7 + $0x20] sm:$0xff]
          %v2913 = vld [vmem:[#allocation7 + $0x28] sm:$0xff]
          %v2914 = vld [vmem:[#allocation7 + $0x30] sm:$0xff]
          %v2915 = vld [vmem:[#allocation7 + $0x38] sm:$0xff]
          %v2916 = vld [vmem:[#allocation7 + $0x40] sm:$0xff]
          %v2917 = vld [vmem:[#allocation7 + $0x48] sm:$0xff]
          %v2918 = vld [vmem:[#allocation7 + $0x50] sm:$0xff]
          %v2919 = vld [vmem:[#allocation7 + $0x58] sm:$0xff]
          %v2920 = vld [vmem:[#allocation7 + $0x60] sm:$0xff]
          %v2921 = vld [vmem:[#allocation7 + $0x68] sm:$0xff]
          %v2922 = vld [vmem:[#allocation7 + $0x70] sm:$0xff]
          %v2923 = vld [vmem:[#allocation7 + $0x78] sm:$0xff]
          %v2924 = vrcp.pop %v2908
          %v2925 = vmul.f32 %v2908, %v2924
          %v2926 = vsub.f32 1.0, %v2925
          %v2927 = vmul.f32 %v2924, %v2926
          %v2928 = vadd.f32 %v2924, %v2927
          %vm2929 = vweird.f32 %v2908
          %vm2930 = vweird.f32 %v2924
          %vm2931 = vmor %vm2929, %vm2930
          %v2932 = vsel %vm2931, %v2924, %v2928
          %v2933 = vand.u32 2147483647, %v2908
          %vm2934 = vcmp.eq.f32.partialorder %v2933, 8.507059e+37
          %v2935 = vand.u32 %v2908, 2147483648
          %v2936 = vor.u32 1.1754944e-38, %v2935
          %v2937 = vsel %vm2934, %v2936, %v2932
          %v2938 = vmul.f32 1.0, %v2937
          %v2939 = vrcp.pop %v2909
          %v2940 = vmul.f32 %v2909, %v2939
          %v2941 = vsub.f32 1.0, %v2940
          %v2942 = vmul.f32 %v2939, %v2941
          %v2943 = vadd.f32 %v2939, %v2942
          %vm2944 = vweird.f32 %v2909
          %vm2945 = vweird.f32 %v2939
          %vm2946 = vmor %vm2944, %vm2945
          %v2947 = vsel %vm2946, %v2939, %v2943
          %v2948 = vand.u32 2147483647, %v2909
          %vm2949 = vcmp.eq.f32.partialorder %v2948, 8.507059e+37
          %v2950 = vand.u32 %v2909, 2147483648
          %v2951 = vor.u32 1.1754944e-38, %v2950
          %v2952 = vsel %vm2949, %v2951, %v2947
          %v2953 = vmul.f32 1.0, %v2952
          %v2954 = vrcp.pop %v2910
          %v2955 = vmul.f32 %v2910, %v2954
          %v2956 = vsub.f32 1.0, %v2955
          %v2957 = vmul.f32 %v2954, %v2956
          %v2958 = vadd.f32 %v2954, %v2957
          %vm2959 = vweird.f32 %v2910
          %vm2960 = vweird.f32 %v2954
          %vm2961 = vmor %vm2959, %vm2960
          %v2962 = vsel %vm2961, %v2954, %v2958
          %v2963 = vand.u32 2147483647, %v2910
          %vm2964 = vcmp.eq.f32.partialorder %v2963, 8.507059e+37
          %v2965 = vand.u32 %v2910, 2147483648
          %v2966 = vor.u32 1.1754944e-38, %v2965
          %v2967 = vsel %vm2964, %v2966, %v2962
          %v2968 = vmul.f32 1.0, %v2967
          %v2969 = vrcp.pop %v2911
          %v2970 = vmul.f32 %v2911, %v2969
          %v2971 = vsub.f32 1.0, %v2970
          %v2972 = vmul.f32 %v2969, %v2971
          %v2973 = vadd.f32 %v2969, %v2972
          %vm2974 = vweird.f32 %v2911
          %vm2975 = vweird.f32 %v2969
          %vm2976 = vmor %vm2974, %vm2975
          %v2977 = vsel %vm2976, %v2969, %v2973
          %v2978 = vand.u32 2147483647, %v2911
          %vm2979 = vcmp.eq.f32.partialorder %v2978, 8.507059e+37
          %v2980 = vand.u32 %v2911, 2147483648
          %v2981 = vor.u32 1.1754944e-38, %v2980
          %v2982 = vsel %vm2979, %v2981, %v2977
          %v2983 = vmul.f32 1.0, %v2982
          %v2984 = vrcp.pop %v2912
          %v2985 = vmul.f32 %v2912, %v2984
          %v2986 = vsub.f32 1.0, %v2985
          %v2987 = vmul.f32 %v2984, %v2986
          %v2988 = vadd.f32 %v2984, %v2987
          %vm2989 = vweird.f32 %v2912
          %vm2990 = vweird.f32 %v2984
          %vm2991 = vmor %vm2989, %vm2990
          %v2992 = vsel %vm2991, %v2984, %v2988
          %v2993 = vand.u32 2147483647, %v2912
          %vm2994 = vcmp.eq.f32.partialorder %v2993, 8.507059e+37
          %v2995 = vand.u32 %v2912, 2147483648
          %v2996 = vor.u32 1.1754944e-38, %v2995
          %v2997 = vsel %vm2994, %v2996, %v2992
          %v2998 = vmul.f32 1.0, %v2997
          %v2999 = vrcp.pop %v2913
          %v3000 = vmul.f32 %v2913, %v2999
          %v3001 = vsub.f32 1.0, %v3000
          %v3002 = vmul.f32 %v2999, %v3001
          %v3003 = vadd.f32 %v2999, %v3002
          %vm3004 = vweird.f32 %v2913
          %vm3005 = vweird.f32 %v2999
          %vm3006 = vmor %vm3004, %vm3005
          %v3007 = vsel %vm3006, %v2999, %v3003
          %v3008 = vand.u32 2147483647, %v2913
          %vm3009 = vcmp.eq.f32.partialorder %v3008, 8.507059e+37
          %v3010 = vand.u32 %v2913, 2147483648
          %v3011 = vor.u32 1.1754944e-38, %v3010
          %v3012 = vsel %vm3009, %v3011, %v3007
          %v3013 = vmul.f32 1.0, %v3012
          %v3014 = vrcp.pop %v2914
          %v3015 = vmul.f32 %v2914, %v3014
          %v3016 = vsub.f32 1.0, %v3015
          %v3017 = vmul.f32 %v3014, %v3016
          %v3018 = vadd.f32 %v3014, %v3017
          %vm3019 = vweird.f32 %v2914
          %vm3020 = vweird.f32 %v3014
          %vm3021 = vmor %vm3019, %vm3020
          %v3022 = vsel %vm3021, %v3014, %v3018
          %v3023 = vand.u32 2147483647, %v2914
          %vm3024 = vcmp.eq.f32.partialorder %v3023, 8.507059e+37
          %v3025 = vand.u32 %v2914, 2147483648
          %v3026 = vor.u32 1.1754944e-38, %v3025
          %v3027 = vsel %vm3024, %v3026, %v3022
          %v3028 = vmul.f32 1.0, %v3027
          %v3029 = vrcp.pop %v2915
          %v3030 = vmul.f32 %v2915, %v3029
          %v3031 = vsub.f32 1.0, %v3030
          %v3032 = vmul.f32 %v3029, %v3031
          %v3033 = vadd.f32 %v3029, %v3032
          %vm3034 = vweird.f32 %v2915
          %vm3035 = vweird.f32 %v3029
          %vm3036 = vmor %vm3034, %vm3035
          %v3037 = vsel %vm3036, %v3029, %v3033
          %v3038 = vand.u32 2147483647, %v2915
          %vm3039 = vcmp.eq.f32.partialorder %v3038, 8.507059e+37
          %v3040 = vand.u32 %v2915, 2147483648
          %v3041 = vor.u32 1.1754944e-38, %v3040
          %v3042 = vsel %vm3039, %v3041, %v3037
          %v3043 = vmul.f32 1.0, %v3042
          %v3044 = vrcp.pop %v2916
          %v3045 = vmul.f32 %v2916, %v3044
          %v3046 = vsub.f32 1.0, %v3045
          %v3047 = vmul.f32 %v3044, %v3046
          %v3048 = vadd.f32 %v3044, %v3047
          %vm3049 = vweird.f32 %v2916
          %vm3050 = vweird.f32 %v3044
          %vm3051 = vmor %vm3049, %vm3050
          %v3052 = vsel %vm3051, %v3044, %v3048
          %v3053 = vand.u32 2147483647, %v2916
          %vm3054 = vcmp.eq.f32.partialorder %v3053, 8.507059e+37
          %v3055 = vand.u32 %v2916, 2147483648
          %v3056 = vor.u32 1.1754944e-38, %v3055
          %v3057 = vsel %vm3054, %v3056, %v3052
          %v3058 = vmul.f32 1.0, %v3057
          %v3059 = vrcp.pop %v2917
          %v3060 = vmul.f32 %v2917, %v3059
          %v3061 = vsub.f32 1.0, %v3060
          %v3062 = vmul.f32 %v3059, %v3061
          %v3063 = vadd.f32 %v3059, %v3062
          %vm3064 = vweird.f32 %v2917
          %vm3065 = vweird.f32 %v3059
          %vm3066 = vmor %vm3064, %vm3065
          %v3067 = vsel %vm3066, %v3059, %v3063
          %v3068 = vand.u32 2147483647, %v2917
          %vm3069 = vcmp.eq.f32.partialorder %v3068, 8.507059e+37
          %v3070 = vand.u32 %v2917, 2147483648
          %v3071 = vor.u32 1.1754944e-38, %v3070
          %v3072 = vsel %vm3069, %v3071, %v3067
          %v3073 = vmul.f32 1.0, %v3072
          %v3074 = vrcp.pop %v2918
          %v3075 = vmul.f32 %v2918, %v3074
          %v3076 = vsub.f32 1.0, %v3075
          %v3077 = vmul.f32 %v3074, %v3076
          %v3078 = vadd.f32 %v3074, %v3077
          %vm3079 = vweird.f32 %v2918
          %vm3080 = vweird.f32 %v3074
          %vm3081 = vmor %vm3079, %vm3080
          %v3082 = vsel %vm3081, %v3074, %v3078
          %v3083 = vand.u32 2147483647, %v2918
          %vm3084 = vcmp.eq.f32.partialorder %v3083, 8.507059e+37
          %v3085 = vand.u32 %v2918, 2147483648
          %v3086 = vor.u32 1.1754944e-38, %v3085
          %v3087 = vsel %vm3084, %v3086, %v3082
          %v3088 = vmul.f32 1.0, %v3087
          %v3089 = vrcp.pop %v2919
          %v3090 = vmul.f32 %v2919, %v3089
          %v3091 = vsub.f32 1.0, %v3090
          %v3092 = vmul.f32 %v3089, %v3091
          %v3093 = vadd.f32 %v3089, %v3092
          %vm3094 = vweird.f32 %v2919
          %vm3095 = vweird.f32 %v3089
          %vm3096 = vmor %vm3094, %vm3095
          %v3097 = vsel %vm3096, %v3089, %v3093
          %v3098 = vand.u32 2147483647, %v2919
          %vm3099 = vcmp.eq.f32.partialorder %v3098, 8.507059e+37
          %v3100 = vand.u32 %v2919, 2147483648
          %v3101 = vor.u32 1.1754944e-38, %v3100
          %v3102 = vsel %vm3099, %v3101, %v3097
          %v3103 = vmul.f32 1.0, %v3102
          %v3104 = vrcp.pop %v2920
          %v3105 = vmul.f32 %v2920, %v3104
          %v3106 = vsub.f32 1.0, %v3105
          %v3107 = vmul.f32 %v3104, %v3106
          %v3108 = vadd.f32 %v3104, %v3107
          %vm3109 = vweird.f32 %v2920
          %vm3110 = vweird.f32 %v3104
          %vm3111 = vmor %vm3109, %vm3110
          %v3112 = vsel %vm3111, %v3104, %v3108
          %v3113 = vand.u32 2147483647, %v2920
          %vm3114 = vcmp.eq.f32.partialorder %v3113, 8.507059e+37
          %v3115 = vand.u32 %v2920, 2147483648
          %v3116 = vor.u32 1.1754944e-38, %v3115
          %v3117 = vsel %vm3114, %v3116, %v3112
          %v3118 = vmul.f32 1.0, %v3117
          %v3119 = vrcp.pop %v2921
          %v3120 = vmul.f32 %v2921, %v3119
          %v3121 = vsub.f32 1.0, %v3120
          %v3122 = vmul.f32 %v3119, %v3121
          %v3123 = vadd.f32 %v3119, %v3122
          %vm3124 = vweird.f32 %v2921
          %vm3125 = vweird.f32 %v3119
          %vm3126 = vmor %vm3124, %vm3125
          %v3127 = vsel %vm3126, %v3119, %v3123
          %v3128 = vand.u32 2147483647, %v2921
          %vm3129 = vcmp.eq.f32.partialorder %v3128, 8.507059e+37
          %v3130 = vand.u32 %v2921, 2147483648
          %v3131 = vor.u32 1.1754944e-38, %v3130
          %v3132 = vsel %vm3129, %v3131, %v3127
          %v3133 = vmul.f32 1.0, %v3132
          %v3134 = vrcp.pop %v2922
          %v3135 = vmul.f32 %v2922, %v3134
          %v3136 = vsub.f32 1.0, %v3135
          %v3137 = vmul.f32 %v3134, %v3136
          %v3138 = vadd.f32 %v3134, %v3137
          %vm3139 = vweird.f32 %v2922
          %vm3140 = vweird.f32 %v3134
          %vm3141 = vmor %vm3139, %vm3140
          %v3142 = vsel %vm3141, %v3134, %v3138
          %v3143 = vand.u32 2147483647, %v2922
          %vm3144 = vcmp.eq.f32.partialorder %v3143, 8.507059e+37
          %v3145 = vand.u32 %v2922, 2147483648
          %v3146 = vor.u32 1.1754944e-38, %v3145
          %v3147 = vsel %vm3144, %v3146, %v3142
          %v3148 = vmul.f32 1.0, %v3147
          %v3149 = vrcp.pop %v2923
          %v3150 = vmul.f32 %v2923, %v3149
          %v3151 = vsub.f32 1.0, %v3150
          %v3152 = vmul.f32 %v3149, %v3151
          %v3153 = vadd.f32 %v3149, %v3152
          %vm3154 = vweird.f32 %v2923
          %vm3155 = vweird.f32 %v3149
          %vm3156 = vmor %vm3154, %vm3155
          %v3157 = vsel %vm3156, %v3149, %v3153
          %v3158 = vand.u32 2147483647, %v2923
          %vm3159 = vcmp.eq.f32.partialorder %v3158, 8.507059e+37
          %v3160 = vand.u32 %v2923, 2147483648
          %v3161 = vor.u32 1.1754944e-38, %v3160
          %v3162 = vsel %vm3159, %v3161, %v3157
          %v3163 = vmul.f32 1.0, %v3162
          %v3164 = vld [vmem:[#allocation8] sm:$0xff]
          %v3165 = vld [vmem:[#allocation8 + $0x8] sm:$0xff]
          %v3166 = vld [vmem:[#allocation8 + $0x10] sm:$0xff]
          %v3167 = vld [vmem:[#allocation8 + $0x18] sm:$0xff]
          %v3168 = vld [vmem:[#allocation8 + $0x20] sm:$0xff]
          %v3169 = vld [vmem:[#allocation8 + $0x28] sm:$0xff]
          %v3170 = vld [vmem:[#allocation8 + $0x30] sm:$0xff]
          %v3171 = vld [vmem:[#allocation8 + $0x38] sm:$0xff]
          %v3172 = vld [vmem:[#allocation8 + $0x40] sm:$0xff]
          %v3173 = vld [vmem:[#allocation8 + $0x48] sm:$0xff]
          %v3174 = vld [vmem:[#allocation8 + $0x50] sm:$0xff]
          %v3175 = vld [vmem:[#allocation8 + $0x58] sm:$0xff]
          %v3176 = vld [vmem:[#allocation8 + $0x60] sm:$0xff]
          %v3177 = vld [vmem:[#allocation8 + $0x68] sm:$0xff]
          %v3178 = vld [vmem:[#allocation8 + $0x70] sm:$0xff]
          %v3179 = vld [vmem:[#allocation8 + $0x78] sm:$0xff]
          %3181 = vset.pattern.permute.xlu0 0
          %3182 = vperm.xlu0 %3181, %v2682
          %v3183 = vpop.permute.xlu0 %3182
          %3186 = vset.pattern.permute.xlu0 0
          %3187 = vperm.xlu0 %3186, %v2697
          %v3188 = vpop.permute.xlu0 %3187
          %3191 = vset.pattern.permute.xlu0 0
          %3192 = vperm.xlu0 %3191, %v2712
          %v3193 = vpop.permute.xlu0 %3192
          %3196 = vset.pattern.permute.xlu0 0
          %3197 = vperm.xlu0 %3196, %v2727
          %v3198 = vpop.permute.xlu0 %3197
          %3201 = vset.pattern.permute.xlu0 0
          %3202 = vperm.xlu0 %3201, %v2742
          %v3203 = vpop.permute.xlu0 %3202
          %3206 = vset.pattern.permute.xlu0 0
          %3207 = vperm.xlu0 %3206, %v2757
          %v3208 = vpop.permute.xlu0 %3207
          %3211 = vset.pattern.permute.xlu0 0
          %3212 = vperm.xlu0 %3211, %v2772
          %v3213 = vpop.permute.xlu0 %3212
          %3216 = vset.pattern.permute.xlu0 0
          %3217 = vperm.xlu0 %3216, %v2787
          %v3218 = vpop.permute.xlu0 %3217
          %3221 = vset.pattern.permute.xlu0 0
          %3222 = vperm.xlu0 %3221, %v2802
          %v3223 = vpop.permute.xlu0 %3222
          %3226 = vset.pattern.permute.xlu0 0
          %3227 = vperm.xlu0 %3226, %v2817
          %v3228 = vpop.permute.xlu0 %3227
          %3231 = vset.pattern.permute.xlu0 0
          %3232 = vperm.xlu0 %3231, %v2832
          %v3233 = vpop.permute.xlu0 %3232
          %3236 = vset.pattern.permute.xlu0 0
          %3237 = vperm.xlu0 %3236, %v2847
          %v3238 = vpop.permute.xlu0 %3237
          %3241 = vset.pattern.permute.xlu0 0
          %3242 = vperm.xlu0 %3241, %v2862
          %v3243 = vpop.permute.xlu0 %3242
          %3246 = vset.pattern.permute.xlu0 0
          %3247 = vperm.xlu0 %3246, %v2877
          %v3248 = vpop.permute.xlu0 %3247
          %3251 = vset.pattern.permute.xlu0 0
          %3252 = vperm.xlu0 %3251, %v2892
          %v3253 = vpop.permute.xlu0 %3252
          %3256 = vset.pattern.permute.xlu0 0
          %3257 = vperm.xlu0 %3256, %v2907
          %v3258 = vpop.permute.xlu0 %3257
          %v3260 = vmul.f32 %v3164, %v3183
          %v3261 = vmul.f32 %v3165, %v3188
          %v3262 = vmul.f32 %v3166, %v3193
          %v3263 = vmul.f32 %v3167, %v3198
          %v3264 = vmul.f32 %v3168, %v3203
          %v3265 = vmul.f32 %v3169, %v3208
          %v3266 = vmul.f32 %v3170, %v3213
          %v3267 = vmul.f32 %v3171, %v3218
          %v3268 = vmul.f32 %v3172, %v3223
          %v3269 = vmul.f32 %v3173, %v3228
          %v3270 = vmul.f32 %v3174, %v3233
          %v3271 = vmul.f32 %v3175, %v3238
          %v3272 = vmul.f32 %v3176, %v3243
          %v3273 = vmul.f32 %v3177, %v3248
          %v3274 = vmul.f32 %v3178, %v3253
          %v3275 = vmul.f32 %v3179, %v3258
          %v3276 = vstv %s2651
          %v3277 = vmul.f32 %v3276, %v3260
          %v3278 = vmul.f32 %v3276, %v3261
          %v3279 = vmul.f32 %v3276, %v3262
          %v3280 = vmul.f32 %v3276, %v3263
          %v3281 = vmul.f32 %v3276, %v3264
          %v3282 = vmul.f32 %v3276, %v3265
          %v3283 = vmul.f32 %v3276, %v3266
          %v3284 = vmul.f32 %v3276, %v3267
          %v3285 = vmul.f32 %v3276, %v3268
          %v3286 = vmul.f32 %v3276, %v3269
          %v3287 = vmul.f32 %v3276, %v3270
          %v3288 = vmul.f32 %v3276, %v3271
          %v3289 = vmul.f32 %v3276, %v3272
          %v3290 = vmul.f32 %v3276, %v3273
          %v3291 = vmul.f32 %v3276, %v3274
          %v3292 = vmul.f32 %v3276, %v3275
          %s3293 = ssub.f32 1.0, %s2651
          %v3294 = vld [vmem:[#allocation9] sm:$0xff]
          %v3295 = vld [vmem:[#allocation9 + $0x8] sm:$0xff]
          %v3296 = vld [vmem:[#allocation9 + $0x10] sm:$0xff]
          %v3297 = vld [vmem:[#allocation9 + $0x18] sm:$0xff]
          %v3298 = vld [vmem:[#allocation9 + $0x20] sm:$0xff]
          %v3299 = vld [vmem:[#allocation9 + $0x28] sm:$0xff]
          %v3300 = vld [vmem:[#allocation9 + $0x30] sm:$0xff]
          %v3301 = vld [vmem:[#allocation9 + $0x38] sm:$0xff]
          %v3302 = vld [vmem:[#allocation9 + $0x40] sm:$0xff]
          %v3303 = vld [vmem:[#allocation9 + $0x48] sm:$0xff]
          %v3304 = vld [vmem:[#allocation9 + $0x50] sm:$0xff]
          %v3305 = vld [vmem:[#allocation9 + $0x58] sm:$0xff]
          %v3306 = vld [vmem:[#allocation9 + $0x60] sm:$0xff]
          %v3307 = vld [vmem:[#allocation9 + $0x68] sm:$0xff]
          %v3308 = vld [vmem:[#allocation9 + $0x70] sm:$0xff]
          %v3309 = vld [vmem:[#allocation9 + $0x78] sm:$0xff]
          %3311 = vset.pattern.permute.xlu0 0
          %3312 = vperm.xlu0 %3311, %v2938
          %v3313 = vpop.permute.xlu0 %3312
          %3316 = vset.pattern.permute.xlu0 0
          %3317 = vperm.xlu0 %3316, %v2953
          %v3318 = vpop.permute.xlu0 %3317
          %3321 = vset.pattern.permute.xlu0 0
          %3322 = vperm.xlu0 %3321, %v2968
          %v3323 = vpop.permute.xlu0 %3322
          %3326 = vset.pattern.permute.xlu0 0
          %3327 = vperm.xlu0 %3326, %v2983
          %v3328 = vpop.permute.xlu0 %3327
          %3331 = vset.pattern.permute.xlu0 0
          %3332 = vperm.xlu0 %3331, %v2998
          %v3333 = vpop.permute.xlu0 %3332
          %3336 = vset.pattern.permute.xlu0 0
          %3337 = vperm.xlu0 %3336, %v3013
          %v3338 = vpop.permute.xlu0 %3337
          %3341 = vset.pattern.permute.xlu0 0
          %3342 = vperm.xlu0 %3341, %v3028
          %v3343 = vpop.permute.xlu0 %3342
          %3346 = vset.pattern.permute.xlu0 0
          %3347 = vperm.xlu0 %3346, %v3043
          %v3348 = vpop.permute.xlu0 %3347
          %3351 = vset.pattern.permute.xlu0 0
          %3352 = vperm.xlu0 %3351, %v3058
          %v3353 = vpop.permute.xlu0 %3352
          %3356 = vset.pattern.permute.xlu0 0
          %3357 = vperm.xlu0 %3356, %v3073
          %v3358 = vpop.permute.xlu0 %3357
          %3361 = vset.pattern.permute.xlu0 0
          %3362 = vperm.xlu0 %3361, %v3088
          %v3363 = vpop.permute.xlu0 %3362
          %3366 = vset.pattern.permute.xlu0 0
          %3367 = vperm.xlu0 %3366, %v3103
          %v3368 = vpop.permute.xlu0 %3367
          %3371 = vset.pattern.permute.xlu0 0
          %3372 = vperm.xlu0 %3371, %v3118
          %v3373 = vpop.permute.xlu0 %3372
          %3376 = vset.pattern.permute.xlu0 0
          %3377 = vperm.xlu0 %3376, %v3133
          %v3378 = vpop.permute.xlu0 %3377
          %3381 = vset.pattern.permute.xlu0 0
          %3382 = vperm.xlu0 %3381, %v3148
          %v3383 = vpop.permute.xlu0 %3382
          %3386 = vset.pattern.permute.xlu0 0
          %3387 = vperm.xlu0 %3386, %v3163
          %v3388 = vpop.permute.xlu0 %3387
          %v3390 = vmul.f32 %v3294, %v3313
          %v3391 = vmul.f32 %v3295, %v3318
          %v3392 = vmul.f32 %v3296, %v3323
          %v3393 = vmul.f32 %v3297, %v3328
          %v3394 = vmul.f32 %v3298, %v3333
          %v3395 = vmul.f32 %v3299, %v3338
          %v3396 = vmul.f32 %v3300, %v3343
          %v3397 = vmul.f32 %v3301, %v3348
          %v3398 = vmul.f32 %v3302, %v3353
          %v3399 = vmul.f32 %v3303, %v3358
          %v3400 = vmul.f32 %v3304, %v3363
          %v3401 = vmul.f32 %v3305, %v3368
          %v3402 = vmul.f32 %v3306, %v3373
          %v3403 = vmul.f32 %v3307, %v3378
          %v3404 = vmul.f32 %v3308, %v3383
          %v3405 = vmul.f32 %v3309, %v3388
          %v3406 = vstv %s3293
          %v3407 = vmul.f32 %v3406, %v3390
          %v3408 = vmul.f32 %v3406, %v3391
          %v3409 = vmul.f32 %v3406, %v3392
          %v3410 = vmul.f32 %v3406, %v3393
          %v3411 = vmul.f32 %v3406, %v3394
          %v3412 = vmul.f32 %v3406, %v3395
          %v3413 = vmul.f32 %v3406, %v3396
          %v3414 = vmul.f32 %v3406, %v3397
          %v3415 = vmul.f32 %v3406, %v3398
          %v3416 = vmul.f32 %v3406, %v3399
          %v3417 = vmul.f32 %v3406, %v3400
          %v3418 = vmul.f32 %v3406, %v3401
          %v3419 = vmul.f32 %v3406, %v3402
          %v3420 = vmul.f32 %v3406, %v3403
          %v3421 = vmul.f32 %v3406, %v3404
          %v3422 = vmul.f32 %v3406, %v3405
          %v3423 = vadd.f32 %v3277, %v3407
          %v3424 = vadd.f32 %v3278, %v3408
          %v3425 = vadd.f32 %v3279, %v3409
          %v3426 = vadd.f32 %v3280, %v3410
          %v3427 = vadd.f32 %v3281, %v3411
          %v3428 = vadd.f32 %v3282, %v3412
          %v3429 = vadd.f32 %v3283, %v3413
          %v3430 = vadd.f32 %v3284, %v3414
          %v3431 = vadd.f32 %v3285, %v3415
          %v3432 = vadd.f32 %v3286, %v3416
          %v3433 = vadd.f32 %v3287, %v3417
          %v3434 = vadd.f32 %v3288, %v3418
          %v3435 = vadd.f32 %v3289, %v3419
          %v3436 = vadd.f32 %v3290, %v3420
          %v3437 = vadd.f32 %v3291, %v3421
          %v3438 = vadd.f32 %v3292, %v3422
          %v3439 = vld [vmem:[#allocation19] sm:$0xff]
          %v3440 = vld [vmem:[#allocation19 + $0x8] sm:$0xff]
          %v3441 = vld [vmem:[%s7] sm:$0x1]
          %v3443 = vperm.slane %v3441, 0
          %v3446 = vsel %vm945, %v3423, 0
          %v3449 = vsel %vm945, %v3424, 0
          %v3452 = vsel %vm945, %v3425, 0
          %v3455 = vsel %vm945, %v3426, 0
          %v3458 = vsel %vm945, %v3427, 0
          %v3461 = vsel %vm945, %v3428, 0
          %v3464 = vsel %vm945, %v3429, 0
          %v3467 = vsel %vm945, %v3430, 0
          %v3470 = vsel %vm945, %v3431, 0
          %v3473 = vsel %vm945, %v3432, 0
          %v3476 = vsel %vm945, %v3433, 0
          %v3479 = vsel %vm945, %v3434, 0
          %v3482 = vsel %vm945, %v3435, 0
          %v3485 = vsel %vm945, %v3436, 0
          %v3488 = vsel %vm945, %v3437, 0
          %v3491 = vsel %vm945, %v3438, 0
          %3493 = vmatpush.msra.mxu0 0.0
          %3494 = vmatpush.msra.mxu0 0.0
          %3495 = vmatpush.msra.mxu0 0.0
          %3496 = vmatpush.msra.mxu0 0.0
          %3497 = vmatpush.msra.mxu0 0.0
          %3498 = vmatpush.msra.mxu0 0.0
          %3499 = vmatpush.msra.mxu0 0.0
          %3500 = vmatpush.msra.mxu0 0.0
          %3501 = vmatpush.msra.mxu0 0.0
          %3502 = vmatpush.msra.mxu0 0.0
          %3503 = vmatpush.msra.mxu0 0.0
          %3504 = vmatpush.msra.mxu0 0.0
          %3505 = vmatpush.msra.mxu0 0.0
          %3506 = vmatpush.msra.mxu0 0.0
          %3507 = vmatpush.msra.mxu0 %v3440
          %3508 = vmatpush.msra.mxu0 %v3439
          %3509 = vmatmul.f32.gmra.mxu0 %v3446
          %v3510 = vpop.f32.mrf.mxu0
          %v3511 = vadd.f32 %v3443, %v3510
          %3512 = vmatmul.f32.gmra.mxu0 %v3449
          %v3513 = vpop.f32.mrf.mxu0
          %v3514 = vadd.f32 %v3443, %v3513
          %3515 = vmatmul.f32.gmra.mxu0 %v3452
          %v3516 = vpop.f32.mrf.mxu0
          %v3517 = vadd.f32 %v3443, %v3516
          %3518 = vmatmul.f32.gmra.mxu0 %v3455
          %v3519 = vpop.f32.mrf.mxu0
          %v3520 = vadd.f32 %v3443, %v3519
          %3521 = vmatmul.f32.gmra.mxu0 %v3458
          %v3522 = vpop.f32.mrf.mxu0
          %v3523 = vadd.f32 %v3443, %v3522
          %3524 = vmatmul.f32.gmra.mxu0 %v3461
          %v3525 = vpop.f32.mrf.mxu0
          %v3526 = vadd.f32 %v3443, %v3525
          %3527 = vmatmul.f32.gmra.mxu0 %v3464
          %v3528 = vpop.f32.mrf.mxu0
          %v3529 = vadd.f32 %v3443, %v3528
          %3530 = vmatmul.f32.gmra.mxu0 %v3467
          %v3531 = vpop.f32.mrf.mxu0
          %v3532 = vadd.f32 %v3443, %v3531
          %3533 = vmatmul.f32.gmra.mxu0 %v3470
          %v3534 = vpop.f32.mrf.mxu0
          %v3535 = vadd.f32 %v3443, %v3534
          %3536 = vmatmul.f32.gmra.mxu0 %v3473
          %v3537 = vpop.f32.mrf.mxu0
          %v3538 = vadd.f32 %v3443, %v3537
          %3539 = vmatmul.f32.gmra.mxu0 %v3476
          %v3540 = vpop.f32.mrf.mxu0
          %v3541 = vadd.f32 %v3443, %v3540
          %3542 = vmatmul.f32.gmra.mxu0 %v3479
          %v3543 = vpop.f32.mrf.mxu0
          %v3544 = vadd.f32 %v3443, %v3543
          %3545 = vmatmul.f32.gmra.mxu0 %v3482
          %v3546 = vpop.f32.mrf.mxu0
          %v3547 = vadd.f32 %v3443, %v3546
          %3548 = vmatmul.f32.gmra.mxu0 %v3485
          %v3549 = vpop.f32.mrf.mxu0
          %v3550 = vadd.f32 %v3443, %v3549
          %3551 = vmatmul.f32.gmra.mxu0 %v3488
          %v3552 = vpop.f32.mrf.mxu0
          %v3553 = vadd.f32 %v3443, %v3552
          %3554 = vmatmul.f32.gmra.mxu0 %v3491
          %v3555 = vpop.f32.mrf.mxu0
          %v3556 = vadd.f32 %v3443, %v3555
          %3557 = vdwg.mxu0
          %3558 = vxpose.xlu0.b32.start [1/16] %v3511, 128
          %3559 = vxpose.xlu0.b32.cont [2/16] %v3514, 128
          %3560 = vxpose.xlu0.b32.cont [3/16] %v3517, 128
          %3561 = vxpose.xlu0.b32.cont [4/16] %v3520, 128
          %3562 = vxpose.xlu0.b32.cont [5/16] %v3523, 128
          %3563 = vxpose.xlu0.b32.cont [6/16] %v3526, 128
          %3564 = vxpose.xlu0.b32.cont [7/16] %v3529, 128
          %3565 = vxpose.xlu0.b32.cont [8/16] %v3532, 128
          %3566 = vxpose.xlu0.b32.cont [9/16] %v3535, 128
          %3567 = vxpose.xlu0.b32.cont [10/16] %v3538, 128
          %3568 = vxpose.xlu0.b32.cont [11/16] %v3541, 128
          %3569 = vxpose.xlu0.b32.cont [12/16] %v3544, 128
          %3570 = vxpose.xlu0.b32.cont [13/16] %v3547, 128
          %3571 = vxpose.xlu0.b32.cont [14/16] %v3550, 128
          %3572 = vxpose.xlu0.b32.cont [15/16] %v3553, 128
          %3573 = vxpose.xlu0.b32.end [16/16] %v3556, 128
          %v3574 = vpop.trf.xlu0
          %v3575 = vpop.trf.xlu0
          %v3576 = vpop.trf.xlu0
          %v3577 = vpop.trf.xlu0
          %v3578 = vpop.trf.xlu0
          %v3579 = vpop.trf.xlu0
          %v3580 = vpop.trf.xlu0
          %v3581 = vpop.trf.xlu0
          %v3582 = vpop.trf.xlu0
          %v3583 = vpop.trf.xlu0
          %v3584 = vpop.trf.xlu0
          %v3585 = vpop.trf.xlu0
          %v3586 = vpop.trf.xlu0
          %v3587 = vpop.trf.xlu0
          %v3588 = vpop.trf.xlu0
          %v3589 = vpop.trf.xlu0
          %v3590 = vstv %s2650
          %v3591 = vmul.f32 %v3590, %v3574
          %v3592 = vmul.f32 %v3590, %v3575
          %v3593 = vld [vmem:[%s428] sm:$0xff]
          %v3594 = vld [vmem:[%s428 + $0x8] sm:$0xff]
          %v3595 = vadd.f32 %v3591, %v3593
          %v3596 = vadd.f32 %v3592, %v3594
          %3597 = vst [vmem:[%s509] sm:$0xff] %v3595
          %3598 = vst [vmem:[%s509 + $0x8] sm:$0xff] %v3596
        $region88: #{tpu_custom_call.1} parent=55 // pred_fallthru
          _
        %s3599 = sand.u32 %s270, 1
        %s3600 = scalar_lea.sflag [#allocation12], %s3599
        %s3601 = sand.u32 %s270, 1
        %s3602 = smul.addr %s3601, 16
        %s3603 = scalar_lea.vmem [#allocation21], %s3602
        // Predicated region
        $region89: #{tpu_custom_call.1} parent=55 // pred_check
          %p3604 = pneg %p280
        $region90: #{tpu_custom_call.1} parent=55 // pred_check_branch
          %3606 = sbr.rel (%p3604) target = $region92
        $region91: #{tpu_custom_call.1} parent=55 // pred_region
          %3608 = vsyncadd %s3600, 0
          %s3609 = smul.addr %s36, 4
          %s3610 = sadd.s32 %s37, %s3609
          %s3611 = smul.addr %s3610, 8
          %s3612 = scalar_lea.hbm %s9, %s3611
          %s3613 = sshll.u32 %s3603, 4
          %s3614 = int_to_ptr.vmem [resolvable:$true] %s3613
          %s3615 = sshll.u32 %s3612, 4
          %s3616 = int_to_ptr.hbm [resolvable:$true] %s3615
          %3621 = dma.vmem_to_hbm [thread:$0]  %s3614, 256, %s3616, %s3600, 128, 256, 8
        $region92: #{tpu_custom_call.1} parent=55 // pred_fallthru
          _
      $region56: #{tpu_custom_call.1} parent=5 // pred_fallthru
        _
      %p3622 = scmp.le.s32.totalorder 2, %s26
      // Predicated region
      $region93: #{tpu_custom_call.1} parent=5 // pred_check
        %p3623 = pneg %p3622
      $region94: #{tpu_custom_call.1} parent=5 // pred_check_branch
        %3625 = sbr.rel (%p3623) target = $region96
      $region95: #{tpu_custom_call.1} parent=5 // pred_region
        %s3626 = ssub.s32 %s26, 2
        // Predicated region
        $region97: #{tpu_custom_call.1} parent=95 // pred_check
          %p3627 = pneg %p286
        $region98: #{tpu_custom_call.1} parent=95 // pred_check_branch
          %3629 = sbr.rel (%p3627) target = $region100
        $region99: #{tpu_custom_call.1} parent=95 // pred_region
          %s3630 = sand.u32 %s271, 1
          %s3631 = scalar_lea.sflag [#allocation12], %s3630
          %s3632 = sand.u32 %s271, 1
          %s3633 = smul.addr %s3632, 16
          %s3634 = scalar_lea.vmem [#allocation21], %s3633
          %3636 = dma.done %s3631, 256
        $region100: #{tpu_custom_call.1} parent=95 // pred_fallthru
          _
      $region96: #{tpu_custom_call.1} parent=5 // pred_fallthru
        _
    $region6: #{tpu_custom_call.1} parent=1 // loop_footer
      %s30 = sadd.s32 1, %s26
    $region7: #{tpu_custom_call.1} parent=1 // loop_footer_branch
      %25 = sbr.rel target = $region3
    $region8: #{tpu_custom_call.1} parent=1 // loop_exit
      _
    %3637 = vsyncpa [#allocation11], 1
    %s3638 = scalar_lea.sflag [#allocation11], 1
    %3639 = vsyncpa %s3638, 1
    %3640 = vsyncpa [#allocation15], 1
    %s3641 = scalar_lea.sflag [#allocation15], 1
    %3642 = vsyncpa %s3641, 1
    %3643 = vsyncpa [#allocation18], 1
    %3644 = vsyncpa [#allocation12], 1
    %s3645 = scalar_lea.sflag [#allocation12], 1
    %3646 = vsyncpa %s3645, 1
    %3647 = vsyncpa [#allocation13], 1
    %s3648 = scalar_lea.sflag [#allocation13], 1
    %3649 = vsyncpa %s3648, 1

</llo_original>
